<compile_context>
chip_gen: v6e
topology: v6e:2x2x1
jax: 0.10.0
libtpu: 0.0.40
codegen_flags: <defaults>
</compile_context>

<pallas_src>
import functools

import jax
import jax.numpy as jnp
from jax import lax
from jax.experimental import pallas as pl
from jax.experimental.pallas import tpu as pltpu

LANE = 128


def _round_up(v, m):
    return (v + m - 1) // m * m


def _rcab_kernel(x_ref, w1_ref, b1_ref, w2_ref, b2_ref,
                 wd_ref, bd_ref, wu_ref, bu_ref, o_ref, buf_ref,
                 *, H, W, halo):
    """One packed image-group per grid step.

    x_ref : (1, T, Cp) f32, T = halo + H*(W+1) + halo rows, channels lane-dense.
    o_ref : (1, M, Cp) f32, M = H*(W+1) rows (pad columns stripped by wrapper).
    buf_ref: (T, Cp) f32 VMEM scratch holding the halo'd conv2 input.
    """
    Ws = W + 1                      # flat row stride (one zero pad column per row)
    M = H * Ws
    Cp = o_ref.shape[-1]
    K3 = 3 * Cp

    # "Real pixel" row mask: flat rows i*Ws + W are the per-row pad column and
    # must be excluded from conv2's input and from the global average pool.
    # Built from iota / compare / lane-reduce only (no integer div/mod); the
    # (M, H) helper is small relative to the (M, Cp) activation slabs.
    p_idx = lax.broadcasted_iota(jnp.int32, (M, H), 0)
    pad_rows = lax.broadcasted_iota(jnp.int32, (M, H), 1) * Ws + W
    hits = jnp.sum((p_idx == pad_rows).astype(jnp.int32), axis=1, keepdims=True)
    real = hits == 0                                        # (M, 1) bool

    def conv3x3(tap, w_ref, b_ref):
        # SAME 3x3 conv as 3 accumulated MXU matmuls (one per kernel row, K=3*Cp),
        # bf16 operands, f32 accumulation.
        acc = jnp.zeros((M, Cp), jnp.float32)
        for g, dy in enumerate((-1, 0, 1)):
            grp = jnp.concatenate([tap(dy * Ws + dx) for dx in (-1, 0, 1)],
                                  axis=1)                   # (M, 3*Cp) bf16
            acc = acc + jnp.dot(grp, w_ref[pl.ds(g * K3, K3), :],
                                preferred_element_type=jnp.float32)
        return acc + b_ref[...]

    # ---- conv1: taps are shifted reads of the halo-padded input block ----
    def x_tap(off):
        return x_ref[0, pl.ds(halo + off, M), :].astype(jnp.bfloat16)

    r = jnp.maximum(conv3x3(x_tap, w1_ref, b1_ref), 0.0)    # conv -> ReLU
    r = jnp.where(real, r, 0.0)                             # zero pad-column rows

    # ---- stage r (with zero halo) in scratch; conv2 taps are shifted reads ----
    buf_ref[pl.ds(0, halo), :] = jnp.zeros((halo, Cp), jnp.float32)
    buf_ref[pl.ds(halo + M, halo), :] = jnp.zeros((halo, Cp), jnp.float32)
    buf_ref[pl.ds(halo, M), :] = r

    def r_tap(off):
        return buf_ref[pl.ds(halo + off, M), :].astype(jnp.bfloat16)

    r2 = conv3x3(r_tap, w2_ref, b2_ref)
    r2 = jnp.where(real, r2, 0.0)

    # ---- CALayer: global avg pool + squeeze/excite + sigmoid gate.  Lanes of
    # different packed images are disjoint; block-diagonal CA weights keep each
    # image's statistics separate.  Tiny M=1 matmuls, kept in f32. ----
    y = jnp.sum(r2, axis=0, keepdims=True) * (1.0 / (H * W))            # (1, Cp)
    h = jnp.maximum(
        jnp.dot(y, wd_ref[...], preferred_element_type=jnp.float32) + bd_ref[...],
        0.0)
    s = jax.nn.sigmoid(
        jnp.dot(h, wu_ref[...], preferred_element_type=jnp.float32) + bu_ref[...])

    # ---- gate + residual add ----
    x_mid = x_ref[0, pl.ds(halo, M), :]
    o_ref[0] = (r2 * s + x_mid).astype(o_ref.dtype)


def rcab_forward(x_nchw, params):
    """x_nchw: (N, C, H, W) float32. Returns (N, C, H, W) float32."""
    N, C, H, W = x_nchw.shape
    Cr = params["wd"].shape[1]

    # Batch-lane packing: put P images' channels side by side on the lane axis.
    P = max(1, min(LANE // C, N)) if C < LANE else 1
    N_pad = _round_up(N, P)
    S = N_pad // P                      # grid steps
    Cpack = P * C
    Cp = _round_up(Cpack, LANE)
    Crpack = P * Cr
    Crp = _round_up(Crpack, LANE)

    Ws = W + 1                          # one zero pad column per image row
    M = H * Ws
    halo = _round_up(Ws + 1, 8)         # zero halo rows above/below (8-aligned)
    T = M + 2 * halo

    # ---- activations: NCHW -> packed, lane-dense, spatially padded flat layout
    x = jnp.transpose(x_nchw, (0, 2, 3, 1))                        # (N,H,W,C)
    if N_pad != N:
        x = jnp.pad(x, ((0, N_pad - N), (0, 0), (0, 0), (0, 0)))
    x = x.reshape(S, P, H, W, C).transpose(0, 2, 3, 1, 4)          # (S,H,W,P,C)
    x = x.reshape(S, H, W, Cpack)
    x = jnp.pad(x, ((0, 0), (0, 0), (0, 1), (0, Cp - Cpack)))      # pad col + lanes
    x = x.reshape(S, M, Cp)
    x = jnp.pad(x, ((0, 0), (halo, halo), (0, 0)))                 # halo rows -> (S,T,Cp)

    # ---- weights: block-diagonal over the P packed images; conv weights as a
    # (9*Cp, Cp) fat matrix in bf16 (MXU-native), biases / CA weights in f32.
    eye = jnp.eye(P, dtype=jnp.float32)

    def conv_fat(w):                    # (3,3,C,C) HWIO -> (9*Cp, Cp) bf16
        wb = jnp.einsum("pq,xyio->xypiqo", eye, w).reshape(3, 3, Cpack, Cpack)
        wb = jnp.pad(wb, ((0, 0), (0, 0), (0, Cp - Cpack), (0, Cp - Cpack)))
        return wb.reshape(9 * Cp, Cp).astype(jnp.bfloat16)

    def tile_bias(b, width, widthp):    # (1,c) -> (1,widthp), tiled over P images
        return jnp.pad(jnp.tile(b, (1, P)), ((0, 0), (0, widthp - width)))

    w1 = conv_fat(params["w1"])
    w2 = conv_fat(params["w2"])
    b1 = tile_bias(params["b1"], Cpack, Cp)
    b2 = tile_bias(params["b2"], Cpack, Cp)
    wd = jnp.einsum("pq,io->piqo", eye, params["wd"]).reshape(Cpack, Crpack)
    wd = jnp.pad(wd, ((0, Cp - Cpack), (0, Crp - Crpack)))
    bd = tile_bias(params["bd"], Crpack, Crp)
    wu = jnp.einsum("pq,io->piqo", eye, params["wu"]).reshape(Crpack, Cpack)
    wu = jnp.pad(wu, ((0, Crp - Crpack), (0, Cp - Cpack)))
    bu = tile_bias(params["bu"], Cpack, Cp)

    kernel = functools.partial(_rcab_kernel, H=H, W=W, halo=halo)
    const = lambda shape: pl.BlockSpec(shape, lambda n: (0,) * len(shape))

    out_flat = pl.pallas_call(
        kernel,
        out_shape=jax.ShapeDtypeStruct((S, M, Cp), jnp.float32),
        grid_spec=pltpu.PrefetchScalarGridSpec(
            num_scalar_prefetch=0,
            grid=(S,),
            in_specs=[
                pl.BlockSpec((1, T, Cp), lambda n: (n, 0, 0)),   # x (halo-padded)
                const((9 * Cp, Cp)),                             # conv1 fat weight (bf16)
                const((1, Cp)),                                  # conv1 bias
                const((9 * Cp, Cp)),                             # conv2 fat weight (bf16)
                const((1, Cp)),                                  # conv2 bias
                const((Cp, Crp)),                                # CA down-proj
                const((1, Crp)),                                 # CA down bias
                const((Crp, Cp)),                                # CA up-proj
                const((1, Cp)),                                  # CA up bias
            ],
            out_specs=pl.BlockSpec((1, M, Cp), lambda n: (n, 0, 0)),
            scratch_shapes=[pltpu.VMEM((T, Cp), jnp.float32)],
        ),
        compiler_params=pltpu.CompilerParams(
            dimension_semantics=("parallel",),
            vmem_limit_bytes=64 * 1024 * 1024,
        ),
    )(x, w1, b1, w2, b2, wd, bd, wu, bu)

    # Strip pad columns / padded lanes / padded batch and restore NCHW.
    out = out_flat.reshape(S, H, Ws, Cp)[:, :, :W, :Cpack]
    out = out.reshape(S, H, W, P, C).transpose(0, 3, 1, 2, 4)
    out = out.reshape(N_pad, H, W, C)[:N]
    return jnp.transpose(out, (0, 3, 1, 2))


def rcab_reference(x_nchw, params):
    """Pure-JAX (f32) reference for correctness check."""
    x = jnp.transpose(x_nchw, (0, 2, 3, 1))
    dn = ("NHWC", "HWIO", "NHWC")
    r = lax.conv_general_dilated(x, params["w1"], (1, 1), "SAME",
                                 dimension_numbers=dn) + params["b1"][0]
    r = jnp.maximum(r, 0.0)
    r = lax.conv_general_dilated(r, params["w2"], (1, 1), "SAME",
                                 dimension_numbers=dn) + params["b2"][0]
    y = jnp.mean(r, axis=(1, 2), keepdims=True)
    h = jnp.maximum(jnp.einsum("nhwc,cd->nhwd", y, params["wd"]) + params["bd"][0], 0.0)
    s = jax.nn.sigmoid(jnp.einsum("nhwd,dc->nhwc", h, params["wu"]) + params["bu"][0])
    out = r * s + x
    return jnp.transpose(out, (0, 3, 1, 2))


def make_params(key, n_feat, reduction):
    cr = n_feat // reduction
    ks = jax.random.split(key, 8)
    scale = 0.1
    return {
        "w1": scale * jax.random.normal(ks[0], (3, 3, n_feat, n_feat), jnp.float32),
        "b1": scale * jax.random.normal(ks[1], (1, n_feat), jnp.float32),
        "w2": scale * jax.random.normal(ks[2], (3, 3, n_feat, n_feat), jnp.float32),
        "b2": scale * jax.random.normal(ks[3], (1, n_feat), jnp.float32),
        "wd": scale * jax.random.normal(ks[4], (n_feat, cr), jnp.float32),
        "bd": scale * jax.random.normal(ks[5], (1, cr), jnp.float32),
        "wu": scale * jax.random.normal(ks[6], (cr, n_feat), jnp.float32),
        "bu": scale * jax.random.normal(ks[7], (1, n_feat), jnp.float32),
    }


if __name__ == "__main__":
    N, C, H, W = 2, 16, 16, 16
    reduction = 4  # n_feat // reduction must be >= 1

    key = jax.random.PRNGKey(0)
    kx, kp = jax.random.split(key)
    x = jax.random.normal(kx, (N, C, H, W), jnp.float32)
    params = make_params(kp, C, reduction)

    out = rcab_forward(x, params)
    out = jax.block_until_ready(out)

    ref = rcab_reference(x, params)
    assert out.shape == (N, C, H, W)
    # bf16 matmul operands (f32 accumulation) -> loosen vs the pure-f32 reference.
    assert jnp.allclose(out, ref, atol=2e-2, rtol=2e-2), "mismatch vs JAX reference"

    print("KERNEL_OK")
</pallas_src>

<mosaic_0001>
module attributes {stable_mosaic.version = 11 : i64} {
  func.func @_rcab_kernel(%arg0: i32, %arg1: memref<1x320x128xf32, #tpu.memory_space<vmem>>, %arg2: memref<1152x128xbf16, #tpu.memory_space<vmem>>, %arg3: memref<1x128xf32, #tpu.memory_space<vmem>>, %arg4: memref<1152x128xbf16, #tpu.memory_space<vmem>>, %arg5: memref<1x128xf32, #tpu.memory_space<vmem>>, %arg6: memref<128x128xf32, #tpu.memory_space<vmem>>, %arg7: memref<1x128xf32, #tpu.memory_space<vmem>>, %arg8: memref<128x128xf32, #tpu.memory_space<vmem>>, %arg9: memref<1x128xf32, #tpu.memory_space<vmem>>, %arg10: memref<1x272x128xf32, #tpu.memory_space<vmem>>, %arg11: memref<320x128xf32, #tpu.memory_space<vmem>>) attributes {dimension_semantics = [#tpu.dimension_semantics<parallel>], iteration_bounds = array<i64: 1>, scalar_prefetch = 0 : i64, scratch_operands = 1 : i64, tpu.core_type = #tpu.core_type<tc>, window_params = [{transform_indices = @transform_0, window_bounds = array<i64: 1, 320, 128>}, {pipeline_mode = #tpu.pipeline_mode<synchronous>, transform_indices = @transform_1, window_bounds = array<i64: 1152, 128>}, {pipeline_mode = #tpu.pipeline_mode<synchronous>, transform_indices = @transform_2, window_bounds = array<i64: 1, 128>}, {pipeline_mode = #tpu.pipeline_mode<synchronous>, transform_indices = @transform_3, window_bounds = array<i64: 1152, 128>}, {pipeline_mode = #tpu.pipeline_mode<synchronous>, transform_indices = @transform_4, window_bounds = array<i64: 1, 128>}, {pipeline_mode = #tpu.pipeline_mode<synchronous>, transform_indices = @transform_5, window_bounds = array<i64: 128, 128>}, {pipeline_mode = #tpu.pipeline_mode<synchronous>, transform_indices = @transform_6, window_bounds = array<i64: 1, 128>}, {pipeline_mode = #tpu.pipeline_mode<synchronous>, transform_indices = @transform_7, window_bounds = array<i64: 128, 128>}, {pipeline_mode = #tpu.pipeline_mode<synchronous>, transform_indices = @transform_8, window_bounds = array<i64: 1, 128>}, {transform_indices = @transform_9, window_bounds = array<i64: 1, 272, 128>}]} {
    %0 = tpu.iota {dimensions = array<i32: 0>} : vector<272x16xi32>
    %1 = tpu.iota {dimensions = array<i32: 1>} : vector<272x16xi32>
    %c17_i32 = arith.constant 17 : i32
    %2 = vector.broadcast %c17_i32 : i32 to vector<272x16xi32>
    %3 = arith.muli %1, %2 : vector<272x16xi32>
    %c16_i32 = arith.constant 16 : i32
    %4 = vector.broadcast %c16_i32 : i32 to vector<272x16xi32>
    %5 = arith.addi %3, %4 : vector<272x16xi32>
    %6 = arith.cmpi eq, %0, %5 : vector<272x16xi32>
    %7 = arith.extui %6 : vector<272x16xi1> to vector<272x16xi32>
    %cst = arith.constant dense<0> : vector<272xi32>
    %8 = vector.multi_reduction <add>, %7, %cst [1] : vector<272x16xi32> to vector<272xi32>
    %9 = vector.shape_cast %8 : vector<272xi32> to vector<272x1xi32>
    %c0_i32 = arith.constant 0 : i32
    %10 = vector.broadcast %c0_i32 : i32 to vector<272x1xi32>
    %11 = arith.cmpi eq, %9, %10 : vector<272x1xi32>
    %cst_0 = arith.constant 0.000000e+00 : f32
    %12 = vector.broadcast %cst_0 : f32 to vector<272x128xf32>
    %c0 = arith.constant 0 : index
    %c6 = arith.constant 6 : index
    %c0_1 = arith.constant 0 : index
    %13 = vector.load %arg1[%c0, %c6, %c0_1] : memref<1x320x128xf32, #tpu.memory_space<vmem>>, vector<1x272x128xf32>
    %14 = vector.shape_cast %13 : vector<1x272x128xf32> to vector<272x128xf32>
    %15 = arith.truncf %14 : vector<272x128xf32> to vector<272x128xbf16>
    %c0_2 = arith.constant 0 : index
    %c7 = arith.constant 7 : index
    %c0_3 = arith.constant 0 : index
    %16 = vector.load %arg1[%c0_2, %c7, %c0_3] : memref<1x320x128xf32, #tpu.memory_space<vmem>>, vector<1x272x128xf32>
    %17 = vector.shape_cast %16 : vector<1x272x128xf32> to vector<272x128xf32>
    %18 = arith.truncf %17 : vector<272x128xf32> to vector<272x128xbf16>
    %c0_4 = arith.constant 0 : index
    %c8 = arith.constant 8 : index
    %c0_5 = arith.constant 0 : index
    %19 = vector.load %arg1[%c0_4, %c8, %c0_5] : memref<1x320x128xf32, #tpu.memory_space<vmem>>, vector<1x272x128xf32>
    %20 = vector.shape_cast %19 : vector<1x272x128xf32> to vector<272x128xf32>
    %21 = arith.truncf %20 : vector<272x128xf32> to vector<272x128xbf16>
    %22 = tpu.concatenate %15, %18, %21 in 1 : vector<272x128xbf16>, vector<272x128xbf16>, vector<272x128xbf16> -> vector<272x384xbf16>
    %c0_6 = arith.constant 0 : index
    %c0_7 = arith.constant 0 : index
    %23 = vector.load %arg2[%c0_6, %c0_7] : memref<1152x128xbf16, #tpu.memory_space<vmem>>, vector<384x128xbf16>
    %cst_8 = arith.constant dense<0.000000e+00> : vector<272x128xf32>
    %24 = tpu.matmul %22, %23, %cst_8 {dimension_numbers = #tpu.dot_dimension_numbers<[1], [0], [0], [1], [0, 0, 1, 1], [], []>} : vector<272x384xbf16>, vector<384x128xbf16>, vector<272x128xf32> -> vector<272x128xf32>
    %25 = arith.addf %12, %24 : vector<272x128xf32>
    %c0_9 = arith.constant 0 : index
    %c23 = arith.constant 23 : index
    %c0_10 = arith.constant 0 : index
    %26 = vector.load %arg1[%c0_9, %c23, %c0_10] : memref<1x320x128xf32, #tpu.memory_space<vmem>>, vector<1x272x128xf32>
    %27 = vector.shape_cast %26 : vector<1x272x128xf32> to vector<272x128xf32>
    %28 = arith.truncf %27 : vector<272x128xf32> to vector<272x128xbf16>
    %c0_11 = arith.constant 0 : index
    %c24 = arith.constant 24 : index
    %c0_12 = arith.constant 0 : index
    %29 = vector.load %arg1[%c0_11, %c24, %c0_12] : memref<1x320x128xf32, #tpu.memory_space<vmem>>, vector<1x272x128xf32>
    %30 = vector.shape_cast %29 : vector<1x272x128xf32> to vector<272x128xf32>
    %31 = arith.truncf %30 : vector<272x128xf32> to vector<272x128xbf16>
    %c0_13 = arith.constant 0 : index
    %c25 = arith.constant 25 : index
    %c0_14 = arith.constant 0 : index
    %32 = vector.load %arg1[%c0_13, %c25, %c0_14] : memref<1x320x128xf32, #tpu.memory_space<vmem>>, vector<1x272x128xf32>
    %33 = vector.shape_cast %32 : vector<1x272x128xf32> to vector<272x128xf32>
    %34 = arith.truncf %33 : vector<272x128xf32> to vector<272x128xbf16>
    %35 = tpu.concatenate %28, %31, %34 in 1 : vector<272x128xbf16>, vector<272x128xbf16>, vector<272x128xbf16> -> vector<272x384xbf16>
    %c384 = arith.constant 384 : index
    %c0_15 = arith.constant 0 : index
    %36 = vector.load %arg2[%c384, %c0_15] : memref<1152x128xbf16, #tpu.memory_space<vmem>>, vector<384x128xbf16>
    %cst_16 = arith.constant dense<0.000000e+00> : vector<272x128xf32>
    %37 = tpu.matmul %35, %36, %cst_16 {dimension_numbers = #tpu.dot_dimension_numbers<[1], [0], [0], [1], [0, 0, 1, 1], [], []>} : vector<272x384xbf16>, vector<384x128xbf16>, vector<272x128xf32> -> vector<272x128xf32>
    %38 = arith.addf %25, %37 : vector<272x128xf32>
    %c0_17 = arith.constant 0 : index
    %c40 = arith.constant 40 : index
    %c0_18 = arith.constant 0 : index
    %39 = vector.load %arg1[%c0_17, %c40, %c0_18] : memref<1x320x128xf32, #tpu.memory_space<vmem>>, vector<1x272x128xf32>
    %40 = vector.shape_cast %39 : vector<1x272x128xf32> to vector<272x128xf32>
    %41 = arith.truncf %40 : vector<272x128xf32> to vector<272x128xbf16>
    %c0_19 = arith.constant 0 : index
    %c41 = arith.constant 41 : index
    %c0_20 = arith.constant 0 : index
    %42 = vector.load %arg1[%c0_19, %c41, %c0_20] : memref<1x320x128xf32, #tpu.memory_space<vmem>>, vector<1x272x128xf32>
    %43 = vector.shape_cast %42 : vector<1x272x128xf32> to vector<272x128xf32>
    %44 = arith.truncf %43 : vector<272x128xf32> to vector<272x128xbf16>
    %c0_21 = arith.constant 0 : index
    %c42 = arith.constant 42 : index
    %c0_22 = arith.constant 0 : index
    %45 = vector.load %arg1[%c0_21, %c42, %c0_22] : memref<1x320x128xf32, #tpu.memory_space<vmem>>, vector<1x272x128xf32>
    %46 = vector.shape_cast %45 : vector<1x272x128xf32> to vector<272x128xf32>
    %47 = arith.truncf %46 : vector<272x128xf32> to vector<272x128xbf16>
    %48 = tpu.concatenate %41, %44, %47 in 1 : vector<272x128xbf16>, vector<272x128xbf16>, vector<272x128xbf16> -> vector<272x384xbf16>
    %c768 = arith.constant 768 : index
    %c0_23 = arith.constant 0 : index
    %49 = vector.load %arg2[%c768, %c0_23] : memref<1152x128xbf16, #tpu.memory_space<vmem>>, vector<384x128xbf16>
    %cst_24 = arith.constant dense<0.000000e+00> : vector<272x128xf32>
    %50 = tpu.matmul %48, %49, %cst_24 {dimension_numbers = #tpu.dot_dimension_numbers<[1], [0], [0], [1], [0, 0, 1, 1], [], []>} : vector<272x384xbf16>, vector<384x128xbf16>, vector<272x128xf32> -> vector<272x128xf32>
    %51 = arith.addf %38, %50 : vector<272x128xf32>
    %c0_25 = arith.constant 0 : index
    %c0_26 = arith.constant 0 : index
    %52 = vector.load %arg3[%c0_25, %c0_26] : memref<1x128xf32, #tpu.memory_space<vmem>>, vector<1x128xf32>
    %53 = vector.broadcast %52 : vector<1x128xf32> to vector<272x128xf32>
    %54 = arith.addf %51, %53 : vector<272x128xf32>
    %cst_27 = arith.constant 0.000000e+00 : f32
    %55 = vector.broadcast %cst_27 : f32 to vector<272x128xf32>
    %56 = arith.maximumf %54, %55 : vector<272x128xf32>
    %cst_28 = arith.constant 0.000000e+00 : f32
    %57 = vector.shape_cast %11 : vector<272x1xi1> to vector<272x1xi1>
    %58 = vector.broadcast %57 : vector<272x1xi1> to vector<272x128xi1>
    %59 = vector.broadcast %cst_28 : f32 to vector<272x128xf32>
    %60 = arith.select %58, %56, %59 : vector<272x128xi1>, vector<272x128xf32>
    %cst_29 = arith.constant 0.000000e+00 : f32
    %61 = vector.broadcast %cst_29 : f32 to vector<24x128xf32>
    %c0_30 = arith.constant 0 : index
    %c0_31 = arith.constant 0 : index
    %62 = vector.load %arg11[%c0_30, %c0_31] : memref<320x128xf32, #tpu.memory_space<vmem>>, vector<24x128xf32>
    tpu.vector_store %arg11[%c0_30, %c0_31], %61 {strides = array<i32>} : memref<320x128xf32, #tpu.memory_space<vmem>>, vector<24x128xf32>,
    %cst_32 = arith.constant 0.000000e+00 : f32
    %63 = vector.broadcast %cst_32 : f32 to vector<24x128xf32>
    %c296 = arith.constant 296 : index
    %c0_33 = arith.constant 0 : index
    %64 = vector.load %arg11[%c296, %c0_33] : memref<320x128xf32, #tpu.memory_space<vmem>>, vector<24x128xf32>
    tpu.vector_store %arg11[%c296, %c0_33], %63 {strides = array<i32>} : memref<320x128xf32, #tpu.memory_space<vmem>>, vector<24x128xf32>,
    %c24_34 = arith.constant 24 : index
    %c0_35 = arith.constant 0 : index
    %65 = vector.load %arg11[%c24_34, %c0_35] : memref<320x128xf32, #tpu.memory_space<vmem>>, vector<272x128xf32>
    tpu.vector_store %arg11[%c24_34, %c0_35], %60 {strides = array<i32>} : memref<320x128xf32, #tpu.memory_space<vmem>>, vector<272x128xf32>,
    %cst_36 = arith.constant 0.000000e+00 : f32
    %66 = vector.broadcast %cst_36 : f32 to vector<272x128xf32>
    %c6_37 = arith.constant 6 : index
    %c0_38 = arith.constant 0 : index
    %67 = vector.load %arg11[%c6_37, %c0_38] : memref<320x128xf32, #tpu.memory_space<vmem>>, vector<272x128xf32>
    %68 = arith.truncf %67 : vector<272x128xf32> to vector<272x128xbf16>
    %c7_39 = arith.constant 7 : index
    %c0_40 = arith.constant 0 : index
    %69 = vector.load %arg11[%c7_39, %c0_40] : memref<320x128xf32, #tpu.memory_space<vmem>>, vector<272x128xf32>
    %70 = arith.truncf %69 : vector<272x128xf32> to vector<272x128xbf16>
    %c8_41 = arith.constant 8 : index
    %c0_42 = arith.constant 0 : index
    %71 = vector.load %arg11[%c8_41, %c0_42] : memref<320x128xf32, #tpu.memory_space<vmem>>, vector<272x128xf32>
    %72 = arith.truncf %71 : vector<272x128xf32> to vector<272x128xbf16>
    %73 = tpu.concatenate %68, %70, %72 in 1 : vector<272x128xbf16>, vector<272x128xbf16>, vector<272x128xbf16> -> vector<272x384xbf16>
    %c0_43 = arith.constant 0 : index
    %c0_44 = arith.constant 0 : index
    %74 = vector.load %arg4[%c0_43, %c0_44] : memref<1152x128xbf16, #tpu.memory_space<vmem>>, vector<384x128xbf16>
    %cst_45 = arith.constant dense<0.000000e+00> : vector<272x128xf32>
    %75 = tpu.matmul %73, %74, %cst_45 {dimension_numbers = #tpu.dot_dimension_numbers<[1], [0], [0], [1], [0, 0, 1, 1], [], []>} : vector<272x384xbf16>, vector<384x128xbf16>, vector<272x128xf32> -> vector<272x128xf32>
    %76 = arith.addf %66, %75 : vector<272x128xf32>
    %c23_46 = arith.constant 23 : index
    %c0_47 = arith.constant 0 : index
    %77 = vector.load %arg11[%c23_46, %c0_47] : memref<320x128xf32, #tpu.memory_space<vmem>>, vector<272x128xf32>
    %78 = arith.truncf %77 : vector<272x128xf32> to vector<272x128xbf16>
    %c24_48 = arith.constant 24 : index
    %c0_49 = arith.constant 0 : index
    %79 = vector.load %arg11[%c24_48, %c0_49] : memref<320x128xf32, #tpu.memory_space<vmem>>, vector<272x128xf32>
    %80 = arith.truncf %79 : vector<272x128xf32> to vector<272x128xbf16>
    %c25_50 = arith.constant 25 : index
    %c0_51 = arith.constant 0 : index
    %81 = vector.load %arg11[%c25_50, %c0_51] : memref<320x128xf32, #tpu.memory_space<vmem>>, vector<272x128xf32>
    %82 = arith.truncf %81 : vector<272x128xf32> to vector<272x128xbf16>
    %83 = tpu.concatenate %78, %80, %82 in 1 : vector<272x128xbf16>, vector<272x128xbf16>, vector<272x128xbf16> -> vector<272x384xbf16>
    %c384_52 = arith.constant 384 : index
    %c0_53 = arith.constant 0 : index
    %84 = vector.load %arg4[%c384_52, %c0_53] : memref<1152x128xbf16, #tpu.memory_space<vmem>>, vector<384x128xbf16>
    %cst_54 = arith.constant dense<0.000000e+00> : vector<272x128xf32>
    %85 = tpu.matmul %83, %84, %cst_54 {dimension_numbers = #tpu.dot_dimension_numbers<[1], [0], [0], [1], [0, 0, 1, 1], [], []>} : vector<272x384xbf16>, vector<384x128xbf16>, vector<272x128xf32> -> vector<272x128xf32>
    %86 = arith.addf %76, %85 : vector<272x128xf32>
    %c40_55 = arith.constant 40 : index
    %c0_56 = arith.constant 0 : index
    %87 = vector.load %arg11[%c40_55, %c0_56] : memref<320x128xf32, #tpu.memory_space<vmem>>, vector<272x128xf32>
    %88 = arith.truncf %87 : vector<272x128xf32> to vector<272x128xbf16>
    %c41_57 = arith.constant 41 : index
    %c0_58 = arith.constant 0 : index
    %89 = vector.load %arg11[%c41_57, %c0_58] : memref<320x128xf32, #tpu.memory_space<vmem>>, vector<272x128xf32>
    %90 = arith.truncf %89 : vector<272x128xf32> to vector<272x128xbf16>
    %c42_59 = arith.constant 42 : index
    %c0_60 = arith.constant 0 : index
    %91 = vector.load %arg11[%c42_59, %c0_60] : memref<320x128xf32, #tpu.memory_space<vmem>>, vector<272x128xf32>
    %92 = arith.truncf %91 : vector<272x128xf32> to vector<272x128xbf16>
    %93 = tpu.concatenate %88, %90, %92 in 1 : vector<272x128xbf16>, vector<272x128xbf16>, vector<272x128xbf16> -> vector<272x384xbf16>
    %c768_61 = arith.constant 768 : index
    %c0_62 = arith.constant 0 : index
    %94 = vector.load %arg4[%c768_61, %c0_62] : memref<1152x128xbf16, #tpu.memory_space<vmem>>, vector<384x128xbf16>
    %cst_63 = arith.constant dense<0.000000e+00> : vector<272x128xf32>
    %95 = tpu.matmul %93, %94, %cst_63 {dimension_numbers = #tpu.dot_dimension_numbers<[1], [0], [0], [1], [0, 0, 1, 1], [], []>} : vector<272x384xbf16>, vector<384x128xbf16>, vector<272x128xf32> -> vector<272x128xf32>
    %96 = arith.addf %86, %95 : vector<272x128xf32>
    %c0_64 = arith.constant 0 : index
    %c0_65 = arith.constant 0 : index
    %97 = vector.load %arg5[%c0_64, %c0_65] : memref<1x128xf32, #tpu.memory_space<vmem>>, vector<1x128xf32>
    %98 = vector.broadcast %97 : vector<1x128xf32> to vector<272x128xf32>
    %99 = arith.addf %96, %98 : vector<272x128xf32>
    %cst_66 = arith.constant 0.000000e+00 : f32
    %100 = vector.shape_cast %11 : vector<272x1xi1> to vector<272x1xi1>
    %101 = vector.broadcast %100 : vector<272x1xi1> to vector<272x128xi1>
    %102 = vector.broadcast %cst_66 : f32 to vector<272x128xf32>
    %103 = arith.select %101, %99, %102 : vector<272x128xi1>, vector<272x128xf32>
    %cst_67 = arith.constant dense<0.000000e+00> : vector<128xf32>
    %104 = vector.multi_reduction <add>, %103, %cst_67 [0] : vector<272x128xf32> to vector<128xf32>
    %105 = vector.shape_cast %104 : vector<128xf32> to vector<1x128xf32>
    %cst_68 = arith.constant 3.906250e-03 : f32
    %106 = vector.broadcast %cst_68 : f32 to vector<1x128xf32>
    %107 = arith.mulf %105, %106 : vector<1x128xf32>
    %c0_69 = arith.constant 0 : index
    %c0_70 = arith.constant 0 : index
    %108 = vector.load %arg6[%c0_69, %c0_70] : memref<128x128xf32, #tpu.memory_space<vmem>>, vector<128x128xf32>
    %cst_71 = arith.constant dense<0.000000e+00> : vector<1x128xf32>
    %109 = tpu.matmul %107, %108, %cst_71 {dimension_numbers = #tpu.dot_dimension_numbers<[1], [0], [0], [1], [0, 0, 1, 1], [], []>} : vector<1x128xf32>, vector<128x128xf32>, vector<1x128xf32> -> vector<1x128xf32>
    %c0_72 = arith.constant 0 : index
    %c0_73 = arith.constant 0 : index
    %110 = vector.load %arg7[%c0_72, %c0_73] : memref<1x128xf32, #tpu.memory_space<vmem>>, vector<1x128xf32>
    %111 = arith.addf %109, %110 : vector<1x128xf32>
    %cst_74 = arith.constant 0.000000e+00 : f32
    %112 = vector.broadcast %cst_74 : f32 to vector<1x128xf32>
    %113 = arith.maximumf %111, %112 : vector<1x128xf32>
    %c0_75 = arith.constant 0 : index
    %c0_76 = arith.constant 0 : index
    %114 = vector.load %arg8[%c0_75, %c0_76] : memref<128x128xf32, #tpu.memory_space<vmem>>, vector<128x128xf32>
    %cst_77 = arith.constant dense<0.000000e+00> : vector<1x128xf32>
    %115 = tpu.matmul %113, %114, %cst_77 {dimension_numbers = #tpu.dot_dimension_numbers<[1], [0], [0], [1], [0, 0, 1, 1], [], []>} : vector<1x128xf32>, vector<128x128xf32>, vector<1x128xf32> -> vector<1x128xf32>
    %c0_78 = arith.constant 0 : index
    %c0_79 = arith.constant 0 : index
    %116 = vector.load %arg9[%c0_78, %c0_79] : memref<1x128xf32, #tpu.memory_space<vmem>>, vector<1x128xf32>
    %117 = arith.addf %115, %116 : vector<1x128xf32>
    %118 = arith.negf %117 : vector<1x128xf32>
    %119 = math.exp %118 : vector<1x128xf32>
    %cst_80 = arith.constant 1.000000e+00 : f32
    %120 = vector.broadcast %cst_80 : f32 to vector<1x128xf32>
    %121 = arith.addf %120, %119 : vector<1x128xf32>
    %122 = arith.divf %120, %121 : vector<1x128xf32>
    %c0_81 = arith.constant 0 : index
    %c24_82 = arith.constant 24 : index
    %c0_83 = arith.constant 0 : index
    %123 = vector.load %arg1[%c0_81, %c24_82, %c0_83] : memref<1x320x128xf32, #tpu.memory_space<vmem>>, vector<1x272x128xf32>
    %124 = vector.shape_cast %123 : vector<1x272x128xf32> to vector<272x128xf32>
    %125 = vector.broadcast %122 : vector<1x128xf32> to vector<272x128xf32>
    %126 = arith.mulf %103, %125 : vector<272x128xf32>
    %127 = arith.addf %126, %124 : vector<272x128xf32>
    %c0_84 = arith.constant 0 : index
    %c0_85 = arith.constant 0 : index
    %c0_86 = arith.constant 0 : index
    %128 = vector.load %arg10[%c0_84, %c0_85, %c0_86] : memref<1x272x128xf32, #tpu.memory_space<vmem>>, vector<1x272x128xf32>
    %129 = vector.shape_cast %128 : vector<1x272x128xf32> to vector<272x128xf32>
    %130 = vector.shape_cast %127 : vector<272x128xf32> to vector<1x272x128xf32>
    tpu.vector_store %arg10[%c0_84, %c0_85, %c0_86], %130 {strides = array<i32>} : memref<1x272x128xf32, #tpu.memory_space<vmem>>, vector<1x272x128xf32>,
    return
  }
  func.func @transform_0(%arg0: i32) -> (i32, i32, i32) {
    %c0_i32 = arith.constant 0 : i32
    %c0_i32_0 = arith.constant 0 : i32
    %c0_i32_1 = arith.constant 0 : i32
    return %arg0, %c0_i32, %c0_i32_0 : i32, i32, i32
  }
  func.func @transform_1(%arg0: i32) -> (i32, i32) {
    %c0_i32 = arith.constant 0 : i32
    %c0_i32_0 = arith.constant 0 : i32
    %c0_i32_1 = arith.constant 0 : i32
    return %c0_i32, %c0_i32_0 : i32, i32
  }
  func.func @transform_2(%arg0: i32) -> (i32, i32) {
    %c0_i32 = arith.constant 0 : i32
    %c0_i32_0 = arith.constant 0 : i32
    %c0_i32_1 = arith.constant 0 : i32
    return %c0_i32, %c0_i32_0 : i32, i32
  }
  func.func @transform_3(%arg0: i32) -> (i32, i32) {
    %c0_i32 = arith.constant 0 : i32
    %c0_i32_0 = arith.constant 0 : i32
    %c0_i32_1 = arith.constant 0 : i32
    return %c0_i32, %c0_i32_0 : i32, i32
  }
  func.func @transform_4(%arg0: i32) -> (i32, i32) {
    %c0_i32 = arith.constant 0 : i32
    %c0_i32_0 = arith.constant 0 : i32
    %c0_i32_1 = arith.constant 0 : i32
    return %c0_i32, %c0_i32_0 : i32, i32
  }
  func.func @transform_5(%arg0: i32) -> (i32, i32) {
    %c0_i32 = arith.constant 0 : i32
    %c0_i32_0 = arith.constant 0 : i32
    %c0_i32_1 = arith.constant 0 : i32
    return %c0_i32, %c0_i32_0 : i32, i32
  }
  func.func @transform_6(%arg0: i32) -> (i32, i32) {
    %c0_i32 = arith.constant 0 : i32
    %c0_i32_0 = arith.constant 0 : i32
    %c0_i32_1 = arith.constant 0 : i32
    return %c0_i32, %c0_i32_0 : i32, i32
  }
  func.func @transform_7(%arg0: i32) -> (i32, i32) {
    %c0_i32 = arith.constant 0 : i32
    %c0_i32_0 = arith.constant 0 : i32
    %c0_i32_1 = arith.constant 0 : i32
    return %c0_i32, %c0_i32_0 : i32, i32
  }
  func.func @transform_8(%arg0: i32) -> (i32, i32) {
    %c0_i32 = arith.constant 0 : i32
    %c0_i32_0 = arith.constant 0 : i32
    %c0_i32_1 = arith.constant 0 : i32
    return %c0_i32, %c0_i32_0 : i32, i32
  }
  func.func @transform_9(%arg0: i32) -> (i32, i32, i32) {
    %c0_i32 = arith.constant 0 : i32
    %c0_i32_0 = arith.constant 0 : i32
    %c0_i32_1 = arith.constant 0 : i32
    return %arg0, %c0_i32, %c0_i32_0 : i32, i32, i32
  }
}

</mosaic_0001>

<llo_original>
// kernel: tpu_custom_call.1
$region0: #{tpu_custom_call.1}
  #allocation0 [shape = 'u32[]', space=smem, size = 0x4, offset = 0x4, fixed_abs, tag = 'smem constant byte address 0x4 - core index']
  #allocation1 [shape = 'u32[144,128]{1,0:T(1,128)}', space=vmem, size = 0x12000, scoped, tag = 'internal scratch']
  #allocation2 [shape = 'f32[320,128]{1,0:T(8,128)}', space=vmem, size = 0x28000, scoped, tag = 'scratch operand']
  %s0 = inlined_call_operand.hbm [shape: f32[1,320,128], index: 0, kind: input, shape index: {}]
  %s1 = inlined_call_operand.hbm [shape: bf16[1152,128], index: 1, kind: input, shape index: {}]
  %s2 = inlined_call_operand.vmem [shape: f32[1,128], index: 2, kind: input, shape index: {}]
  %s3 = inlined_call_operand.hbm [shape: bf16[1152,128], index: 3, kind: input, shape index: {}]
  %s4 = inlined_call_operand.vmem [shape: f32[1,128], index: 4, kind: input, shape index: {}]
  %s5 = inlined_call_operand.hbm [shape: f32[128,128], index: 5, kind: input, shape index: {}]
  %s6 = inlined_call_operand.vmem [shape: f32[1,128], index: 6, kind: input, shape index: {}]
  %s7 = inlined_call_operand.hbm [shape: f32[128,128], index: 7, kind: input, shape index: {}]
  %s8 = inlined_call_operand.vmem [shape: f32[1,128], index: 8, kind: input, shape index: {}]
  %s9 = inlined_call_operand.hbm [shape: f32[1,272,128], index: 9, kind: output, shape index: {}]
  %s10 = sld [smem:[#allocation0]]
  $region66: #{tpu_custom_call.1} parent=0
    _
  %s12 = ssub.s32 1, %s10
  %s13 = scalar_select 0, %s12, %s10
  $region1: #{tpu_custom_call.1} parent=0
    #allocation3 [shape = 'u8[163840]{0}', space=vmem, size = 0x28000, scoped, tag = 'input window, operand 0, single buffered']
    #allocation4 [shape = 's32[1]{0}', space=sflag, size = 0x4, scoped, tag = 'scoped memory for tpu_custom_call.1']
    #allocation5 [shape = 's32[1]{0}', space=sflag, size = 0x4, scoped, tag = 'scoped memory for tpu_custom_call.1']
    #allocation6 [shape = 'u8[294912]{0}', space=vmem, size = 0x48000, scoped, tag = 'input window, operand 1, single buffered']
    #allocation7 [shape = 's32[1]{0}', space=sflag, size = 0x4, scoped, tag = 'scoped memory for tpu_custom_call.1']
    #allocation8 [shape = 'u8[294912]{0}', space=vmem, size = 0x48000, scoped, tag = 'input window, operand 3, single buffered']
    #allocation9 [shape = 'u8[65536]{0}', space=vmem, size = 0x10000, scoped, tag = 'input window, operand 5, single buffered']
    #allocation10 [shape = 's32[1]{0}', space=sflag, size = 0x4, scoped, tag = 'scoped memory for tpu_custom_call.1']
    #allocation11 [shape = 'u8[65536]{0}', space=vmem, size = 0x10000, scoped, tag = 'input window, operand 7, single buffered']
    #allocation12 [shape = 'u8[139264]{0}', space=vmem, size = 0x22000, scoped, tag = 'output window, operand 0, single buffered']
    %14 = vsyncpa [#allocation4], 0
    %15 = vsyncpa [#allocation7], 0
    %16 = vsyncpa [#allocation10], 0
    %17 = vsyncpa [#allocation5], 0
    // Predicated region
    $region2: #{tpu_custom_call.1} parent=1 // pred_check
      _
    $region3: #{tpu_custom_call.1} parent=1 // pred_check_branch
      %19 = sbr.rel (0) target = $region5
    $region4: #{tpu_custom_call.1} parent=1 // pred_region
      %s21 = ssub.s32 5120, 5120
      %22 = vsyncadd [#allocation4], %s21
      %s23 = sshll.u32 [#allocation3], 4
      %s24 = int_to_ptr.vmem [resolvable:$true] %s23
      %29 = dma.hbm_to_vmem [thread:$0]  %s0, 5120, %s24, [#allocation4], 128, 128, 8
    $region5: #{tpu_custom_call.1} parent=1 // pred_fallthru
      _
    // Predicated region
    $region6: #{tpu_custom_call.1} parent=1 // pred_check
      _
    $region7: #{tpu_custom_call.1} parent=1 // pred_check_branch
      %31 = sbr.rel (0) target = $region9
    $region8: #{tpu_custom_call.1} parent=1 // pred_region
      %s33 = ssub.s32 9216, 9216
      %34 = vsyncadd [#allocation7], %s33
      %s35 = sshll.u32 [#allocation6], 4
      %s36 = int_to_ptr.vmem [resolvable:$true] %s35
      %41 = dma.hbm_to_vmem [thread:$0]  %s1, 9216, %s36, [#allocation7], 64, 64, 4
    $region9: #{tpu_custom_call.1} parent=1 // pred_fallthru
      _
    // Predicated region
    $region10: #{tpu_custom_call.1} parent=1 // pred_check
      _
    $region11: #{tpu_custom_call.1} parent=1 // pred_check_branch
      %43 = sbr.rel (0) target = $region13
    $region12: #{tpu_custom_call.1} parent=1 // pred_region
      _
    $region13: #{tpu_custom_call.1} parent=1 // pred_fallthru
      _
    // Predicated region
    $region14: #{tpu_custom_call.1} parent=1 // pred_check
      _
    $region15: #{tpu_custom_call.1} parent=1 // pred_check_branch
      %45 = sbr.rel (0) target = $region17
    $region16: #{tpu_custom_call.1} parent=1 // pred_region
      %s47 = ssub.s32 9216, 9216
      %48 = vsyncadd [#allocation7], %s47
      %s49 = sshll.u32 [#allocation8], 4
      %s50 = int_to_ptr.vmem [resolvable:$true] %s49
      %55 = dma.hbm_to_vmem [thread:$0]  %s3, 9216, %s50, [#allocation7], 64, 64, 4
    $region17: #{tpu_custom_call.1} parent=1 // pred_fallthru
      _
    // Predicated region
    $region18: #{tpu_custom_call.1} parent=1 // pred_check
      _
    $region19: #{tpu_custom_call.1} parent=1 // pred_check_branch
      %57 = sbr.rel (0) target = $region21
    $region20: #{tpu_custom_call.1} parent=1 // pred_region
      _
    $region21: #{tpu_custom_call.1} parent=1 // pred_fallthru
      _
    // Predicated region
    $region22: #{tpu_custom_call.1} parent=1 // pred_check
      _
    $region23: #{tpu_custom_call.1} parent=1 // pred_check_branch
      %59 = sbr.rel (0) target = $region25
    $region24: #{tpu_custom_call.1} parent=1 // pred_region
      %s61 = ssub.s32 2048, 2048
      %62 = vsyncadd [#allocation10], %s61
      %s63 = sshll.u32 [#allocation9], 4
      %s64 = int_to_ptr.vmem [resolvable:$true] %s63
      %69 = dma.hbm_to_vmem [thread:$0]  %s5, 2048, %s64, [#allocation10], 128, 128, 8
    $region25: #{tpu_custom_call.1} parent=1 // pred_fallthru
      _
    // Predicated region
    $region26: #{tpu_custom_call.1} parent=1 // pred_check
      _
    $region27: #{tpu_custom_call.1} parent=1 // pred_check_branch
      %71 = sbr.rel (0) target = $region29
    $region28: #{tpu_custom_call.1} parent=1 // pred_region
      _
    $region29: #{tpu_custom_call.1} parent=1 // pred_fallthru
      _
    // Predicated region
    $region30: #{tpu_custom_call.1} parent=1 // pred_check
      _
    $region31: #{tpu_custom_call.1} parent=1 // pred_check_branch
      %73 = sbr.rel (0) target = $region33
    $region32: #{tpu_custom_call.1} parent=1 // pred_region
      %s75 = ssub.s32 2048, 2048
      %76 = vsyncadd [#allocation10], %s75
      %s77 = sshll.u32 [#allocation11], 4
      %s78 = int_to_ptr.vmem [resolvable:$true] %s77
      %83 = dma.hbm_to_vmem [thread:$0]  %s7, 2048, %s78, [#allocation10], 128, 128, 8
    $region33: #{tpu_custom_call.1} parent=1 // pred_fallthru
      _
    // Predicated region
    $region34: #{tpu_custom_call.1} parent=1 // pred_check
      _
    $region35: #{tpu_custom_call.1} parent=1 // pred_check_branch
      %85 = sbr.rel (0) target = $region37
    $region36: #{tpu_custom_call.1} parent=1 // pred_region
      _
    $region37: #{tpu_custom_call.1} parent=1 // pred_fallthru
      _
    // Predicated region
    $region38: #{tpu_custom_call.1} parent=1 // pred_check
      _
    $region39: #{tpu_custom_call.1} parent=1 // pred_check_branch
      %87 = sbr.rel (0) target = $region41
    $region40: #{tpu_custom_call.1} parent=1 // pred_region
      %88 = dma.done [#allocation4], 5120
    $region41: #{tpu_custom_call.1} parent=1 // pred_fallthru
      _
    // Predicated region
    $region42: #{tpu_custom_call.1} parent=1 // pred_check
      _
    $region43: #{tpu_custom_call.1} parent=1 // pred_check_branch
      %90 = sbr.rel (0) target = $region45
    $region44: #{tpu_custom_call.1} parent=1 // pred_region
      %91 = dma.done [#allocation7], 9216
    $region45: #{tpu_custom_call.1} parent=1 // pred_fallthru
      _
    // Predicated region
    $region46: #{tpu_custom_call.1} parent=1 // pred_check
      _
    $region47: #{tpu_custom_call.1} parent=1 // pred_check_branch
      %93 = sbr.rel (0) target = $region49
    $region48: #{tpu_custom_call.1} parent=1 // pred_region
      %94 = dma.done [#allocation7], 9216
    $region49: #{tpu_custom_call.1} parent=1 // pred_fallthru
      _
    // Predicated region
    $region50: #{tpu_custom_call.1} parent=1 // pred_check
      _
    $region51: #{tpu_custom_call.1} parent=1 // pred_check_branch
      %96 = sbr.rel (0) target = $region53
    $region52: #{tpu_custom_call.1} parent=1 // pred_region
      %97 = dma.done [#allocation10], 2048
    $region53: #{tpu_custom_call.1} parent=1 // pred_fallthru
      _
    // Predicated region
    $region54: #{tpu_custom_call.1} parent=1 // pred_check
      _
    $region55: #{tpu_custom_call.1} parent=1 // pred_check_branch
      %99 = sbr.rel (0) target = $region57
    $region56: #{tpu_custom_call.1} parent=1 // pred_region
      %100 = dma.done [#allocation10], 2048
    $region57: #{tpu_custom_call.1} parent=1 // pred_fallthru
      _
    %v102 = vlaneseq
    %v103 = vshrl.u32 %v102, 7
    %v104 = vadd.s32 %v103, 8
    %v105 = vadd.s32 %v103, 16
    %v106 = vadd.s32 %v103, 24
    %v107 = vadd.s32 %v103, 32
    %v108 = vadd.s32 %v103, 40
    %v109 = vadd.s32 %v103, 48
    %v110 = vadd.s32 %v103, 56
    %v111 = vadd.s32 %v103, 64
    %v112 = vadd.s32 %v103, 72
    %v113 = vadd.s32 %v103, 80
    %v114 = vadd.s32 %v103, 88
    %v115 = vadd.s32 %v103, 96
    %v116 = vadd.s32 %v103, 104
    %v117 = vadd.s32 %v103, 112
    %v118 = vadd.s32 %v103, 120
    %v119 = vadd.s32 %v103, 128
    %v120 = vadd.s32 %v103, 136
    %v121 = vadd.s32 %v103, 144
    %v122 = vadd.s32 %v103, 152
    %v123 = vadd.s32 %v103, 160
    %v124 = vadd.s32 %v103, 168
    %v125 = vadd.s32 %v103, 176
    %v126 = vadd.s32 %v103, 184
    %v127 = vadd.s32 %v103, 192
    %v128 = vadd.s32 %v103, 200
    %v129 = vadd.s32 %v103, 208
    %v130 = vadd.s32 %v103, 216
    %v131 = vadd.s32 %v103, 224
    %v132 = vadd.s32 %v103, 232
    %v133 = vadd.s32 %v103, 240
    %v134 = vadd.s32 %v103, 248
    %v135 = vadd.s32 %v103, 256
    %v136 = vadd.s32 %v103, 264
    %v137 = vlaneseq
    %v138 = vand.u32 %v137, 127
    %v139 = vmul.u32 %v138, 17
    %v140 = vadd.s32 %v139, 16
    %vm141 = vcmp.eq.s32.totalorder %v103, %v140
    %vm142 = vcmp.eq.s32.totalorder %v104, %v140
    %vm143 = vcmp.eq.s32.totalorder %v105, %v140
    %vm144 = vcmp.eq.s32.totalorder %v106, %v140
    %vm145 = vcmp.eq.s32.totalorder %v107, %v140
    %vm146 = vcmp.eq.s32.totalorder %v108, %v140
    %vm147 = vcmp.eq.s32.totalorder %v109, %v140
    %vm148 = vcmp.eq.s32.totalorder %v110, %v140
    %vm149 = vcmp.eq.s32.totalorder %v111, %v140
    %vm150 = vcmp.eq.s32.totalorder %v112, %v140
    %vm151 = vcmp.eq.s32.totalorder %v113, %v140
    %vm152 = vcmp.eq.s32.totalorder %v114, %v140
    %vm153 = vcmp.eq.s32.totalorder %v115, %v140
    %vm154 = vcmp.eq.s32.totalorder %v116, %v140
    %vm155 = vcmp.eq.s32.totalorder %v117, %v140
    %vm156 = vcmp.eq.s32.totalorder %v118, %v140
    %vm157 = vcmp.eq.s32.totalorder %v119, %v140
    %vm158 = vcmp.eq.s32.totalorder %v120, %v140
    %vm159 = vcmp.eq.s32.totalorder %v121, %v140
    %vm160 = vcmp.eq.s32.totalorder %v122, %v140
    %vm161 = vcmp.eq.s32.totalorder %v123, %v140
    %vm162 = vcmp.eq.s32.totalorder %v124, %v140
    %vm163 = vcmp.eq.s32.totalorder %v125, %v140
    %vm164 = vcmp.eq.s32.totalorder %v126, %v140
    %vm165 = vcmp.eq.s32.totalorder %v127, %v140
    %vm166 = vcmp.eq.s32.totalorder %v128, %v140
    %vm167 = vcmp.eq.s32.totalorder %v129, %v140
    %vm168 = vcmp.eq.s32.totalorder %v130, %v140
    %vm169 = vcmp.eq.s32.totalorder %v131, %v140
    %vm170 = vcmp.eq.s32.totalorder %v132, %v140
    %vm171 = vcmp.eq.s32.totalorder %v133, %v140
    %vm172 = vcmp.eq.s32.totalorder %v134, %v140
    %vm173 = vcmp.eq.s32.totalorder %v135, %v140
    %vm174 = vcmp.eq.s32.totalorder %v136, %v140
    %v175 = vsel %vm141, 1, 0
    %v176 = vsel %vm142, 1, 0
    %v177 = vsel %vm143, 1, 0
    %v178 = vsel %vm144, 1, 0
    %v179 = vsel %vm145, 1, 0
    %v180 = vsel %vm146, 1, 0
    %v181 = vsel %vm147, 1, 0
    %v182 = vsel %vm148, 1, 0
    %v183 = vsel %vm149, 1, 0
    %v184 = vsel %vm150, 1, 0
    %v185 = vsel %vm151, 1, 0
    %v186 = vsel %vm152, 1, 0
    %v187 = vsel %vm153, 1, 0
    %v188 = vsel %vm154, 1, 0
    %v189 = vsel %vm155, 1, 0
    %v190 = vsel %vm156, 1, 0
    %v191 = vsel %vm157, 1, 0
    %v192 = vsel %vm158, 1, 0
    %v193 = vsel %vm159, 1, 0
    %v194 = vsel %vm160, 1, 0
    %v195 = vsel %vm161, 1, 0
    %v196 = vsel %vm162, 1, 0
    %v197 = vsel %vm163, 1, 0
    %v198 = vsel %vm164, 1, 0
    %v199 = vsel %vm165, 1, 0
    %v200 = vsel %vm166, 1, 0
    %v201 = vsel %vm167, 1, 0
    %v202 = vsel %vm168, 1, 0
    %v203 = vsel %vm169, 1, 0
    %v204 = vsel %vm170, 1, 0
    %v205 = vsel %vm171, 1, 0
    %v206 = vsel %vm172, 1, 0
    %v207 = vsel %vm173, 1, 0
    %v208 = vsel %vm174, 1, 0
    %vm209 = vcmask 130048
    %v210 = vsel %vm209, %v175, 0
    %v211 = vand.u32 %v210, 65535
    %v212 = vshrl.u32 %v210, 16
    %v213 = vcvt.s32.f32 %v211
    %v214 = vcvt.s32.f32 %v212
    %215 = vadd.xlane.f32.xlu0 %v213
    %v216 = vpop.xlane.xlu0 %215
    %217 = vadd.xlane.f32.xlu0 %v214
    %v218 = vpop.xlane.xlu0 %217
    %v219 = vcvt.f32.s32 %v216
    %v220 = vcvt.f32.s32 %v218
    %v221 = vshll.u32 %v220, 16
    %v222 = vadd.s32 %v221, %v219
    %v223 = vsel %vm209, %v176, 0
    %v224 = vand.u32 %v223, 65535
    %v225 = vshrl.u32 %v223, 16
    %v226 = vcvt.s32.f32 %v224
    %v227 = vcvt.s32.f32 %v225
    %228 = vadd.xlane.f32.xlu0 %v226
    %v229 = vpop.xlane.xlu0 %228
    %230 = vadd.xlane.f32.xlu0 %v227
    %v231 = vpop.xlane.xlu0 %230
    %v232 = vcvt.f32.s32 %v229
    %v233 = vcvt.f32.s32 %v231
    %v234 = vshll.u32 %v233, 16
    %v235 = vadd.s32 %v234, %v232
    %v236 = vsel %vm209, %v177, 0
    %v237 = vand.u32 %v236, 65535
    %v238 = vshrl.u32 %v236, 16
    %v239 = vcvt.s32.f32 %v237
    %v240 = vcvt.s32.f32 %v238
    %241 = vadd.xlane.f32.xlu0 %v239
    %v242 = vpop.xlane.xlu0 %241
    %243 = vadd.xlane.f32.xlu0 %v240
    %v244 = vpop.xlane.xlu0 %243
    %v245 = vcvt.f32.s32 %v242
    %v246 = vcvt.f32.s32 %v244
    %v247 = vshll.u32 %v246, 16
    %v248 = vadd.s32 %v247, %v245
    %v249 = vsel %vm209, %v178, 0
    %v250 = vand.u32 %v249, 65535
    %v251 = vshrl.u32 %v249, 16
    %v252 = vcvt.s32.f32 %v250
    %v253 = vcvt.s32.f32 %v251
    %254 = vadd.xlane.f32.xlu0 %v252
    %v255 = vpop.xlane.xlu0 %254
    %256 = vadd.xlane.f32.xlu0 %v253
    %v257 = vpop.xlane.xlu0 %256
    %v258 = vcvt.f32.s32 %v255
    %v259 = vcvt.f32.s32 %v257
    %v260 = vshll.u32 %v259, 16
    %v261 = vadd.s32 %v260, %v258
    %v262 = vsel %vm209, %v179, 0
    %v263 = vand.u32 %v262, 65535
    %v264 = vshrl.u32 %v262, 16
    %v265 = vcvt.s32.f32 %v263
    %v266 = vcvt.s32.f32 %v264
    %267 = vadd.xlane.f32.xlu0 %v265
    %v268 = vpop.xlane.xlu0 %267
    %269 = vadd.xlane.f32.xlu0 %v266
    %v270 = vpop.xlane.xlu0 %269
    %v271 = vcvt.f32.s32 %v268
    %v272 = vcvt.f32.s32 %v270
    %v273 = vshll.u32 %v272, 16
    %v274 = vadd.s32 %v273, %v271
    %v275 = vsel %vm209, %v180, 0
    %v276 = vand.u32 %v275, 65535
    %v277 = vshrl.u32 %v275, 16
    %v278 = vcvt.s32.f32 %v276
    %v279 = vcvt.s32.f32 %v277
    %280 = vadd.xlane.f32.xlu0 %v278
    %v281 = vpop.xlane.xlu0 %280
    %282 = vadd.xlane.f32.xlu0 %v279
    %v283 = vpop.xlane.xlu0 %282
    %v284 = vcvt.f32.s32 %v281
    %v285 = vcvt.f32.s32 %v283
    %v286 = vshll.u32 %v285, 16
    %v287 = vadd.s32 %v286, %v284
    %v288 = vsel %vm209, %v181, 0
    %v289 = vand.u32 %v288, 65535
    %v290 = vshrl.u32 %v288, 16
    %v291 = vcvt.s32.f32 %v289
    %v292 = vcvt.s32.f32 %v290
    %293 = vadd.xlane.f32.xlu0 %v291
    %v294 = vpop.xlane.xlu0 %293
    %295 = vadd.xlane.f32.xlu0 %v292
    %v296 = vpop.xlane.xlu0 %295
    %v297 = vcvt.f32.s32 %v294
    %v298 = vcvt.f32.s32 %v296
    %v299 = vshll.u32 %v298, 16
    %v300 = vadd.s32 %v299, %v297
    %v301 = vsel %vm209, %v182, 0
    %v302 = vand.u32 %v301, 65535
    %v303 = vshrl.u32 %v301, 16
    %v304 = vcvt.s32.f32 %v302
    %v305 = vcvt.s32.f32 %v303
    %306 = vadd.xlane.f32.xlu0 %v304
    %v307 = vpop.xlane.xlu0 %306
    %308 = vadd.xlane.f32.xlu0 %v305
    %v309 = vpop.xlane.xlu0 %308
    %v310 = vcvt.f32.s32 %v307
    %v311 = vcvt.f32.s32 %v309
    %v312 = vshll.u32 %v311, 16
    %v313 = vadd.s32 %v312, %v310
    %v314 = vsel %vm209, %v183, 0
    %v315 = vand.u32 %v314, 65535
    %v316 = vshrl.u32 %v314, 16
    %v317 = vcvt.s32.f32 %v315
    %v318 = vcvt.s32.f32 %v316
    %319 = vadd.xlane.f32.xlu0 %v317
    %v320 = vpop.xlane.xlu0 %319
    %321 = vadd.xlane.f32.xlu0 %v318
    %v322 = vpop.xlane.xlu0 %321
    %v323 = vcvt.f32.s32 %v320
    %v324 = vcvt.f32.s32 %v322
    %v325 = vshll.u32 %v324, 16
    %v326 = vadd.s32 %v325, %v323
    %v327 = vsel %vm209, %v184, 0
    %v328 = vand.u32 %v327, 65535
    %v329 = vshrl.u32 %v327, 16
    %v330 = vcvt.s32.f32 %v328
    %v331 = vcvt.s32.f32 %v329
    %332 = vadd.xlane.f32.xlu0 %v330
    %v333 = vpop.xlane.xlu0 %332
    %334 = vadd.xlane.f32.xlu0 %v331
    %v335 = vpop.xlane.xlu0 %334
    %v336 = vcvt.f32.s32 %v333
    %v337 = vcvt.f32.s32 %v335
    %v338 = vshll.u32 %v337, 16
    %v339 = vadd.s32 %v338, %v336
    %v340 = vsel %vm209, %v185, 0
    %v341 = vand.u32 %v340, 65535
    %v342 = vshrl.u32 %v340, 16
    %v343 = vcvt.s32.f32 %v341
    %v344 = vcvt.s32.f32 %v342
    %345 = vadd.xlane.f32.xlu0 %v343
    %v346 = vpop.xlane.xlu0 %345
    %347 = vadd.xlane.f32.xlu0 %v344
    %v348 = vpop.xlane.xlu0 %347
    %v349 = vcvt.f32.s32 %v346
    %v350 = vcvt.f32.s32 %v348
    %v351 = vshll.u32 %v350, 16
    %v352 = vadd.s32 %v351, %v349
    %v353 = vsel %vm209, %v186, 0
    %v354 = vand.u32 %v353, 65535
    %v355 = vshrl.u32 %v353, 16
    %v356 = vcvt.s32.f32 %v354
    %v357 = vcvt.s32.f32 %v355
    %358 = vadd.xlane.f32.xlu0 %v356
    %v359 = vpop.xlane.xlu0 %358
    %360 = vadd.xlane.f32.xlu0 %v357
    %v361 = vpop.xlane.xlu0 %360
    %v362 = vcvt.f32.s32 %v359
    %v363 = vcvt.f32.s32 %v361
    %v364 = vshll.u32 %v363, 16
    %v365 = vadd.s32 %v364, %v362
    %v366 = vsel %vm209, %v187, 0
    %v367 = vand.u32 %v366, 65535
    %v368 = vshrl.u32 %v366, 16
    %v369 = vcvt.s32.f32 %v367
    %v370 = vcvt.s32.f32 %v368
    %371 = vadd.xlane.f32.xlu0 %v369
    %v372 = vpop.xlane.xlu0 %371
    %373 = vadd.xlane.f32.xlu0 %v370
    %v374 = vpop.xlane.xlu0 %373
    %v375 = vcvt.f32.s32 %v372
    %v376 = vcvt.f32.s32 %v374
    %v377 = vshll.u32 %v376, 16
    %v378 = vadd.s32 %v377, %v375
    %v379 = vsel %vm209, %v188, 0
    %v380 = vand.u32 %v379, 65535
    %v381 = vshrl.u32 %v379, 16
    %v382 = vcvt.s32.f32 %v380
    %v383 = vcvt.s32.f32 %v381
    %384 = vadd.xlane.f32.xlu0 %v382
    %v385 = vpop.xlane.xlu0 %384
    %386 = vadd.xlane.f32.xlu0 %v383
    %v387 = vpop.xlane.xlu0 %386
    %v388 = vcvt.f32.s32 %v385
    %v389 = vcvt.f32.s32 %v387
    %v390 = vshll.u32 %v389, 16
    %v391 = vadd.s32 %v390, %v388
    %v392 = vsel %vm209, %v189, 0
    %v393 = vand.u32 %v392, 65535
    %v394 = vshrl.u32 %v392, 16
    %v395 = vcvt.s32.f32 %v393
    %v396 = vcvt.s32.f32 %v394
    %397 = vadd.xlane.f32.xlu0 %v395
    %v398 = vpop.xlane.xlu0 %397
    %399 = vadd.xlane.f32.xlu0 %v396
    %v400 = vpop.xlane.xlu0 %399
    %v401 = vcvt.f32.s32 %v398
    %v402 = vcvt.f32.s32 %v400
    %v403 = vshll.u32 %v402, 16
    %v404 = vadd.s32 %v403, %v401
    %v405 = vsel %vm209, %v190, 0
    %v406 = vand.u32 %v405, 65535
    %v407 = vshrl.u32 %v405, 16
    %v408 = vcvt.s32.f32 %v406
    %v409 = vcvt.s32.f32 %v407
    %410 = vadd.xlane.f32.xlu0 %v408
    %v411 = vpop.xlane.xlu0 %410
    %412 = vadd.xlane.f32.xlu0 %v409
    %v413 = vpop.xlane.xlu0 %412
    %v414 = vcvt.f32.s32 %v411
    %v415 = vcvt.f32.s32 %v413
    %v416 = vshll.u32 %v415, 16
    %v417 = vadd.s32 %v416, %v414
    %v418 = vsel %vm209, %v191, 0
    %v419 = vand.u32 %v418, 65535
    %v420 = vshrl.u32 %v418, 16
    %v421 = vcvt.s32.f32 %v419
    %v422 = vcvt.s32.f32 %v420
    %423 = vadd.xlane.f32.xlu0 %v421
    %v424 = vpop.xlane.xlu0 %423
    %425 = vadd.xlane.f32.xlu0 %v422
    %v426 = vpop.xlane.xlu0 %425
    %v427 = vcvt.f32.s32 %v424
    %v428 = vcvt.f32.s32 %v426
    %v429 = vshll.u32 %v428, 16
    %v430 = vadd.s32 %v429, %v427
    %v431 = vsel %vm209, %v192, 0
    %v432 = vand.u32 %v431, 65535
    %v433 = vshrl.u32 %v431, 16
    %v434 = vcvt.s32.f32 %v432
    %v435 = vcvt.s32.f32 %v433
    %436 = vadd.xlane.f32.xlu0 %v434
    %v437 = vpop.xlane.xlu0 %436
    %438 = vadd.xlane.f32.xlu0 %v435
    %v439 = vpop.xlane.xlu0 %438
    %v440 = vcvt.f32.s32 %v437
    %v441 = vcvt.f32.s32 %v439
    %v442 = vshll.u32 %v441, 16
    %v443 = vadd.s32 %v442, %v440
    %v444 = vsel %vm209, %v193, 0
    %v445 = vand.u32 %v444, 65535
    %v446 = vshrl.u32 %v444, 16
    %v447 = vcvt.s32.f32 %v445
    %v448 = vcvt.s32.f32 %v446
    %449 = vadd.xlane.f32.xlu0 %v447
    %v450 = vpop.xlane.xlu0 %449
    %451 = vadd.xlane.f32.xlu0 %v448
    %v452 = vpop.xlane.xlu0 %451
    %v453 = vcvt.f32.s32 %v450
    %v454 = vcvt.f32.s32 %v452
    %v455 = vshll.u32 %v454, 16
    %v456 = vadd.s32 %v455, %v453
    %v457 = vsel %vm209, %v194, 0
    %v458 = vand.u32 %v457, 65535
    %v459 = vshrl.u32 %v457, 16
    %v460 = vcvt.s32.f32 %v458
    %v461 = vcvt.s32.f32 %v459
    %462 = vadd.xlane.f32.xlu0 %v460
    %v463 = vpop.xlane.xlu0 %462
    %464 = vadd.xlane.f32.xlu0 %v461
    %v465 = vpop.xlane.xlu0 %464
    %v466 = vcvt.f32.s32 %v463
    %v467 = vcvt.f32.s32 %v465
    %v468 = vshll.u32 %v467, 16
    %v469 = vadd.s32 %v468, %v466
    %v470 = vsel %vm209, %v195, 0
    %v471 = vand.u32 %v470, 65535
    %v472 = vshrl.u32 %v470, 16
    %v473 = vcvt.s32.f32 %v471
    %v474 = vcvt.s32.f32 %v472
    %475 = vadd.xlane.f32.xlu0 %v473
    %v476 = vpop.xlane.xlu0 %475
    %477 = vadd.xlane.f32.xlu0 %v474
    %v478 = vpop.xlane.xlu0 %477
    %v479 = vcvt.f32.s32 %v476
    %v480 = vcvt.f32.s32 %v478
    %v481 = vshll.u32 %v480, 16
    %v482 = vadd.s32 %v481, %v479
    %v483 = vsel %vm209, %v196, 0
    %v484 = vand.u32 %v483, 65535
    %v485 = vshrl.u32 %v483, 16
    %v486 = vcvt.s32.f32 %v484
    %v487 = vcvt.s32.f32 %v485
    %488 = vadd.xlane.f32.xlu0 %v486
    %v489 = vpop.xlane.xlu0 %488
    %490 = vadd.xlane.f32.xlu0 %v487
    %v491 = vpop.xlane.xlu0 %490
    %v492 = vcvt.f32.s32 %v489
    %v493 = vcvt.f32.s32 %v491
    %v494 = vshll.u32 %v493, 16
    %v495 = vadd.s32 %v494, %v492
    %v496 = vsel %vm209, %v197, 0
    %v497 = vand.u32 %v496, 65535
    %v498 = vshrl.u32 %v496, 16
    %v499 = vcvt.s32.f32 %v497
    %v500 = vcvt.s32.f32 %v498
    %501 = vadd.xlane.f32.xlu0 %v499
    %v502 = vpop.xlane.xlu0 %501
    %503 = vadd.xlane.f32.xlu0 %v500
    %v504 = vpop.xlane.xlu0 %503
    %v505 = vcvt.f32.s32 %v502
    %v506 = vcvt.f32.s32 %v504
    %v507 = vshll.u32 %v506, 16
    %v508 = vadd.s32 %v507, %v505
    %v509 = vsel %vm209, %v198, 0
    %v510 = vand.u32 %v509, 65535
    %v511 = vshrl.u32 %v509, 16
    %v512 = vcvt.s32.f32 %v510
    %v513 = vcvt.s32.f32 %v511
    %514 = vadd.xlane.f32.xlu0 %v512
    %v515 = vpop.xlane.xlu0 %514
    %516 = vadd.xlane.f32.xlu0 %v513
    %v517 = vpop.xlane.xlu0 %516
    %v518 = vcvt.f32.s32 %v515
    %v519 = vcvt.f32.s32 %v517
    %v520 = vshll.u32 %v519, 16
    %v521 = vadd.s32 %v520, %v518
    %v522 = vsel %vm209, %v199, 0
    %v523 = vand.u32 %v522, 65535
    %v524 = vshrl.u32 %v522, 16
    %v525 = vcvt.s32.f32 %v523
    %v526 = vcvt.s32.f32 %v524
    %527 = vadd.xlane.f32.xlu0 %v525
    %v528 = vpop.xlane.xlu0 %527
    %529 = vadd.xlane.f32.xlu0 %v526
    %v530 = vpop.xlane.xlu0 %529
    %v531 = vcvt.f32.s32 %v528
    %v532 = vcvt.f32.s32 %v530
    %v533 = vshll.u32 %v532, 16
    %v534 = vadd.s32 %v533, %v531
    %v535 = vsel %vm209, %v200, 0
    %v536 = vand.u32 %v535, 65535
    %v537 = vshrl.u32 %v535, 16
    %v538 = vcvt.s32.f32 %v536
    %v539 = vcvt.s32.f32 %v537
    %540 = vadd.xlane.f32.xlu0 %v538
    %v541 = vpop.xlane.xlu0 %540
    %542 = vadd.xlane.f32.xlu0 %v539
    %v543 = vpop.xlane.xlu0 %542
    %v544 = vcvt.f32.s32 %v541
    %v545 = vcvt.f32.s32 %v543
    %v546 = vshll.u32 %v545, 16
    %v547 = vadd.s32 %v546, %v544
    %v548 = vsel %vm209, %v201, 0
    %v549 = vand.u32 %v548, 65535
    %v550 = vshrl.u32 %v548, 16
    %v551 = vcvt.s32.f32 %v549
    %v552 = vcvt.s32.f32 %v550
    %553 = vadd.xlane.f32.xlu0 %v551
    %v554 = vpop.xlane.xlu0 %553
    %555 = vadd.xlane.f32.xlu0 %v552
    %v556 = vpop.xlane.xlu0 %555
    %v557 = vcvt.f32.s32 %v554
    %v558 = vcvt.f32.s32 %v556
    %v559 = vshll.u32 %v558, 16
    %v560 = vadd.s32 %v559, %v557
    %v561 = vsel %vm209, %v202, 0
    %v562 = vand.u32 %v561, 65535
    %v563 = vshrl.u32 %v561, 16
    %v564 = vcvt.s32.f32 %v562
    %v565 = vcvt.s32.f32 %v563
    %566 = vadd.xlane.f32.xlu0 %v564
    %v567 = vpop.xlane.xlu0 %566
    %568 = vadd.xlane.f32.xlu0 %v565
    %v569 = vpop.xlane.xlu0 %568
    %v570 = vcvt.f32.s32 %v567
    %v571 = vcvt.f32.s32 %v569
    %v572 = vshll.u32 %v571, 16
    %v573 = vadd.s32 %v572, %v570
    %v574 = vsel %vm209, %v203, 0
    %v575 = vand.u32 %v574, 65535
    %v576 = vshrl.u32 %v574, 16
    %v577 = vcvt.s32.f32 %v575
    %v578 = vcvt.s32.f32 %v576
    %579 = vadd.xlane.f32.xlu0 %v577
    %v580 = vpop.xlane.xlu0 %579
    %581 = vadd.xlane.f32.xlu0 %v578
    %v582 = vpop.xlane.xlu0 %581
    %v583 = vcvt.f32.s32 %v580
    %v584 = vcvt.f32.s32 %v582
    %v585 = vshll.u32 %v584, 16
    %v586 = vadd.s32 %v585, %v583
    %v587 = vsel %vm209, %v204, 0
    %v588 = vand.u32 %v587, 65535
    %v589 = vshrl.u32 %v587, 16
    %v590 = vcvt.s32.f32 %v588
    %v591 = vcvt.s32.f32 %v589
    %592 = vadd.xlane.f32.xlu0 %v590
    %v593 = vpop.xlane.xlu0 %592
    %594 = vadd.xlane.f32.xlu0 %v591
    %v595 = vpop.xlane.xlu0 %594
    %v596 = vcvt.f32.s32 %v593
    %v597 = vcvt.f32.s32 %v595
    %v598 = vshll.u32 %v597, 16
    %v599 = vadd.s32 %v598, %v596
    %v600 = vsel %vm209, %v205, 0
    %v601 = vand.u32 %v600, 65535
    %v602 = vshrl.u32 %v600, 16
    %v603 = vcvt.s32.f32 %v601
    %v604 = vcvt.s32.f32 %v602
    %605 = vadd.xlane.f32.xlu0 %v603
    %v606 = vpop.xlane.xlu0 %605
    %607 = vadd.xlane.f32.xlu0 %v604
    %v608 = vpop.xlane.xlu0 %607
    %v609 = vcvt.f32.s32 %v606
    %v610 = vcvt.f32.s32 %v608
    %v611 = vshll.u32 %v610, 16
    %v612 = vadd.s32 %v611, %v609
    %v613 = vsel %vm209, %v206, 0
    %v614 = vand.u32 %v613, 65535
    %v615 = vshrl.u32 %v613, 16
    %v616 = vcvt.s32.f32 %v614
    %v617 = vcvt.s32.f32 %v615
    %618 = vadd.xlane.f32.xlu0 %v616
    %v619 = vpop.xlane.xlu0 %618
    %620 = vadd.xlane.f32.xlu0 %v617
    %v621 = vpop.xlane.xlu0 %620
    %v622 = vcvt.f32.s32 %v619
    %v623 = vcvt.f32.s32 %v621
    %v624 = vshll.u32 %v623, 16
    %v625 = vadd.s32 %v624, %v622
    %v626 = vsel %vm209, %v207, 0
    %v627 = vand.u32 %v626, 65535
    %v628 = vshrl.u32 %v626, 16
    %v629 = vcvt.s32.f32 %v627
    %v630 = vcvt.s32.f32 %v628
    %631 = vadd.xlane.f32.xlu0 %v629
    %v632 = vpop.xlane.xlu0 %631
    %633 = vadd.xlane.f32.xlu0 %v630
    %v634 = vpop.xlane.xlu0 %633
    %v635 = vcvt.f32.s32 %v632
    %v636 = vcvt.f32.s32 %v634
    %v637 = vshll.u32 %v636, 16
    %v638 = vadd.s32 %v637, %v635
    %v639 = vsel %vm209, %v208, 0
    %v640 = vand.u32 %v639, 65535
    %v641 = vshrl.u32 %v639, 16
    %v642 = vcvt.s32.f32 %v640
    %v643 = vcvt.s32.f32 %v641
    %644 = vadd.xlane.f32.xlu0 %v642
    %v645 = vpop.xlane.xlu0 %644
    %646 = vadd.xlane.f32.xlu0 %v643
    %v647 = vpop.xlane.xlu0 %646
    %v648 = vcvt.f32.s32 %v645
    %v649 = vcvt.f32.s32 %v647
    %v650 = vshll.u32 %v649, 16
    %v651 = vadd.s32 %v650, %v648
    %vm652 = vcmp.eq.s32.totalorder %v222, 0
    %vm653 = vcmp.eq.s32.totalorder %v235, 0
    %vm654 = vcmp.eq.s32.totalorder %v248, 0
    %vm655 = vcmp.eq.s32.totalorder %v261, 0
    %vm656 = vcmp.eq.s32.totalorder %v274, 0
    %vm657 = vcmp.eq.s32.totalorder %v287, 0
    %vm658 = vcmp.eq.s32.totalorder %v300, 0
    %vm659 = vcmp.eq.s32.totalorder %v313, 0
    %vm660 = vcmp.eq.s32.totalorder %v326, 0
    %vm661 = vcmp.eq.s32.totalorder %v339, 0
    %vm662 = vcmp.eq.s32.totalorder %v352, 0
    %vm663 = vcmp.eq.s32.totalorder %v365, 0
    %vm664 = vcmp.eq.s32.totalorder %v378, 0
    %vm665 = vcmp.eq.s32.totalorder %v391, 0
    %vm666 = vcmp.eq.s32.totalorder %v404, 0
    %vm667 = vcmp.eq.s32.totalorder %v417, 0
    %vm668 = vcmp.eq.s32.totalorder %v430, 0
    %vm669 = vcmp.eq.s32.totalorder %v443, 0
    %vm670 = vcmp.eq.s32.totalorder %v456, 0
    %vm671 = vcmp.eq.s32.totalorder %v469, 0
    %vm672 = vcmp.eq.s32.totalorder %v482, 0
    %vm673 = vcmp.eq.s32.totalorder %v495, 0
    %vm674 = vcmp.eq.s32.totalorder %v508, 0
    %vm675 = vcmp.eq.s32.totalorder %v521, 0
    %vm676 = vcmp.eq.s32.totalorder %v534, 0
    %vm677 = vcmp.eq.s32.totalorder %v547, 0
    %vm678 = vcmp.eq.s32.totalorder %v560, 0
    %vm679 = vcmp.eq.s32.totalorder %v573, 0
    %vm680 = vcmp.eq.s32.totalorder %v586, 0
    %vm681 = vcmp.eq.s32.totalorder %v599, 0
    %vm682 = vcmp.eq.s32.totalorder %v612, 0
    %vm683 = vcmp.eq.s32.totalorder %v625, 0
    %vm684 = vcmp.eq.s32.totalorder %v638, 0
    %vm685 = vcmp.eq.s32.totalorder %v651, 0
    %v686 = vld [vmem:[#allocation3 + $0x6] sm:$0xff]
    %v687 = vld [vmem:[#allocation3 + $0xe] sm:$0xff]
    %v688 = vld [vmem:[#allocation3 + $0x16] sm:$0xff]
    %v689 = vld [vmem:[#allocation3 + $0x1e] sm:$0xff]
    %v690 = vld [vmem:[#allocation3 + $0x26] sm:$0xff]
    %v691 = vld [vmem:[#allocation3 + $0x2e] sm:$0xff]
    %v692 = vld [vmem:[#allocation3 + $0x36] sm:$0xff]
    %v693 = vld [vmem:[#allocation3 + $0x3e] sm:$0xff]
    %v694 = vld [vmem:[#allocation3 + $0x46] sm:$0xff]
    %v695 = vld [vmem:[#allocation3 + $0x4e] sm:$0xff]
    %v696 = vld [vmem:[#allocation3 + $0x56] sm:$0xff]
    %v697 = vld [vmem:[#allocation3 + $0x5e] sm:$0xff]
    %v698 = vld [vmem:[#allocation3 + $0x66] sm:$0xff]
    %v699 = vld [vmem:[#allocation3 + $0x6e] sm:$0xff]
    %v700 = vld [vmem:[#allocation3 + $0x76] sm:$0xff]
    %v701 = vld [vmem:[#allocation3 + $0x7e] sm:$0xff]
    %v702 = vld [vmem:[#allocation3 + $0x86] sm:$0xff]
    %v703 = vld [vmem:[#allocation3 + $0x8e] sm:$0xff]
    %v704 = vld [vmem:[#allocation3 + $0x96] sm:$0xff]
    %v705 = vld [vmem:[#allocation3 + $0x9e] sm:$0xff]
    %v706 = vld [vmem:[#allocation3 + $0xa6] sm:$0xff]
    %v707 = vld [vmem:[#allocation3 + $0xae] sm:$0xff]
    %v708 = vld [vmem:[#allocation3 + $0xb6] sm:$0xff]
    %v709 = vld [vmem:[#allocation3 + $0xbe] sm:$0xff]
    %v710 = vld [vmem:[#allocation3 + $0xc6] sm:$0xff]
    %v711 = vld [vmem:[#allocation3 + $0xce] sm:$0xff]
    %v712 = vld [vmem:[#allocation3 + $0xd6] sm:$0xff]
    %v713 = vld [vmem:[#allocation3 + $0xde] sm:$0xff]
    %v714 = vld [vmem:[#allocation3 + $0xe6] sm:$0xff]
    %v715 = vld [vmem:[#allocation3 + $0xee] sm:$0xff]
    %v716 = vld [vmem:[#allocation3 + $0xf6] sm:$0xff]
    %v717 = vld [vmem:[#allocation3 + $0xfe] sm:$0xff]
    %v718 = vld [vmem:[#allocation3 + $0x106] sm:$0xff]
    %v719 = vld [vmem:[#allocation3 + $0x10e] sm:$0xff]
    %v720 = vpack.c.bf16 %v687, %v686
    %v721 = vpack.c.bf16 %v689, %v688
    %v722 = vpack.c.bf16 %v691, %v690
    %v723 = vpack.c.bf16 %v693, %v692
    %v724 = vpack.c.bf16 %v695, %v694
    %v725 = vpack.c.bf16 %v697, %v696
    %v726 = vpack.c.bf16 %v699, %v698
    %v727 = vpack.c.bf16 %v701, %v700
    %v728 = vpack.c.bf16 %v703, %v702
    %v729 = vpack.c.bf16 %v705, %v704
    %v730 = vpack.c.bf16 %v707, %v706
    %v731 = vpack.c.bf16 %v709, %v708
    %v732 = vpack.c.bf16 %v711, %v710
    %v733 = vpack.c.bf16 %v713, %v712
    %v734 = vpack.c.bf16 %v715, %v714
    %v735 = vpack.c.bf16 %v717, %v716
    %v736 = vpack.c.bf16 %v719, %v718
    %v737 = vld [vmem:[#allocation3 + $0x7] sm:$0xff]
    %v738 = vld [vmem:[#allocation3 + $0xf] sm:$0xff]
    %v739 = vld [vmem:[#allocation3 + $0x17] sm:$0xff]
    %v740 = vld [vmem:[#allocation3 + $0x1f] sm:$0xff]
    %v741 = vld [vmem:[#allocation3 + $0x27] sm:$0xff]
    %v742 = vld [vmem:[#allocation3 + $0x2f] sm:$0xff]
    %v743 = vld [vmem:[#allocation3 + $0x37] sm:$0xff]
    %v744 = vld [vmem:[#allocation3 + $0x3f] sm:$0xff]
    %v745 = vld [vmem:[#allocation3 + $0x47] sm:$0xff]
    %v746 = vld [vmem:[#allocation3 + $0x4f] sm:$0xff]
    %v747 = vld [vmem:[#allocation3 + $0x57] sm:$0xff]
    %v748 = vld [vmem:[#allocation3 + $0x5f] sm:$0xff]
    %v749 = vld [vmem:[#allocation3 + $0x67] sm:$0xff]
    %v750 = vld [vmem:[#allocation3 + $0x6f] sm:$0xff]
    %v751 = vld [vmem:[#allocation3 + $0x77] sm:$0xff]
    %v752 = vld [vmem:[#allocation3 + $0x7f] sm:$0xff]
    %v753 = vld [vmem:[#allocation3 + $0x87] sm:$0xff]
    %v754 = vld [vmem:[#allocation3 + $0x8f] sm:$0xff]
    %v755 = vld [vmem:[#allocation3 + $0x97] sm:$0xff]
    %v756 = vld [vmem:[#allocation3 + $0x9f] sm:$0xff]
    %v757 = vld [vmem:[#allocation3 + $0xa7] sm:$0xff]
    %v758 = vld [vmem:[#allocation3 + $0xaf] sm:$0xff]
    %v759 = vld [vmem:[#allocation3 + $0xb7] sm:$0xff]
    %v760 = vld [vmem:[#allocation3 + $0xbf] sm:$0xff]
    %v761 = vld [vmem:[#allocation3 + $0xc7] sm:$0xff]
    %v762 = vld [vmem:[#allocation3 + $0xcf] sm:$0xff]
    %v763 = vld [vmem:[#allocation3 + $0xd7] sm:$0xff]
    %v764 = vld [vmem:[#allocation3 + $0xdf] sm:$0xff]
    %v765 = vld [vmem:[#allocation3 + $0xe7] sm:$0xff]
    %v766 = vld [vmem:[#allocation3 + $0xef] sm:$0xff]
    %v767 = vld [vmem:[#allocation3 + $0xf7] sm:$0xff]
    %v768 = vld [vmem:[#allocation3 + $0xff] sm:$0xff]
    %v769 = vld [vmem:[#allocation3 + $0x107] sm:$0xff]
    %v770 = vld [vmem:[#allocation3 + $0x10f] sm:$0xff]
    %v771 = vpack.c.bf16 %v738, %v737
    %v772 = vpack.c.bf16 %v740, %v739
    %v773 = vpack.c.bf16 %v742, %v741
    %v774 = vpack.c.bf16 %v744, %v743
    %v775 = vpack.c.bf16 %v746, %v745
    %v776 = vpack.c.bf16 %v748, %v747
    %v777 = vpack.c.bf16 %v750, %v749
    %v778 = vpack.c.bf16 %v752, %v751
    %v779 = vpack.c.bf16 %v754, %v753
    %v780 = vpack.c.bf16 %v756, %v755
    %v781 = vpack.c.bf16 %v758, %v757
    %v782 = vpack.c.bf16 %v760, %v759
    %v783 = vpack.c.bf16 %v762, %v761
    %v784 = vpack.c.bf16 %v764, %v763
    %v785 = vpack.c.bf16 %v766, %v765
    %v786 = vpack.c.bf16 %v768, %v767
    %v787 = vpack.c.bf16 %v770, %v769
    %v788 = vld [vmem:[#allocation3 + $0x8] sm:$0xff]
    %v789 = vld [vmem:[#allocation3 + $0x10] sm:$0xff]
    %v790 = vld [vmem:[#allocation3 + $0x18] sm:$0xff]
    %v791 = vld [vmem:[#allocation3 + $0x20] sm:$0xff]
    %v792 = vld [vmem:[#allocation3 + $0x28] sm:$0xff]
    %v793 = vld [vmem:[#allocation3 + $0x30] sm:$0xff]
    %v794 = vld [vmem:[#allocation3 + $0x38] sm:$0xff]
    %v795 = vld [vmem:[#allocation3 + $0x40] sm:$0xff]
    %v796 = vld [vmem:[#allocation3 + $0x48] sm:$0xff]
    %v797 = vld [vmem:[#allocation3 + $0x50] sm:$0xff]
    %v798 = vld [vmem:[#allocation3 + $0x58] sm:$0xff]
    %v799 = vld [vmem:[#allocation3 + $0x60] sm:$0xff]
    %v800 = vld [vmem:[#allocation3 + $0x68] sm:$0xff]
    %v801 = vld [vmem:[#allocation3 + $0x70] sm:$0xff]
    %v802 = vld [vmem:[#allocation3 + $0x78] sm:$0xff]
    %v803 = vld [vmem:[#allocation3 + $0x80] sm:$0xff]
    %v804 = vld [vmem:[#allocation3 + $0x88] sm:$0xff]
    %v805 = vld [vmem:[#allocation3 + $0x90] sm:$0xff]
    %v806 = vld [vmem:[#allocation3 + $0x98] sm:$0xff]
    %v807 = vld [vmem:[#allocation3 + $0xa0] sm:$0xff]
    %v808 = vld [vmem:[#allocation3 + $0xa8] sm:$0xff]
    %v809 = vld [vmem:[#allocation3 + $0xb0] sm:$0xff]
    %v810 = vld [vmem:[#allocation3 + $0xb8] sm:$0xff]
    %v811 = vld [vmem:[#allocation3 + $0xc0] sm:$0xff]
    %v812 = vld [vmem:[#allocation3 + $0xc8] sm:$0xff]
    %v813 = vld [vmem:[#allocation3 + $0xd0] sm:$0xff]
    %v814 = vld [vmem:[#allocation3 + $0xd8] sm:$0xff]
    %v815 = vld [vmem:[#allocation3 + $0xe0] sm:$0xff]
    %v816 = vld [vmem:[#allocation3 + $0xe8] sm:$0xff]
    %v817 = vld [vmem:[#allocation3 + $0xf0] sm:$0xff]
    %v818 = vld [vmem:[#allocation3 + $0xf8] sm:$0xff]
    %v819 = vld [vmem:[#allocation3 + $0x100] sm:$0xff]
    %v820 = vld [vmem:[#allocation3 + $0x108] sm:$0xff]
    %v821 = vld [vmem:[#allocation3 + $0x110] sm:$0xff]
    %v822 = vpack.c.bf16 %v789, %v788
    %v823 = vpack.c.bf16 %v791, %v790
    %v824 = vpack.c.bf16 %v793, %v792
    %v825 = vpack.c.bf16 %v795, %v794
    %v826 = vpack.c.bf16 %v797, %v796
    %v827 = vpack.c.bf16 %v799, %v798
    %v828 = vpack.c.bf16 %v801, %v800
    %v829 = vpack.c.bf16 %v803, %v802
    %v830 = vpack.c.bf16 %v805, %v804
    %v831 = vpack.c.bf16 %v807, %v806
    %v832 = vpack.c.bf16 %v809, %v808
    %v833 = vpack.c.bf16 %v811, %v810
    %v834 = vpack.c.bf16 %v813, %v812
    %v835 = vpack.c.bf16 %v815, %v814
    %v836 = vpack.c.bf16 %v817, %v816
    %v837 = vpack.c.bf16 %v819, %v818
    %v838 = vpack.c.bf16 %v821, %v820
    %v839 = vld [vmem:[#allocation6] sm:$0xf]
    %v840 = vld [vmem:[#allocation6 + $0x4] sm:$0xf]
    %v841 = vld [vmem:[#allocation6 + $0x8] sm:$0xf]
    %v842 = vld [vmem:[#allocation6 + $0xc] sm:$0xf]
    %v843 = vld [vmem:[#allocation6 + $0x10] sm:$0xf]
    %v844 = vld [vmem:[#allocation6 + $0x14] sm:$0xf]
    %v845 = vld [vmem:[#allocation6 + $0x18] sm:$0xf]
    %v846 = vld [vmem:[#allocation6 + $0x1c] sm:$0xf]
    %v847 = vld [vmem:[#allocation6 + $0x20] sm:$0xf]
    %v848 = vld [vmem:[#allocation6 + $0x24] sm:$0xf]
    %v849 = vld [vmem:[#allocation6 + $0x28] sm:$0xf]
    %v850 = vld [vmem:[#allocation6 + $0x2c] sm:$0xf]
    %v851 = vld [vmem:[#allocation6 + $0x30] sm:$0xf]
    %v852 = vld [vmem:[#allocation6 + $0x34] sm:$0xf]
    %v853 = vld [vmem:[#allocation6 + $0x38] sm:$0xf]
    %v854 = vld [vmem:[#allocation6 + $0x3c] sm:$0xf]
    %v855 = vld [vmem:[#allocation6 + $0x40] sm:$0xf]
    %v856 = vld [vmem:[#allocation6 + $0x44] sm:$0xf]
    %v857 = vld [vmem:[#allocation6 + $0x48] sm:$0xf]
    %v858 = vld [vmem:[#allocation6 + $0x4c] sm:$0xf]
    %v859 = vld [vmem:[#allocation6 + $0x50] sm:$0xf]
    %v860 = vld [vmem:[#allocation6 + $0x54] sm:$0xf]
    %v861 = vld [vmem:[#allocation6 + $0x58] sm:$0xf]
    %v862 = vld [vmem:[#allocation6 + $0x5c] sm:$0xf]
    %v863 = vld [vmem:[#allocation6 + $0x60] sm:$0xf]
    %v864 = vld [vmem:[#allocation6 + $0x64] sm:$0xf]
    %v865 = vld [vmem:[#allocation6 + $0x68] sm:$0xf]
    %v866 = vld [vmem:[#allocation6 + $0x6c] sm:$0xf]
    %v867 = vld [vmem:[#allocation6 + $0x70] sm:$0xf]
    %v868 = vld [vmem:[#allocation6 + $0x74] sm:$0xf]
    %v869 = vld [vmem:[#allocation6 + $0x78] sm:$0xf]
    %v870 = vld [vmem:[#allocation6 + $0x7c] sm:$0xf]
    %v871 = vld [vmem:[#allocation6 + $0x80] sm:$0xf]
    %v872 = vld [vmem:[#allocation6 + $0x84] sm:$0xf]
    %v873 = vld [vmem:[#allocation6 + $0x88] sm:$0xf]
    %v874 = vld [vmem:[#allocation6 + $0x8c] sm:$0xf]
    %v875 = vld [vmem:[#allocation6 + $0x90] sm:$0xf]
    %v876 = vld [vmem:[#allocation6 + $0x94] sm:$0xf]
    %v877 = vld [vmem:[#allocation6 + $0x98] sm:$0xf]
    %v878 = vld [vmem:[#allocation6 + $0x9c] sm:$0xf]
    %v879 = vld [vmem:[#allocation6 + $0xa0] sm:$0xf]
    %v880 = vld [vmem:[#allocation6 + $0xa4] sm:$0xf]
    %v881 = vld [vmem:[#allocation6 + $0xa8] sm:$0xf]
    %v882 = vld [vmem:[#allocation6 + $0xac] sm:$0xf]
    %v883 = vld [vmem:[#allocation6 + $0xb0] sm:$0xf]
    %v884 = vld [vmem:[#allocation6 + $0xb4] sm:$0xf]
    %v885 = vld [vmem:[#allocation6 + $0xb8] sm:$0xf]
    %v886 = vld [vmem:[#allocation6 + $0xbc] sm:$0xf]
    %v887 = vld [vmem:[#allocation3 + $0x117] sm:$0xff]
    %v888 = vld [vmem:[#allocation3 + $0x11f] sm:$0xff]
    %v889 = vpack.c.bf16 %v888, %v887
    %v890 = vld [vmem:[#allocation3 + $0x118] sm:$0xff]
    %v891 = vld [vmem:[#allocation3 + $0x120] sm:$0xff]
    %v892 = vpack.c.bf16 %v891, %v890
    %v893 = vld [vmem:[#allocation3 + $0x19] sm:$0xff]
    %v894 = vld [vmem:[#allocation3 + $0x21] sm:$0xff]
    %v895 = vld [vmem:[#allocation3 + $0x29] sm:$0xff]
    %v896 = vld [vmem:[#allocation3 + $0x31] sm:$0xff]
    %v897 = vld [vmem:[#allocation3 + $0x39] sm:$0xff]
    %v898 = vld [vmem:[#allocation3 + $0x41] sm:$0xff]
    %v899 = vld [vmem:[#allocation3 + $0x49] sm:$0xff]
    %v900 = vld [vmem:[#allocation3 + $0x51] sm:$0xff]
    %v901 = vld [vmem:[#allocation3 + $0x59] sm:$0xff]
    %v902 = vld [vmem:[#allocation3 + $0x61] sm:$0xff]
    %v903 = vld [vmem:[#allocation3 + $0x69] sm:$0xff]
    %v904 = vld [vmem:[#allocation3 + $0x71] sm:$0xff]
    %v905 = vld [vmem:[#allocation3 + $0x79] sm:$0xff]
    %v906 = vld [vmem:[#allocation3 + $0x81] sm:$0xff]
    %v907 = vld [vmem:[#allocation3 + $0x89] sm:$0xff]
    %v908 = vld [vmem:[#allocation3 + $0x91] sm:$0xff]
    %v909 = vld [vmem:[#allocation3 + $0x99] sm:$0xff]
    %v910 = vld [vmem:[#allocation3 + $0xa1] sm:$0xff]
    %v911 = vld [vmem:[#allocation3 + $0xa9] sm:$0xff]
    %v912 = vld [vmem:[#allocation3 + $0xb1] sm:$0xff]
    %v913 = vld [vmem:[#allocation3 + $0xb9] sm:$0xff]
    %v914 = vld [vmem:[#allocation3 + $0xc1] sm:$0xff]
    %v915 = vld [vmem:[#allocation3 + $0xc9] sm:$0xff]
    %v916 = vld [vmem:[#allocation3 + $0xd1] sm:$0xff]
    %v917 = vld [vmem:[#allocation3 + $0xd9] sm:$0xff]
    %v918 = vld [vmem:[#allocation3 + $0xe1] sm:$0xff]
    %v919 = vld [vmem:[#allocation3 + $0xe9] sm:$0xff]
    %v920 = vld [vmem:[#allocation3 + $0xf1] sm:$0xff]
    %v921 = vld [vmem:[#allocation3 + $0xf9] sm:$0xff]
    %v922 = vld [vmem:[#allocation3 + $0x101] sm:$0xff]
    %v923 = vld [vmem:[#allocation3 + $0x109] sm:$0xff]
    %v924 = vld [vmem:[#allocation3 + $0x111] sm:$0xff]
    %v925 = vld [vmem:[#allocation3 + $0x119] sm:$0xff]
    %v926 = vld [vmem:[#allocation3 + $0x121] sm:$0xff]
    %v927 = vpack.c.bf16 %v894, %v893
    %v928 = vpack.c.bf16 %v896, %v895
    %v929 = vpack.c.bf16 %v898, %v897
    %v930 = vpack.c.bf16 %v900, %v899
    %v931 = vpack.c.bf16 %v902, %v901
    %v932 = vpack.c.bf16 %v904, %v903
    %v933 = vpack.c.bf16 %v906, %v905
    %v934 = vpack.c.bf16 %v908, %v907
    %v935 = vpack.c.bf16 %v910, %v909
    %v936 = vpack.c.bf16 %v912, %v911
    %v937 = vpack.c.bf16 %v914, %v913
    %v938 = vpack.c.bf16 %v916, %v915
    %v939 = vpack.c.bf16 %v918, %v917
    %v940 = vpack.c.bf16 %v920, %v919
    %v941 = vpack.c.bf16 %v922, %v921
    %v942 = vpack.c.bf16 %v924, %v923
    %v943 = vpack.c.bf16 %v926, %v925
    %v944 = vld [vmem:[#allocation6 + $0xc0] sm:$0xf]
    %v945 = vld [vmem:[#allocation6 + $0xc4] sm:$0xf]
    %v946 = vld [vmem:[#allocation6 + $0xc8] sm:$0xf]
    %v947 = vld [vmem:[#allocation6 + $0xcc] sm:$0xf]
    %v948 = vld [vmem:[#allocation6 + $0xd0] sm:$0xf]
    %v949 = vld [vmem:[#allocation6 + $0xd4] sm:$0xf]
    %v950 = vld [vmem:[#allocation6 + $0xd8] sm:$0xf]
    %v951 = vld [vmem:[#allocation6 + $0xdc] sm:$0xf]
    %v952 = vld [vmem:[#allocation6 + $0xe0] sm:$0xf]
    %v953 = vld [vmem:[#allocation6 + $0xe4] sm:$0xf]
    %v954 = vld [vmem:[#allocation6 + $0xe8] sm:$0xf]
    %v955 = vld [vmem:[#allocation6 + $0xec] sm:$0xf]
    %v956 = vld [vmem:[#allocation6 + $0xf0] sm:$0xf]
    %v957 = vld [vmem:[#allocation6 + $0xf4] sm:$0xf]
    %v958 = vld [vmem:[#allocation6 + $0xf8] sm:$0xf]
    %v959 = vld [vmem:[#allocation6 + $0xfc] sm:$0xf]
    %v960 = vld [vmem:[#allocation6 + $0x100] sm:$0xf]
    %v961 = vld [vmem:[#allocation6 + $0x104] sm:$0xf]
    %v962 = vld [vmem:[#allocation6 + $0x108] sm:$0xf]
    %v963 = vld [vmem:[#allocation6 + $0x10c] sm:$0xf]
    %v964 = vld [vmem:[#allocation6 + $0x110] sm:$0xf]
    %v965 = vld [vmem:[#allocation6 + $0x114] sm:$0xf]
    %v966 = vld [vmem:[#allocation6 + $0x118] sm:$0xf]
    %v967 = vld [vmem:[#allocation6 + $0x11c] sm:$0xf]
    %v968 = vld [vmem:[#allocation6 + $0x120] sm:$0xf]
    %v969 = vld [vmem:[#allocation6 + $0x124] sm:$0xf]
    %v970 = vld [vmem:[#allocation6 + $0x128] sm:$0xf]
    %v971 = vld [vmem:[#allocation6 + $0x12c] sm:$0xf]
    %v972 = vld [vmem:[#allocation6 + $0x130] sm:$0xf]
    %v973 = vld [vmem:[#allocation6 + $0x134] sm:$0xf]
    %v974 = vld [vmem:[#allocation6 + $0x138] sm:$0xf]
    %v975 = vld [vmem:[#allocation6 + $0x13c] sm:$0xf]
    %v976 = vld [vmem:[#allocation6 + $0x140] sm:$0xf]
    %v977 = vld [vmem:[#allocation6 + $0x144] sm:$0xf]
    %v978 = vld [vmem:[#allocation6 + $0x148] sm:$0xf]
    %v979 = vld [vmem:[#allocation6 + $0x14c] sm:$0xf]
    %v980 = vld [vmem:[#allocation6 + $0x150] sm:$0xf]
    %v981 = vld [vmem:[#allocation6 + $0x154] sm:$0xf]
    %v982 = vld [vmem:[#allocation6 + $0x158] sm:$0xf]
    %v983 = vld [vmem:[#allocation6 + $0x15c] sm:$0xf]
    %v984 = vld [vmem:[#allocation6 + $0x160] sm:$0xf]
    %v985 = vld [vmem:[#allocation6 + $0x164] sm:$0xf]
    %v986 = vld [vmem:[#allocation6 + $0x168] sm:$0xf]
    %v987 = vld [vmem:[#allocation6 + $0x16c] sm:$0xf]
    %v988 = vld [vmem:[#allocation6 + $0x170] sm:$0xf]
    %v989 = vld [vmem:[#allocation6 + $0x174] sm:$0xf]
    %v990 = vld [vmem:[#allocation6 + $0x178] sm:$0xf]
    %v991 = vld [vmem:[#allocation6 + $0x17c] sm:$0xf]
    %v1040 = vunpack.c.l.b16 %v944
    %v1041 = vunpack.c.l.b16 %v945
    %v1042 = vunpack.c.l.b16 %v946
    %v1043 = vunpack.c.l.b16 %v947
    %v1044 = vunpack.c.l.b16 %v948
    %v1045 = vunpack.c.l.b16 %v949
    %v1046 = vunpack.c.l.b16 %v950
    %v1047 = vunpack.c.l.b16 %v951
    %v1048 = vunpack.c.l.b16 %v952
    %v1049 = vunpack.c.l.b16 %v953
    %v1050 = vunpack.c.l.b16 %v954
    %v1051 = vunpack.c.l.b16 %v955
    %v1052 = vunpack.c.l.b16 %v956
    %v1053 = vunpack.c.l.b16 %v957
    %v1054 = vunpack.c.l.b16 %v958
    %v1055 = vunpack.c.l.b16 %v959
    %v1056 = vunpack.c.l.b16 %v960
    %v1057 = vunpack.c.l.b16 %v961
    %v1058 = vunpack.c.l.b16 %v962
    %v1059 = vunpack.c.l.b16 %v963
    %v1060 = vunpack.c.l.b16 %v964
    %v1061 = vunpack.c.l.b16 %v965
    %v1062 = vunpack.c.l.b16 %v966
    %v1063 = vunpack.c.l.b16 %v967
    %v1064 = vunpack.c.l.b16 %v968
    %v1065 = vunpack.c.l.b16 %v969
    %v1066 = vunpack.c.l.b16 %v970
    %v1067 = vunpack.c.l.b16 %v971
    %v1068 = vunpack.c.l.b16 %v972
    %v1069 = vunpack.c.l.b16 %v973
    %v1070 = vunpack.c.l.b16 %v974
    %v1071 = vunpack.c.l.b16 %v975
    %v1072 = vunpack.c.l.b16 %v976
    %v1073 = vunpack.c.l.b16 %v977
    %v1074 = vunpack.c.l.b16 %v978
    %v1075 = vunpack.c.l.b16 %v979
    %v1076 = vunpack.c.l.b16 %v980
    %v1077 = vunpack.c.l.b16 %v981
    %v1078 = vunpack.c.l.b16 %v982
    %v1079 = vunpack.c.l.b16 %v983
    %v1080 = vunpack.c.l.b16 %v984
    %v1081 = vunpack.c.l.b16 %v985
    %v1082 = vunpack.c.l.b16 %v986
    %v1083 = vunpack.c.l.b16 %v987
    %v1084 = vunpack.c.l.b16 %v988
    %v1085 = vunpack.c.l.b16 %v989
    %v1086 = vunpack.c.l.b16 %v990
    %v1087 = vunpack.c.l.b16 %v991
    %v1088 = vpack.c.b16 %v1041, %v1040
    %v1089 = vpack.c.b16 %v1043, %v1042
    %v1090 = vpack.c.b16 %v1045, %v1044
    %v1091 = vpack.c.b16 %v1047, %v1046
    %v1092 = vpack.c.b16 %v1049, %v1048
    %v1093 = vpack.c.b16 %v1051, %v1050
    %v1094 = vpack.c.b16 %v1053, %v1052
    %v1095 = vpack.c.b16 %v1055, %v1054
    %v1096 = vpack.c.b16 %v1057, %v1056
    %v1097 = vpack.c.b16 %v1059, %v1058
    %v1098 = vpack.c.b16 %v1061, %v1060
    %v1099 = vpack.c.b16 %v1063, %v1062
    %v1100 = vpack.c.b16 %v1065, %v1064
    %v1101 = vpack.c.b16 %v1067, %v1066
    %v1102 = vpack.c.b16 %v1069, %v1068
    %v1103 = vpack.c.b16 %v1071, %v1070
    %v1104 = vpack.c.b16 %v1073, %v1072
    %v1105 = vpack.c.b16 %v1075, %v1074
    %v1106 = vpack.c.b16 %v1077, %v1076
    %v1107 = vpack.c.b16 %v1079, %v1078
    %v1108 = vpack.c.b16 %v1081, %v1080
    %v1109 = vpack.c.b16 %v1083, %v1082
    %v1110 = vpack.c.b16 %v1085, %v1084
    %v1111 = vpack.c.b16 %v1087, %v1086
    %1136 = vmatprep.subr.bf16.mxu0 0
    %1137 = vmatpush1.bf16.msra.mxu0 %v1095
    %1138 = vmatprep.subr.bf16.mxu0 0
    %1139 = vmatpush1.bf16.msra.mxu0 %v1094
    %1140 = vmatprep.subr.bf16.mxu0 0
    %1141 = vmatpush1.bf16.msra.mxu0 %v1093
    %1142 = vmatprep.subr.bf16.mxu0 0
    %1143 = vmatpush1.bf16.msra.mxu0 %v1092
    %1144 = vmatprep.subr.bf16.mxu0 0
    %1145 = vmatpush1.bf16.msra.mxu0 %v1091
    %1146 = vmatprep.subr.bf16.mxu0 0
    %1147 = vmatpush1.bf16.msra.mxu0 %v1090
    %1148 = vmatprep.subr.bf16.mxu0 0
    %1149 = vmatpush1.bf16.msra.mxu0 %v1089
    %1150 = vmatprep.subr.bf16.mxu0 0
    %1151 = vmatpush1.bf16.msra.mxu0 %v1088
    %1152 = vmatprep.subr.bf16.mxu0 0
    %1153 = vmatpush2.bf16.msra.mxu0 %v1103
    %1154 = vmatprep.subr.bf16.mxu0 0
    %1155 = vmatpush2.bf16.msra.mxu0 %v1102
    %1156 = vmatprep.subr.bf16.mxu0 0
    %1157 = vmatpush2.bf16.msra.mxu0 %v1101
    %1158 = vmatprep.subr.bf16.mxu0 0
    %1159 = vmatpush2.bf16.msra.mxu0 %v1100
    %1160 = vmatprep.subr.bf16.mxu0 0
    %1161 = vmatpush2.bf16.msra.mxu0 %v1099
    %1162 = vmatprep.subr.bf16.mxu0 0
    %1163 = vmatpush2.bf16.msra.mxu0 %v1098
    %1164 = vmatprep.subr.bf16.mxu0 0
    %1165 = vmatpush2.bf16.msra.mxu0 %v1097
    %1166 = vmatprep.subr.bf16.mxu0 0
    %1167 = vmatpush2.bf16.msra.mxu0 %v1096
    %1168 = vmatprep.mubr.bf16.mxu0 %v823
    %1169 = vmatmul.mubr.bf16.gmra.mxu0 %v772
    %v1170 = vpop.f32.mrf.mxu0
    %v1171 = vadd.f32 0.0, %v1170
    %v1172 = vpop.f32.mrf.mxu0
    %v1173 = vpop.f32.mrf.mxu0
    %v1174 = vadd.f32 0.0, %v1173
    %v1175 = vpop.f32.mrf.mxu0
    %1176 = vmatprep.mubr.bf16.mxu0 %v824
    %1177 = vmatmul.mubr.bf16.gmra.mxu0 %v773
    %v1178 = vpop.f32.mrf.mxu0
    %v1179 = vadd.f32 0.0, %v1178
    %v1180 = vpop.f32.mrf.mxu0
    %v1181 = vpop.f32.mrf.mxu0
    %v1182 = vadd.f32 0.0, %v1181
    %v1183 = vpop.f32.mrf.mxu0
    %1184 = vmatprep.mubr.bf16.mxu0 %v825
    %1185 = vmatmul.mubr.bf16.gmra.mxu0 %v774
    %v1186 = vpop.f32.mrf.mxu0
    %v1187 = vadd.f32 0.0, %v1186
    %v1188 = vpop.f32.mrf.mxu0
    %v1189 = vpop.f32.mrf.mxu0
    %v1190 = vadd.f32 0.0, %v1189
    %v1191 = vpop.f32.mrf.mxu0
    %1192 = vmatprep.mubr.bf16.mxu0 %v826
    %1193 = vmatmul.mubr.bf16.gmra.mxu0 %v775
    %v1194 = vpop.f32.mrf.mxu0
    %v1195 = vadd.f32 0.0, %v1194
    %v1196 = vpop.f32.mrf.mxu0
    %v1197 = vpop.f32.mrf.mxu0
    %v1198 = vadd.f32 0.0, %v1197
    %v1199 = vpop.f32.mrf.mxu0
    %1200 = vmatprep.mubr.bf16.mxu0 %v827
    %1201 = vmatmul.mubr.bf16.gmra.mxu0 %v776
    %v1202 = vpop.f32.mrf.mxu0
    %v1203 = vadd.f32 0.0, %v1202
    %v1204 = vpop.f32.mrf.mxu0
    %v1205 = vpop.f32.mrf.mxu0
    %v1206 = vadd.f32 0.0, %v1205
    %v1207 = vpop.f32.mrf.mxu0
    %1208 = vmatprep.mubr.bf16.mxu0 %v828
    %1209 = vmatmul.mubr.bf16.gmra.mxu0 %v777
    %v1210 = vpop.f32.mrf.mxu0
    %v1211 = vadd.f32 0.0, %v1210
    %v1212 = vpop.f32.mrf.mxu0
    %v1213 = vpop.f32.mrf.mxu0
    %v1214 = vadd.f32 0.0, %v1213
    %v1215 = vpop.f32.mrf.mxu0
    %1216 = vmatprep.mubr.bf16.mxu0 %v829
    %1217 = vmatmul.mubr.bf16.gmra.mxu0 %v778
    %v1218 = vpop.f32.mrf.mxu0
    %v1219 = vadd.f32 0.0, %v1218
    %v1220 = vpop.f32.mrf.mxu0
    %v1221 = vpop.f32.mrf.mxu0
    %v1222 = vadd.f32 0.0, %v1221
    %v1223 = vpop.f32.mrf.mxu0
    %1224 = vmatprep.mubr.bf16.mxu0 %v830
    %1225 = vmatmul.mubr.bf16.gmra.mxu0 %v779
    %v1226 = vpop.f32.mrf.mxu0
    %v1227 = vadd.f32 0.0, %v1226
    %v1228 = vpop.f32.mrf.mxu0
    %v1229 = vpop.f32.mrf.mxu0
    %v1230 = vadd.f32 0.0, %v1229
    %v1231 = vpop.f32.mrf.mxu0
    %1232 = vmatprep.mubr.bf16.mxu0 %v831
    %1233 = vmatmul.mubr.bf16.gmra.mxu0 %v780
    %v1234 = vpop.f32.mrf.mxu0
    %v1235 = vadd.f32 0.0, %v1234
    %v1236 = vpop.f32.mrf.mxu0
    %v1237 = vpop.f32.mrf.mxu0
    %v1238 = vadd.f32 0.0, %v1237
    %v1239 = vpop.f32.mrf.mxu0
    %1240 = vmatprep.mubr.bf16.mxu0 %v832
    %1241 = vmatmul.mubr.bf16.gmra.mxu0 %v781
    %v1242 = vpop.f32.mrf.mxu0
    %v1243 = vadd.f32 0.0, %v1242
    %v1244 = vpop.f32.mrf.mxu0
    %v1245 = vpop.f32.mrf.mxu0
    %v1246 = vadd.f32 0.0, %v1245
    %v1247 = vpop.f32.mrf.mxu0
    %1248 = vmatprep.mubr.bf16.mxu0 %v833
    %1249 = vmatmul.mubr.bf16.gmra.mxu0 %v782
    %v1250 = vpop.f32.mrf.mxu0
    %v1251 = vadd.f32 0.0, %v1250
    %v1252 = vpop.f32.mrf.mxu0
    %v1253 = vpop.f32.mrf.mxu0
    %v1254 = vadd.f32 0.0, %v1253
    %v1255 = vpop.f32.mrf.mxu0
    %1256 = vmatprep.mubr.bf16.mxu0 %v834
    %1257 = vmatmul.mubr.bf16.gmra.mxu0 %v783
    %v1258 = vpop.f32.mrf.mxu0
    %v1259 = vadd.f32 0.0, %v1258
    %v1260 = vpop.f32.mrf.mxu0
    %v1261 = vpop.f32.mrf.mxu0
    %v1262 = vadd.f32 0.0, %v1261
    %v1263 = vpop.f32.mrf.mxu0
    %1264 = vmatprep.mubr.bf16.mxu0 %v835
    %1265 = vmatmul.mubr.bf16.gmra.mxu0 %v784
    %v1266 = vpop.f32.mrf.mxu0
    %v1267 = vadd.f32 0.0, %v1266
    %v1268 = vpop.f32.mrf.mxu0
    %v1269 = vpop.f32.mrf.mxu0
    %v1270 = vadd.f32 0.0, %v1269
    %v1271 = vpop.f32.mrf.mxu0
    %1272 = vmatprep.mubr.bf16.mxu0 %v836
    %1273 = vmatmul.mubr.bf16.gmra.mxu0 %v785
    %v1274 = vpop.f32.mrf.mxu0
    %v1275 = vadd.f32 0.0, %v1274
    %v1276 = vpop.f32.mrf.mxu0
    %v1277 = vpop.f32.mrf.mxu0
    %v1278 = vadd.f32 0.0, %v1277
    %v1279 = vpop.f32.mrf.mxu0
    %1280 = vmatprep.mubr.bf16.mxu0 %v837
    %1281 = vmatmul.mubr.bf16.gmra.mxu0 %v786
    %v1282 = vpop.f32.mrf.mxu0
    %v1283 = vadd.f32 0.0, %v1282
    %v1284 = vpop.f32.mrf.mxu0
    %v1285 = vpop.f32.mrf.mxu0
    %v1286 = vadd.f32 0.0, %v1285
    %v1287 = vpop.f32.mrf.mxu0
    %1288 = vmatprep.mubr.bf16.mxu0 %v838
    %1289 = vmatmul.mubr.bf16.gmra.mxu0 %v787
    %v1290 = vpop.f32.mrf.mxu0
    %v1291 = vadd.f32 0.0, %v1290
    %v1292 = vpop.f32.mrf.mxu0
    %v1293 = vpop.f32.mrf.mxu0
    %v1294 = vadd.f32 0.0, %v1293
    %v1295 = vpop.f32.mrf.mxu0
    %1296 = vmatprep.mubr.bf16.mxu0 %v892
    %1297 = vmatmul.mubr.bf16.gmra.mxu0 %v889
    %v1298 = vpop.f32.mrf.mxu0
    %v1299 = vadd.f32 0.0, %v1298
    %v1300 = vpop.f32.mrf.mxu0
    %v1301 = vpop.f32.mrf.mxu0
    %v1302 = vadd.f32 0.0, %v1301
    %v1303 = vpop.f32.mrf.mxu0
    %1304 = vdwg.mxu0
    %1305 = vmatprep.subr.bf16.mxu0 0
    %1306 = vmatpush1.bf16.msra.mxu0 %v1111
    %1307 = vmatprep.subr.bf16.mxu0 0
    %1308 = vmatpush1.bf16.msra.mxu0 %v1110
    %1309 = vmatprep.subr.bf16.mxu0 0
    %1310 = vmatpush1.bf16.msra.mxu0 %v1109
    %1311 = vmatprep.subr.bf16.mxu0 0
    %1312 = vmatpush1.bf16.msra.mxu0 %v1108
    %1313 = vmatprep.subr.bf16.mxu0 0
    %1314 = vmatpush1.bf16.msra.mxu0 %v1107
    %1315 = vmatprep.subr.bf16.mxu0 0
    %1316 = vmatpush1.bf16.msra.mxu0 %v1106
    %1317 = vmatprep.subr.bf16.mxu0 0
    %1318 = vmatpush1.bf16.msra.mxu0 %v1105
    %1319 = vmatprep.subr.bf16.mxu0 0
    %1320 = vmatpush1.bf16.msra.mxu0 %v1104
    %1321 = vmatprep.subr.bf16.mxu0 0
    %1322 = vmatpush2.bf16.msra.mxu0 0
    %1323 = vmatprep.subr.bf16.mxu0 0
    %1324 = vmatpush2.bf16.msra.mxu0 0
    %1325 = vmatprep.subr.bf16.mxu0 0
    %1326 = vmatpush2.bf16.msra.mxu0 0
    %1327 = vmatprep.subr.bf16.mxu0 0
    %1328 = vmatpush2.bf16.msra.mxu0 0
    %1329 = vmatprep.subr.bf16.mxu0 0
    %1330 = vmatpush2.bf16.msra.mxu0 0
    %1331 = vmatprep.subr.bf16.mxu0 0
    %1332 = vmatpush2.bf16.msra.mxu0 0
    %1333 = vmatprep.subr.bf16.mxu0 0
    %1334 = vmatpush2.bf16.msra.mxu0 0
    %1335 = vmatprep.subr.bf16.mxu0 0
    %1336 = vmatpush2.bf16.msra.mxu0 0
    %1337 = vmatprep.mubr.bf16.mxu0 0
    %1338 = vmatmul.mubr.bf16.gmra.mxu0 %v927
    %v1339 = vpop.f32.mrf.mxu0
    %v1340 = vadd.f32 %v1171, %v1339
    %v1341 = vpop.f32.mrf.mxu0
    %v1342 = vpop.f32.mrf.mxu0
    %v1343 = vadd.f32 %v1174, %v1342
    %v1344 = vpop.f32.mrf.mxu0
    %1345 = vmatprep.mubr.bf16.mxu0 0
    %1346 = vmatmul.mubr.bf16.gmra.mxu0 %v928
    %v1347 = vpop.f32.mrf.mxu0
    %v1348 = vadd.f32 %v1179, %v1347
    %v1349 = vpop.f32.mrf.mxu0
    %v1350 = vpop.f32.mrf.mxu0
    %v1351 = vadd.f32 %v1182, %v1350
    %v1352 = vpop.f32.mrf.mxu0
    %1353 = vmatprep.mubr.bf16.mxu0 0
    %1354 = vmatmul.mubr.bf16.gmra.mxu0 %v929
    %v1355 = vpop.f32.mrf.mxu0
    %v1356 = vadd.f32 %v1187, %v1355
    %v1357 = vpop.f32.mrf.mxu0
    %v1358 = vpop.f32.mrf.mxu0
    %v1359 = vadd.f32 %v1190, %v1358
    %v1360 = vpop.f32.mrf.mxu0
    %1361 = vmatprep.mubr.bf16.mxu0 0
    %1362 = vmatmul.mubr.bf16.gmra.mxu0 %v930
    %v1363 = vpop.f32.mrf.mxu0
    %v1364 = vadd.f32 %v1195, %v1363
    %v1365 = vpop.f32.mrf.mxu0
    %v1366 = vpop.f32.mrf.mxu0
    %v1367 = vadd.f32 %v1198, %v1366
    %v1368 = vpop.f32.mrf.mxu0
    %1369 = vmatprep.mubr.bf16.mxu0 0
    %1370 = vmatmul.mubr.bf16.gmra.mxu0 %v931
    %v1371 = vpop.f32.mrf.mxu0
    %v1372 = vadd.f32 %v1203, %v1371
    %v1373 = vpop.f32.mrf.mxu0
    %v1374 = vpop.f32.mrf.mxu0
    %v1375 = vadd.f32 %v1206, %v1374
    %v1376 = vpop.f32.mrf.mxu0
    %1377 = vmatprep.mubr.bf16.mxu0 0
    %1378 = vmatmul.mubr.bf16.gmra.mxu0 %v932
    %v1379 = vpop.f32.mrf.mxu0
    %v1380 = vadd.f32 %v1211, %v1379
    %v1381 = vpop.f32.mrf.mxu0
    %v1382 = vpop.f32.mrf.mxu0
    %v1383 = vadd.f32 %v1214, %v1382
    %v1384 = vpop.f32.mrf.mxu0
    %1385 = vmatprep.mubr.bf16.mxu0 0
    %1386 = vmatmul.mubr.bf16.gmra.mxu0 %v933
    %v1387 = vpop.f32.mrf.mxu0
    %v1388 = vadd.f32 %v1219, %v1387
    %v1389 = vpop.f32.mrf.mxu0
    %v1390 = vpop.f32.mrf.mxu0
    %v1391 = vadd.f32 %v1222, %v1390
    %v1392 = vpop.f32.mrf.mxu0
    %1393 = vmatprep.mubr.bf16.mxu0 0
    %1394 = vmatmul.mubr.bf16.gmra.mxu0 %v934
    %v1395 = vpop.f32.mrf.mxu0
    %v1396 = vadd.f32 %v1227, %v1395
    %v1397 = vpop.f32.mrf.mxu0
    %v1398 = vpop.f32.mrf.mxu0
    %v1399 = vadd.f32 %v1230, %v1398
    %v1400 = vpop.f32.mrf.mxu0
    %1401 = vmatprep.mubr.bf16.mxu0 0
    %1402 = vmatmul.mubr.bf16.gmra.mxu0 %v935
    %v1403 = vpop.f32.mrf.mxu0
    %v1404 = vadd.f32 %v1235, %v1403
    %v1405 = vpop.f32.mrf.mxu0
    %v1406 = vpop.f32.mrf.mxu0
    %v1407 = vadd.f32 %v1238, %v1406
    %v1408 = vpop.f32.mrf.mxu0
    %1409 = vmatprep.mubr.bf16.mxu0 0
    %1410 = vmatmul.mubr.bf16.gmra.mxu0 %v936
    %v1411 = vpop.f32.mrf.mxu0
    %v1412 = vadd.f32 %v1243, %v1411
    %v1413 = vpop.f32.mrf.mxu0
    %v1414 = vpop.f32.mrf.mxu0
    %v1415 = vadd.f32 %v1246, %v1414
    %v1416 = vpop.f32.mrf.mxu0
    %1417 = vmatprep.mubr.bf16.mxu0 0
    %1418 = vmatmul.mubr.bf16.gmra.mxu0 %v937
    %v1419 = vpop.f32.mrf.mxu0
    %v1420 = vadd.f32 %v1251, %v1419
    %v1421 = vpop.f32.mrf.mxu0
    %v1422 = vpop.f32.mrf.mxu0
    %v1423 = vadd.f32 %v1254, %v1422
    %v1424 = vpop.f32.mrf.mxu0
    %1425 = vmatprep.mubr.bf16.mxu0 0
    %1426 = vmatmul.mubr.bf16.gmra.mxu0 %v938
    %v1427 = vpop.f32.mrf.mxu0
    %v1428 = vadd.f32 %v1259, %v1427
    %v1429 = vpop.f32.mrf.mxu0
    %v1430 = vpop.f32.mrf.mxu0
    %v1431 = vadd.f32 %v1262, %v1430
    %v1432 = vpop.f32.mrf.mxu0
    %1433 = vmatprep.mubr.bf16.mxu0 0
    %1434 = vmatmul.mubr.bf16.gmra.mxu0 %v939
    %v1435 = vpop.f32.mrf.mxu0
    %v1436 = vadd.f32 %v1267, %v1435
    %v1437 = vpop.f32.mrf.mxu0
    %v1438 = vpop.f32.mrf.mxu0
    %v1439 = vadd.f32 %v1270, %v1438
    %v1440 = vpop.f32.mrf.mxu0
    %1441 = vmatprep.mubr.bf16.mxu0 0
    %1442 = vmatmul.mubr.bf16.gmra.mxu0 %v940
    %v1443 = vpop.f32.mrf.mxu0
    %v1444 = vadd.f32 %v1275, %v1443
    %v1445 = vpop.f32.mrf.mxu0
    %v1446 = vpop.f32.mrf.mxu0
    %v1447 = vadd.f32 %v1278, %v1446
    %v1448 = vpop.f32.mrf.mxu0
    %1449 = vmatprep.mubr.bf16.mxu0 0
    %1450 = vmatmul.mubr.bf16.gmra.mxu0 %v941
    %v1451 = vpop.f32.mrf.mxu0
    %v1452 = vadd.f32 %v1283, %v1451
    %v1453 = vpop.f32.mrf.mxu0
    %v1454 = vpop.f32.mrf.mxu0
    %v1455 = vadd.f32 %v1286, %v1454
    %v1456 = vpop.f32.mrf.mxu0
    %1457 = vmatprep.mubr.bf16.mxu0 0
    %1458 = vmatmul.mubr.bf16.gmra.mxu0 %v942
    %v1459 = vpop.f32.mrf.mxu0
    %v1460 = vadd.f32 %v1291, %v1459
    %v1461 = vpop.f32.mrf.mxu0
    %v1462 = vpop.f32.mrf.mxu0
    %v1463 = vadd.f32 %v1294, %v1462
    %v1464 = vpop.f32.mrf.mxu0
    %1465 = vmatprep.mubr.bf16.mxu0 0
    %1466 = vmatmul.mubr.bf16.gmra.mxu0 %v943
    %v1467 = vpop.f32.mrf.mxu0
    %v1468 = vadd.f32 %v1299, %v1467
    %v1469 = vpop.f32.mrf.mxu0
    %v1470 = vpop.f32.mrf.mxu0
    %v1471 = vadd.f32 %v1302, %v1470
    %v1472 = vpop.f32.mrf.mxu0
    %1473 = vdwg.mxu0
    %v1522 = vunpack.c.l.b16 %v839
    %v1523 = vunpack.c.l.b16 %v840
    %v1524 = vunpack.c.l.b16 %v841
    %v1525 = vunpack.c.l.b16 %v842
    %v1526 = vunpack.c.l.b16 %v843
    %v1527 = vunpack.c.l.b16 %v844
    %v1528 = vunpack.c.l.b16 %v845
    %v1529 = vunpack.c.l.b16 %v846
    %v1530 = vunpack.c.l.b16 %v847
    %v1531 = vunpack.c.l.b16 %v848
    %v1532 = vunpack.c.l.b16 %v849
    %v1533 = vunpack.c.l.b16 %v850
    %v1534 = vunpack.c.l.b16 %v851
    %v1535 = vunpack.c.l.b16 %v852
    %v1536 = vunpack.c.l.b16 %v853
    %v1537 = vunpack.c.l.b16 %v854
    %v1538 = vunpack.c.l.b16 %v855
    %v1539 = vunpack.c.l.b16 %v856
    %v1540 = vunpack.c.l.b16 %v857
    %v1541 = vunpack.c.l.b16 %v858
    %v1542 = vunpack.c.l.b16 %v859
    %v1543 = vunpack.c.l.b16 %v860
    %v1544 = vunpack.c.l.b16 %v861
    %v1545 = vunpack.c.l.b16 %v862
    %v1546 = vunpack.c.l.b16 %v863
    %v1547 = vunpack.c.l.b16 %v864
    %v1548 = vunpack.c.l.b16 %v865
    %v1549 = vunpack.c.l.b16 %v866
    %v1550 = vunpack.c.l.b16 %v867
    %v1551 = vunpack.c.l.b16 %v868
    %v1552 = vunpack.c.l.b16 %v869
    %v1553 = vunpack.c.l.b16 %v870
    %v1554 = vunpack.c.l.b16 %v871
    %v1555 = vunpack.c.l.b16 %v872
    %v1556 = vunpack.c.l.b16 %v873
    %v1557 = vunpack.c.l.b16 %v874
    %v1558 = vunpack.c.l.b16 %v875
    %v1559 = vunpack.c.l.b16 %v876
    %v1560 = vunpack.c.l.b16 %v877
    %v1561 = vunpack.c.l.b16 %v878
    %v1562 = vunpack.c.l.b16 %v879
    %v1563 = vunpack.c.l.b16 %v880
    %v1564 = vunpack.c.l.b16 %v881
    %v1565 = vunpack.c.l.b16 %v882
    %v1566 = vunpack.c.l.b16 %v883
    %v1567 = vunpack.c.l.b16 %v884
    %v1568 = vunpack.c.l.b16 %v885
    %v1569 = vunpack.c.l.b16 %v886
    %v1570 = vpack.c.b16 %v1523, %v1522
    %v1571 = vpack.c.b16 %v1525, %v1524
    %v1572 = vpack.c.b16 %v1527, %v1526
    %v1573 = vpack.c.b16 %v1529, %v1528
    %v1574 = vpack.c.b16 %v1531, %v1530
    %v1575 = vpack.c.b16 %v1533, %v1532
    %v1576 = vpack.c.b16 %v1535, %v1534
    %v1577 = vpack.c.b16 %v1537, %v1536
    %v1578 = vpack.c.b16 %v1539, %v1538
    %v1579 = vpack.c.b16 %v1541, %v1540
    %v1580 = vpack.c.b16 %v1543, %v1542
    %v1581 = vpack.c.b16 %v1545, %v1544
    %v1582 = vpack.c.b16 %v1547, %v1546
    %v1583 = vpack.c.b16 %v1549, %v1548
    %v1584 = vpack.c.b16 %v1551, %v1550
    %v1585 = vpack.c.b16 %v1553, %v1552
    %v1586 = vpack.c.b16 %v1555, %v1554
    %v1587 = vpack.c.b16 %v1557, %v1556
    %v1588 = vpack.c.b16 %v1559, %v1558
    %v1589 = vpack.c.b16 %v1561, %v1560
    %v1590 = vpack.c.b16 %v1563, %v1562
    %v1591 = vpack.c.b16 %v1565, %v1564
    %v1592 = vpack.c.b16 %v1567, %v1566
    %v1593 = vpack.c.b16 %v1569, %v1568
    %1618 = vmatprep.subr.bf16.mxu0 0
    %1619 = vmatpush1.bf16.msra.mxu0 %v1577
    %1620 = vmatprep.subr.bf16.mxu0 0
    %1621 = vmatpush1.bf16.msra.mxu0 %v1576
    %1622 = vmatprep.subr.bf16.mxu0 0
    %1623 = vmatpush1.bf16.msra.mxu0 %v1575
    %1624 = vmatprep.subr.bf16.mxu0 0
    %1625 = vmatpush1.bf16.msra.mxu0 %v1574
    %1626 = vmatprep.subr.bf16.mxu0 0
    %1627 = vmatpush1.bf16.msra.mxu0 %v1573
    %1628 = vmatprep.subr.bf16.mxu0 0
    %1629 = vmatpush1.bf16.msra.mxu0 %v1572
    %1630 = vmatprep.subr.bf16.mxu0 0
    %1631 = vmatpush1.bf16.msra.mxu0 %v1571
    %1632 = vmatprep.subr.bf16.mxu0 0
    %1633 = vmatpush1.bf16.msra.mxu0 %v1570
    %1634 = vmatprep.subr.bf16.mxu0 0
    %1635 = vmatpush2.bf16.msra.mxu0 %v1585
    %1636 = vmatprep.subr.bf16.mxu0 0
    %1637 = vmatpush2.bf16.msra.mxu0 %v1584
    %1638 = vmatprep.subr.bf16.mxu0 0
    %1639 = vmatpush2.bf16.msra.mxu0 %v1583
    %1640 = vmatprep.subr.bf16.mxu0 0
    %1641 = vmatpush2.bf16.msra.mxu0 %v1582
    %1642 = vmatprep.subr.bf16.mxu0 0
    %1643 = vmatpush2.bf16.msra.mxu0 %v1581
    %1644 = vmatprep.subr.bf16.mxu0 0
    %1645 = vmatpush2.bf16.msra.mxu0 %v1580
    %1646 = vmatprep.subr.bf16.mxu0 0
    %1647 = vmatpush2.bf16.msra.mxu0 %v1579
    %1648 = vmatprep.subr.bf16.mxu0 0
    %1649 = vmatpush2.bf16.msra.mxu0 %v1578
    %1650 = vmatprep.mubr.bf16.mxu0 %v771
    %1651 = vmatmul.mubr.bf16.gmra.mxu0 %v720
    %v1652 = vpop.f32.mrf.mxu0
    %v1653 = vadd.f32 %v1340, %v1652
    %v1654 = vpop.f32.mrf.mxu0
    %v1655 = vpop.f32.mrf.mxu0
    %v1656 = vadd.f32 %v1343, %v1655
    %v1657 = vpop.f32.mrf.mxu0
    %1658 = vmatprep.mubr.bf16.mxu0 %v772
    %1659 = vmatmul.mubr.bf16.gmra.mxu0 %v721
    %v1660 = vpop.f32.mrf.mxu0
    %v1661 = vadd.f32 %v1348, %v1660
    %v1662 = vpop.f32.mrf.mxu0
    %v1663 = vpop.f32.mrf.mxu0
    %v1664 = vadd.f32 %v1351, %v1663
    %v1665 = vpop.f32.mrf.mxu0
    %1666 = vmatprep.mubr.bf16.mxu0 %v773
    %1667 = vmatmul.mubr.bf16.gmra.mxu0 %v722
    %v1668 = vpop.f32.mrf.mxu0
    %v1669 = vadd.f32 %v1356, %v1668
    %v1670 = vpop.f32.mrf.mxu0
    %v1671 = vpop.f32.mrf.mxu0
    %v1672 = vadd.f32 %v1359, %v1671
    %v1673 = vpop.f32.mrf.mxu0
    %1674 = vmatprep.mubr.bf16.mxu0 %v774
    %1675 = vmatmul.mubr.bf16.gmra.mxu0 %v723
    %v1676 = vpop.f32.mrf.mxu0
    %v1677 = vadd.f32 %v1364, %v1676
    %v1678 = vpop.f32.mrf.mxu0
    %v1679 = vpop.f32.mrf.mxu0
    %v1680 = vadd.f32 %v1367, %v1679
    %v1681 = vpop.f32.mrf.mxu0
    %1682 = vmatprep.mubr.bf16.mxu0 %v775
    %1683 = vmatmul.mubr.bf16.gmra.mxu0 %v724
    %v1684 = vpop.f32.mrf.mxu0
    %v1685 = vadd.f32 %v1372, %v1684
    %v1686 = vpop.f32.mrf.mxu0
    %v1687 = vpop.f32.mrf.mxu0
    %v1688 = vadd.f32 %v1375, %v1687
    %v1689 = vpop.f32.mrf.mxu0
    %1690 = vmatprep.mubr.bf16.mxu0 %v776
    %1691 = vmatmul.mubr.bf16.gmra.mxu0 %v725
    %v1692 = vpop.f32.mrf.mxu0
    %v1693 = vadd.f32 %v1380, %v1692
    %v1694 = vpop.f32.mrf.mxu0
    %v1695 = vpop.f32.mrf.mxu0
    %v1696 = vadd.f32 %v1383, %v1695
    %v1697 = vpop.f32.mrf.mxu0
    %1698 = vmatprep.mubr.bf16.mxu0 %v777
    %1699 = vmatmul.mubr.bf16.gmra.mxu0 %v726
    %v1700 = vpop.f32.mrf.mxu0
    %v1701 = vadd.f32 %v1388, %v1700
    %v1702 = vpop.f32.mrf.mxu0
    %v1703 = vpop.f32.mrf.mxu0
    %v1704 = vadd.f32 %v1391, %v1703
    %v1705 = vpop.f32.mrf.mxu0
    %1706 = vmatprep.mubr.bf16.mxu0 %v778
    %1707 = vmatmul.mubr.bf16.gmra.mxu0 %v727
    %v1708 = vpop.f32.mrf.mxu0
    %v1709 = vadd.f32 %v1396, %v1708
    %v1710 = vpop.f32.mrf.mxu0
    %v1711 = vpop.f32.mrf.mxu0
    %v1712 = vadd.f32 %v1399, %v1711
    %v1713 = vpop.f32.mrf.mxu0
    %1714 = vmatprep.mubr.bf16.mxu0 %v779
    %1715 = vmatmul.mubr.bf16.gmra.mxu0 %v728
    %v1716 = vpop.f32.mrf.mxu0
    %v1717 = vadd.f32 %v1404, %v1716
    %v1718 = vpop.f32.mrf.mxu0
    %v1719 = vpop.f32.mrf.mxu0
    %v1720 = vadd.f32 %v1407, %v1719
    %v1721 = vpop.f32.mrf.mxu0
    %1722 = vmatprep.mubr.bf16.mxu0 %v780
    %1723 = vmatmul.mubr.bf16.gmra.mxu0 %v729
    %v1724 = vpop.f32.mrf.mxu0
    %v1725 = vadd.f32 %v1412, %v1724
    %v1726 = vpop.f32.mrf.mxu0
    %v1727 = vpop.f32.mrf.mxu0
    %v1728 = vadd.f32 %v1415, %v1727
    %v1729 = vpop.f32.mrf.mxu0
    %1730 = vmatprep.mubr.bf16.mxu0 %v781
    %1731 = vmatmul.mubr.bf16.gmra.mxu0 %v730
    %v1732 = vpop.f32.mrf.mxu0
    %v1733 = vadd.f32 %v1420, %v1732
    %v1734 = vpop.f32.mrf.mxu0
    %v1735 = vpop.f32.mrf.mxu0
    %v1736 = vadd.f32 %v1423, %v1735
    %v1737 = vpop.f32.mrf.mxu0
    %1738 = vmatprep.mubr.bf16.mxu0 %v782
    %1739 = vmatmul.mubr.bf16.gmra.mxu0 %v731
    %v1740 = vpop.f32.mrf.mxu0
    %v1741 = vadd.f32 %v1428, %v1740
    %v1742 = vpop.f32.mrf.mxu0
    %v1743 = vpop.f32.mrf.mxu0
    %v1744 = vadd.f32 %v1431, %v1743
    %v1745 = vpop.f32.mrf.mxu0
    %1746 = vmatprep.mubr.bf16.mxu0 %v783
    %1747 = vmatmul.mubr.bf16.gmra.mxu0 %v732
    %v1748 = vpop.f32.mrf.mxu0
    %v1749 = vadd.f32 %v1436, %v1748
    %v1750 = vpop.f32.mrf.mxu0
    %v1751 = vpop.f32.mrf.mxu0
    %v1752 = vadd.f32 %v1439, %v1751
    %v1753 = vpop.f32.mrf.mxu0
    %1754 = vmatprep.mubr.bf16.mxu0 %v784
    %1755 = vmatmul.mubr.bf16.gmra.mxu0 %v733
    %v1756 = vpop.f32.mrf.mxu0
    %v1757 = vadd.f32 %v1444, %v1756
    %v1758 = vpop.f32.mrf.mxu0
    %v1759 = vpop.f32.mrf.mxu0
    %v1760 = vadd.f32 %v1447, %v1759
    %v1761 = vpop.f32.mrf.mxu0
    %1762 = vmatprep.mubr.bf16.mxu0 %v785
    %1763 = vmatmul.mubr.bf16.gmra.mxu0 %v734
    %v1764 = vpop.f32.mrf.mxu0
    %v1765 = vadd.f32 %v1452, %v1764
    %v1766 = vpop.f32.mrf.mxu0
    %v1767 = vpop.f32.mrf.mxu0
    %v1768 = vadd.f32 %v1455, %v1767
    %v1769 = vpop.f32.mrf.mxu0
    %1770 = vmatprep.mubr.bf16.mxu0 %v786
    %1771 = vmatmul.mubr.bf16.gmra.mxu0 %v735
    %v1772 = vpop.f32.mrf.mxu0
    %v1773 = vadd.f32 %v1460, %v1772
    %v1774 = vpop.f32.mrf.mxu0
    %v1775 = vpop.f32.mrf.mxu0
    %v1776 = vadd.f32 %v1463, %v1775
    %v1777 = vpop.f32.mrf.mxu0
    %1778 = vmatprep.mubr.bf16.mxu0 %v787
    %1779 = vmatmul.mubr.bf16.gmra.mxu0 %v736
    %v1780 = vpop.f32.mrf.mxu0
    %v1781 = vadd.f32 %v1468, %v1780
    %v1782 = vpop.f32.mrf.mxu0
    %v1783 = vpop.f32.mrf.mxu0
    %v1784 = vadd.f32 %v1471, %v1783
    %v1785 = vpop.f32.mrf.mxu0
    %1786 = vdwg.mxu0
    %1787 = vmatprep.subr.bf16.mxu0 0
    %1788 = vmatpush1.bf16.msra.mxu0 %v1593
    %1789 = vmatprep.subr.bf16.mxu0 0
    %1790 = vmatpush1.bf16.msra.mxu0 %v1592
    %1791 = vmatprep.subr.bf16.mxu0 0
    %1792 = vmatpush1.bf16.msra.mxu0 %v1591
    %1793 = vmatprep.subr.bf16.mxu0 0
    %1794 = vmatpush1.bf16.msra.mxu0 %v1590
    %1795 = vmatprep.subr.bf16.mxu0 0
    %1796 = vmatpush1.bf16.msra.mxu0 %v1589
    %1797 = vmatprep.subr.bf16.mxu0 0
    %1798 = vmatpush1.bf16.msra.mxu0 %v1588
    %1799 = vmatprep.subr.bf16.mxu0 0
    %1800 = vmatpush1.bf16.msra.mxu0 %v1587
    %1801 = vmatprep.subr.bf16.mxu0 0
    %1802 = vmatpush1.bf16.msra.mxu0 %v1586
    %1803 = vmatprep.subr.bf16.mxu0 0
    %1804 = vmatpush2.bf16.msra.mxu0 0
    %1805 = vmatprep.subr.bf16.mxu0 0
    %1806 = vmatpush2.bf16.msra.mxu0 0
    %1807 = vmatprep.subr.bf16.mxu0 0
    %1808 = vmatpush2.bf16.msra.mxu0 0
    %1809 = vmatprep.subr.bf16.mxu0 0
    %1810 = vmatpush2.bf16.msra.mxu0 0
    %1811 = vmatprep.subr.bf16.mxu0 0
    %1812 = vmatpush2.bf16.msra.mxu0 0
    %1813 = vmatprep.subr.bf16.mxu0 0
    %1814 = vmatpush2.bf16.msra.mxu0 0
    %1815 = vmatprep.subr.bf16.mxu0 0
    %1816 = vmatpush2.bf16.msra.mxu0 0
    %1817 = vmatprep.subr.bf16.mxu0 0
    %1818 = vmatpush2.bf16.msra.mxu0 0
    %1819 = vmatprep.mubr.bf16.mxu0 0
    %1820 = vmatmul.mubr.bf16.gmra.mxu0 %v822
    %v1821 = vpop.f32.mrf.mxu0
    %v1822 = vadd.f32 %v1653, %v1821
    %v1823 = vpop.f32.mrf.mxu0
    %v1824 = vpop.f32.mrf.mxu0
    %v1825 = vadd.f32 %v1656, %v1824
    %v1826 = vpop.f32.mrf.mxu0
    %1827 = vmatprep.mubr.bf16.mxu0 0
    %1828 = vmatmul.mubr.bf16.gmra.mxu0 %v823
    %v1829 = vpop.f32.mrf.mxu0
    %v1830 = vadd.f32 %v1661, %v1829
    %v1831 = vpop.f32.mrf.mxu0
    %v1832 = vpop.f32.mrf.mxu0
    %v1833 = vadd.f32 %v1664, %v1832
    %v1834 = vpop.f32.mrf.mxu0
    %1835 = vmatprep.mubr.bf16.mxu0 0
    %1836 = vmatmul.mubr.bf16.gmra.mxu0 %v824
    %v1837 = vpop.f32.mrf.mxu0
    %v1838 = vadd.f32 %v1669, %v1837
    %v1839 = vpop.f32.mrf.mxu0
    %v1840 = vpop.f32.mrf.mxu0
    %v1841 = vadd.f32 %v1672, %v1840
    %v1842 = vpop.f32.mrf.mxu0
    %1843 = vmatprep.mubr.bf16.mxu0 0
    %1844 = vmatmul.mubr.bf16.gmra.mxu0 %v825
    %v1845 = vpop.f32.mrf.mxu0
    %v1846 = vadd.f32 %v1677, %v1845
    %v1847 = vpop.f32.mrf.mxu0
    %v1848 = vpop.f32.mrf.mxu0
    %v1849 = vadd.f32 %v1680, %v1848
    %v1850 = vpop.f32.mrf.mxu0
    %1851 = vmatprep.mubr.bf16.mxu0 0
    %1852 = vmatmul.mubr.bf16.gmra.mxu0 %v826
    %v1853 = vpop.f32.mrf.mxu0
    %v1854 = vadd.f32 %v1685, %v1853
    %v1855 = vpop.f32.mrf.mxu0
    %v1856 = vpop.f32.mrf.mxu0
    %v1857 = vadd.f32 %v1688, %v1856
    %v1858 = vpop.f32.mrf.mxu0
    %1859 = vmatprep.mubr.bf16.mxu0 0
    %1860 = vmatmul.mubr.bf16.gmra.mxu0 %v827
    %v1861 = vpop.f32.mrf.mxu0
    %v1862 = vadd.f32 %v1693, %v1861
    %v1863 = vpop.f32.mrf.mxu0
    %v1864 = vpop.f32.mrf.mxu0
    %v1865 = vadd.f32 %v1696, %v1864
    %v1866 = vpop.f32.mrf.mxu0
    %1867 = vmatprep.mubr.bf16.mxu0 0
    %1868 = vmatmul.mubr.bf16.gmra.mxu0 %v828
    %v1869 = vpop.f32.mrf.mxu0
    %v1870 = vadd.f32 %v1701, %v1869
    %v1871 = vpop.f32.mrf.mxu0
    %v1872 = vpop.f32.mrf.mxu0
    %v1873 = vadd.f32 %v1704, %v1872
    %v1874 = vpop.f32.mrf.mxu0
    %1875 = vmatprep.mubr.bf16.mxu0 0
    %1876 = vmatmul.mubr.bf16.gmra.mxu0 %v829
    %v1877 = vpop.f32.mrf.mxu0
    %v1878 = vadd.f32 %v1709, %v1877
    %v1879 = vpop.f32.mrf.mxu0
    %v1880 = vpop.f32.mrf.mxu0
    %v1881 = vadd.f32 %v1712, %v1880
    %v1882 = vpop.f32.mrf.mxu0
    %1883 = vmatprep.mubr.bf16.mxu0 0
    %1884 = vmatmul.mubr.bf16.gmra.mxu0 %v830
    %v1885 = vpop.f32.mrf.mxu0
    %v1886 = vadd.f32 %v1717, %v1885
    %v1887 = vpop.f32.mrf.mxu0
    %v1888 = vpop.f32.mrf.mxu0
    %v1889 = vadd.f32 %v1720, %v1888
    %v1890 = vpop.f32.mrf.mxu0
    %1891 = vmatprep.mubr.bf16.mxu0 0
    %1892 = vmatmul.mubr.bf16.gmra.mxu0 %v831
    %v1893 = vpop.f32.mrf.mxu0
    %v1894 = vadd.f32 %v1725, %v1893
    %v1895 = vpop.f32.mrf.mxu0
    %v1896 = vpop.f32.mrf.mxu0
    %v1897 = vadd.f32 %v1728, %v1896
    %v1898 = vpop.f32.mrf.mxu0
    %1899 = vmatprep.mubr.bf16.mxu0 0
    %1900 = vmatmul.mubr.bf16.gmra.mxu0 %v832
    %v1901 = vpop.f32.mrf.mxu0
    %v1902 = vadd.f32 %v1733, %v1901
    %v1903 = vpop.f32.mrf.mxu0
    %v1904 = vpop.f32.mrf.mxu0
    %v1905 = vadd.f32 %v1736, %v1904
    %v1906 = vpop.f32.mrf.mxu0
    %1907 = vmatprep.mubr.bf16.mxu0 0
    %1908 = vmatmul.mubr.bf16.gmra.mxu0 %v833
    %v1909 = vpop.f32.mrf.mxu0
    %v1910 = vadd.f32 %v1741, %v1909
    %v1911 = vpop.f32.mrf.mxu0
    %v1912 = vpop.f32.mrf.mxu0
    %v1913 = vadd.f32 %v1744, %v1912
    %v1914 = vpop.f32.mrf.mxu0
    %1915 = vmatprep.mubr.bf16.mxu0 0
    %1916 = vmatmul.mubr.bf16.gmra.mxu0 %v834
    %v1917 = vpop.f32.mrf.mxu0
    %v1918 = vadd.f32 %v1749, %v1917
    %v1919 = vpop.f32.mrf.mxu0
    %v1920 = vpop.f32.mrf.mxu0
    %v1921 = vadd.f32 %v1752, %v1920
    %v1922 = vpop.f32.mrf.mxu0
    %1923 = vmatprep.mubr.bf16.mxu0 0
    %1924 = vmatmul.mubr.bf16.gmra.mxu0 %v835
    %v1925 = vpop.f32.mrf.mxu0
    %v1926 = vadd.f32 %v1757, %v1925
    %v1927 = vpop.f32.mrf.mxu0
    %v1928 = vpop.f32.mrf.mxu0
    %v1929 = vadd.f32 %v1760, %v1928
    %v1930 = vpop.f32.mrf.mxu0
    %1931 = vmatprep.mubr.bf16.mxu0 0
    %1932 = vmatmul.mubr.bf16.gmra.mxu0 %v836
    %v1933 = vpop.f32.mrf.mxu0
    %v1934 = vadd.f32 %v1765, %v1933
    %v1935 = vpop.f32.mrf.mxu0
    %v1936 = vpop.f32.mrf.mxu0
    %v1937 = vadd.f32 %v1768, %v1936
    %v1938 = vpop.f32.mrf.mxu0
    %1939 = vmatprep.mubr.bf16.mxu0 0
    %1940 = vmatmul.mubr.bf16.gmra.mxu0 %v837
    %v1941 = vpop.f32.mrf.mxu0
    %v1942 = vadd.f32 %v1773, %v1941
    %v1943 = vpop.f32.mrf.mxu0
    %v1944 = vpop.f32.mrf.mxu0
    %v1945 = vadd.f32 %v1776, %v1944
    %v1946 = vpop.f32.mrf.mxu0
    %1947 = vmatprep.mubr.bf16.mxu0 0
    %1948 = vmatmul.mubr.bf16.gmra.mxu0 %v838
    %v1949 = vpop.f32.mrf.mxu0
    %v1950 = vadd.f32 %v1781, %v1949
    %v1951 = vpop.f32.mrf.mxu0
    %v1952 = vpop.f32.mrf.mxu0
    %v1953 = vadd.f32 %v1784, %v1952
    %v1954 = vpop.f32.mrf.mxu0
    %1955 = vdwg.mxu0
    %v1956 = vld [vmem:[#allocation3 + $0x28] sm:$0xff]
    %v1957 = vld [vmem:[#allocation3 + $0x30] sm:$0xff]
    %v1958 = vld [vmem:[#allocation3 + $0x38] sm:$0xff]
    %v1959 = vld [vmem:[#allocation3 + $0x40] sm:$0xff]
    %v1960 = vld [vmem:[#allocation3 + $0x48] sm:$0xff]
    %v1961 = vld [vmem:[#allocation3 + $0x50] sm:$0xff]
    %v1962 = vld [vmem:[#allocation3 + $0x58] sm:$0xff]
    %v1963 = vld [vmem:[#allocation3 + $0x60] sm:$0xff]
    %v1964 = vld [vmem:[#allocation3 + $0x68] sm:$0xff]
    %v1965 = vld [vmem:[#allocation3 + $0x70] sm:$0xff]
    %v1966 = vld [vmem:[#allocation3 + $0x78] sm:$0xff]
    %v1967 = vld [vmem:[#allocation3 + $0x80] sm:$0xff]
    %v1968 = vld [vmem:[#allocation3 + $0x88] sm:$0xff]
    %v1969 = vld [vmem:[#allocation3 + $0x90] sm:$0xff]
    %v1970 = vld [vmem:[#allocation3 + $0x98] sm:$0xff]
    %v1971 = vld [vmem:[#allocation3 + $0xa0] sm:$0xff]
    %v1972 = vld [vmem:[#allocation3 + $0xa8] sm:$0xff]
    %v1973 = vld [vmem:[#allocation3 + $0xb0] sm:$0xff]
    %v1974 = vld [vmem:[#allocation3 + $0xb8] sm:$0xff]
    %v1975 = vld [vmem:[#allocation3 + $0xc0] sm:$0xff]
    %v1976 = vld [vmem:[#allocation3 + $0xc8] sm:$0xff]
    %v1977 = vld [vmem:[#allocation3 + $0xd0] sm:$0xff]
    %v1978 = vld [vmem:[#allocation3 + $0xd8] sm:$0xff]
    %v1979 = vld [vmem:[#allocation3 + $0xe0] sm:$0xff]
    %v1980 = vld [vmem:[#allocation3 + $0xe8] sm:$0xff]
    %v1981 = vld [vmem:[#allocation3 + $0xf0] sm:$0xff]
    %v1982 = vld [vmem:[#allocation3 + $0xf8] sm:$0xff]
    %v1983 = vld [vmem:[#allocation3 + $0x100] sm:$0xff]
    %v1984 = vld [vmem:[#allocation3 + $0x108] sm:$0xff]
    %v1985 = vld [vmem:[#allocation3 + $0x110] sm:$0xff]
    %v1986 = vld [vmem:[#allocation3 + $0x118] sm:$0xff]
    %v1987 = vld [vmem:[#allocation3 + $0x120] sm:$0xff]
    %v1988 = vld [vmem:[#allocation3 + $0x128] sm:$0xff]
    %v1989 = vld [vmem:[#allocation3 + $0x130] sm:$0xff]
    %v1990 = vpack.c.bf16 %v1957, %v1956
    %v1991 = vpack.c.bf16 %v1959, %v1958
    %v1992 = vpack.c.bf16 %v1961, %v1960
    %v1993 = vpack.c.bf16 %v1963, %v1962
    %v1994 = vpack.c.bf16 %v1965, %v1964
    %v1995 = vpack.c.bf16 %v1967, %v1966
    %v1996 = vpack.c.bf16 %v1969, %v1968
    %v1997 = vpack.c.bf16 %v1971, %v1970
    %v1998 = vpack.c.bf16 %v1973, %v1972
    %v1999 = vpack.c.bf16 %v1975, %v1974
    %v2000 = vpack.c.bf16 %v1977, %v1976
    %v2001 = vpack.c.bf16 %v1979, %v1978
    %v2002 = vpack.c.bf16 %v1981, %v1980
    %v2003 = vpack.c.bf16 %v1983, %v1982
    %v2004 = vpack.c.bf16 %v1985, %v1984
    %v2005 = vpack.c.bf16 %v1987, %v1986
    %v2006 = vpack.c.bf16 %v1989, %v1988
    %v2007 = vld [vmem:[#allocation3 + $0x29] sm:$0xff]
    %v2008 = vld [vmem:[#allocation3 + $0x31] sm:$0xff]
    %v2009 = vld [vmem:[#allocation3 + $0x39] sm:$0xff]
    %v2010 = vld [vmem:[#allocation3 + $0x41] sm:$0xff]
    %v2011 = vld [vmem:[#allocation3 + $0x49] sm:$0xff]
    %v2012 = vld [vmem:[#allocation3 + $0x51] sm:$0xff]
    %v2013 = vld [vmem:[#allocation3 + $0x59] sm:$0xff]
    %v2014 = vld [vmem:[#allocation3 + $0x61] sm:$0xff]
    %v2015 = vld [vmem:[#allocation3 + $0x69] sm:$0xff]
    %v2016 = vld [vmem:[#allocation3 + $0x71] sm:$0xff]
    %v2017 = vld [vmem:[#allocation3 + $0x79] sm:$0xff]
    %v2018 = vld [vmem:[#allocation3 + $0x81] sm:$0xff]
    %v2019 = vld [vmem:[#allocation3 + $0x89] sm:$0xff]
    %v2020 = vld [vmem:[#allocation3 + $0x91] sm:$0xff]
    %v2021 = vld [vmem:[#allocation3 + $0x99] sm:$0xff]
    %v2022 = vld [vmem:[#allocation3 + $0xa1] sm:$0xff]
    %v2023 = vld [vmem:[#allocation3 + $0xa9] sm:$0xff]
    %v2024 = vld [vmem:[#allocation3 + $0xb1] sm:$0xff]
    %v2025 = vld [vmem:[#allocation3 + $0xb9] sm:$0xff]
    %v2026 = vld [vmem:[#allocation3 + $0xc1] sm:$0xff]
    %v2027 = vld [vmem:[#allocation3 + $0xc9] sm:$0xff]
    %v2028 = vld [vmem:[#allocation3 + $0xd1] sm:$0xff]
    %v2029 = vld [vmem:[#allocation3 + $0xd9] sm:$0xff]
    %v2030 = vld [vmem:[#allocation3 + $0xe1] sm:$0xff]
    %v2031 = vld [vmem:[#allocation3 + $0xe9] sm:$0xff]
    %v2032 = vld [vmem:[#allocation3 + $0xf1] sm:$0xff]
    %v2033 = vld [vmem:[#allocation3 + $0xf9] sm:$0xff]
    %v2034 = vld [vmem:[#allocation3 + $0x101] sm:$0xff]
    %v2035 = vld [vmem:[#allocation3 + $0x109] sm:$0xff]
    %v2036 = vld [vmem:[#allocation3 + $0x111] sm:$0xff]
    %v2037 = vld [vmem:[#allocation3 + $0x119] sm:$0xff]
    %v2038 = vld [vmem:[#allocation3 + $0x121] sm:$0xff]
    %v2039 = vld [vmem:[#allocation3 + $0x129] sm:$0xff]
    %v2040 = vld [vmem:[#allocation3 + $0x131] sm:$0xff]
    %v2041 = vpack.c.bf16 %v2008, %v2007
    %v2042 = vpack.c.bf16 %v2010, %v2009
    %v2043 = vpack.c.bf16 %v2012, %v2011
    %v2044 = vpack.c.bf16 %v2014, %v2013
    %v2045 = vpack.c.bf16 %v2016, %v2015
    %v2046 = vpack.c.bf16 %v2018, %v2017
    %v2047 = vpack.c.bf16 %v2020, %v2019
    %v2048 = vpack.c.bf16 %v2022, %v2021
    %v2049 = vpack.c.bf16 %v2024, %v2023
    %v2050 = vpack.c.bf16 %v2026, %v2025
    %v2051 = vpack.c.bf16 %v2028, %v2027
    %v2052 = vpack.c.bf16 %v2030, %v2029
    %v2053 = vpack.c.bf16 %v2032, %v2031
    %v2054 = vpack.c.bf16 %v2034, %v2033
    %v2055 = vpack.c.bf16 %v2036, %v2035
    %v2056 = vpack.c.bf16 %v2038, %v2037
    %v2057 = vpack.c.bf16 %v2040, %v2039
    %v2058 = vld [vmem:[#allocation3 + $0x2a] sm:$0xff]
    %v2059 = vld [vmem:[#allocation3 + $0x32] sm:$0xff]
    %v2060 = vld [vmem:[#allocation3 + $0x3a] sm:$0xff]
    %v2061 = vld [vmem:[#allocation3 + $0x42] sm:$0xff]
    %v2062 = vld [vmem:[#allocation3 + $0x4a] sm:$0xff]
    %v2063 = vld [vmem:[#allocation3 + $0x52] sm:$0xff]
    %v2064 = vld [vmem:[#allocation3 + $0x5a] sm:$0xff]
    %v2065 = vld [vmem:[#allocation3 + $0x62] sm:$0xff]
    %v2066 = vld [vmem:[#allocation3 + $0x6a] sm:$0xff]
    %v2067 = vld [vmem:[#allocation3 + $0x72] sm:$0xff]
    %v2068 = vld [vmem:[#allocation3 + $0x7a] sm:$0xff]
    %v2069 = vld [vmem:[#allocation3 + $0x82] sm:$0xff]
    %v2070 = vld [vmem:[#allocation3 + $0x8a] sm:$0xff]
    %v2071 = vld [vmem:[#allocation3 + $0x92] sm:$0xff]
    %v2072 = vld [vmem:[#allocation3 + $0x9a] sm:$0xff]
    %v2073 = vld [vmem:[#allocation3 + $0xa2] sm:$0xff]
    %v2074 = vld [vmem:[#allocation3 + $0xaa] sm:$0xff]
    %v2075 = vld [vmem:[#allocation3 + $0xb2] sm:$0xff]
    %v2076 = vld [vmem:[#allocation3 + $0xba] sm:$0xff]
    %v2077 = vld [vmem:[#allocation3 + $0xc2] sm:$0xff]
    %v2078 = vld [vmem:[#allocation3 + $0xca] sm:$0xff]
    %v2079 = vld [vmem:[#allocation3 + $0xd2] sm:$0xff]
    %v2080 = vld [vmem:[#allocation3 + $0xda] sm:$0xff]
    %v2081 = vld [vmem:[#allocation3 + $0xe2] sm:$0xff]
    %v2082 = vld [vmem:[#allocation3 + $0xea] sm:$0xff]
    %v2083 = vld [vmem:[#allocation3 + $0xf2] sm:$0xff]
    %v2084 = vld [vmem:[#allocation3 + $0xfa] sm:$0xff]
    %v2085 = vld [vmem:[#allocation3 + $0x102] sm:$0xff]
    %v2086 = vld [vmem:[#allocation3 + $0x10a] sm:$0xff]
    %v2087 = vld [vmem:[#allocation3 + $0x112] sm:$0xff]
    %v2088 = vld [vmem:[#allocation3 + $0x11a] sm:$0xff]
    %v2089 = vld [vmem:[#allocation3 + $0x122] sm:$0xff]
    %v2090 = vld [vmem:[#allocation3 + $0x12a] sm:$0xff]
    %v2091 = vld [vmem:[#allocation3 + $0x132] sm:$0xff]
    %v2092 = vpack.c.bf16 %v2059, %v2058
    %v2093 = vpack.c.bf16 %v2061, %v2060
    %v2094 = vpack.c.bf16 %v2063, %v2062
    %v2095 = vpack.c.bf16 %v2065, %v2064
    %v2096 = vpack.c.bf16 %v2067, %v2066
    %v2097 = vpack.c.bf16 %v2069, %v2068
    %v2098 = vpack.c.bf16 %v2071, %v2070
    %v2099 = vpack.c.bf16 %v2073, %v2072
    %v2100 = vpack.c.bf16 %v2075, %v2074
    %v2101 = vpack.c.bf16 %v2077, %v2076
    %v2102 = vpack.c.bf16 %v2079, %v2078
    %v2103 = vpack.c.bf16 %v2081, %v2080
    %v2104 = vpack.c.bf16 %v2083, %v2082
    %v2105 = vpack.c.bf16 %v2085, %v2084
    %v2106 = vpack.c.bf16 %v2087, %v2086
    %v2107 = vpack.c.bf16 %v2089, %v2088
    %v2108 = vpack.c.bf16 %v2091, %v2090
    %v2109 = vld [vmem:[#allocation6 + $0x180] sm:$0xf]
    %v2110 = vld [vmem:[#allocation6 + $0x184] sm:$0xf]
    %v2111 = vld [vmem:[#allocation6 + $0x188] sm:$0xf]
    %v2112 = vld [vmem:[#allocation6 + $0x18c] sm:$0xf]
    %v2113 = vld [vmem:[#allocation6 + $0x190] sm:$0xf]
    %v2114 = vld [vmem:[#allocation6 + $0x194] sm:$0xf]
    %v2115 = vld [vmem:[#allocation6 + $0x198] sm:$0xf]
    %v2116 = vld [vmem:[#allocation6 + $0x19c] sm:$0xf]
    %v2117 = vld [vmem:[#allocation6 + $0x1a0] sm:$0xf]
    %v2118 = vld [vmem:[#allocation6 + $0x1a4] sm:$0xf]
    %v2119 = vld [vmem:[#allocation6 + $0x1a8] sm:$0xf]
    %v2120 = vld [vmem:[#allocation6 + $0x1ac] sm:$0xf]
    %v2121 = vld [vmem:[#allocation6 + $0x1b0] sm:$0xf]
    %v2122 = vld [vmem:[#allocation6 + $0x1b4] sm:$0xf]
    %v2123 = vld [vmem:[#allocation6 + $0x1b8] sm:$0xf]
    %v2124 = vld [vmem:[#allocation6 + $0x1bc] sm:$0xf]
    %v2125 = vld [vmem:[#allocation6 + $0x1c0] sm:$0xf]
    %v2126 = vld [vmem:[#allocation6 + $0x1c4] sm:$0xf]
    %v2127 = vld [vmem:[#allocation6 + $0x1c8] sm:$0xf]
    %v2128 = vld [vmem:[#allocation6 + $0x1cc] sm:$0xf]
    %v2129 = vld [vmem:[#allocation6 + $0x1d0] sm:$0xf]
    %v2130 = vld [vmem:[#allocation6 + $0x1d4] sm:$0xf]
    %v2131 = vld [vmem:[#allocation6 + $0x1d8] sm:$0xf]
    %v2132 = vld [vmem:[#allocation6 + $0x1dc] sm:$0xf]
    %v2133 = vld [vmem:[#allocation6 + $0x1e0] sm:$0xf]
    %v2134 = vld [vmem:[#allocation6 + $0x1e4] sm:$0xf]
    %v2135 = vld [vmem:[#allocation6 + $0x1e8] sm:$0xf]
    %v2136 = vld [vmem:[#allocation6 + $0x1ec] sm:$0xf]
    %v2137 = vld [vmem:[#allocation6 + $0x1f0] sm:$0xf]
    %v2138 = vld [vmem:[#allocation6 + $0x1f4] sm:$0xf]
    %v2139 = vld [vmem:[#allocation6 + $0x1f8] sm:$0xf]
    %v2140 = vld [vmem:[#allocation6 + $0x1fc] sm:$0xf]
    %v2141 = vld [vmem:[#allocation6 + $0x200] sm:$0xf]
    %v2142 = vld [vmem:[#allocation6 + $0x204] sm:$0xf]
    %v2143 = vld [vmem:[#allocation6 + $0x208] sm:$0xf]
    %v2144 = vld [vmem:[#allocation6 + $0x20c] sm:$0xf]
    %v2145 = vld [vmem:[#allocation6 + $0x210] sm:$0xf]
    %v2146 = vld [vmem:[#allocation6 + $0x214] sm:$0xf]
    %v2147 = vld [vmem:[#allocation6 + $0x218] sm:$0xf]
    %v2148 = vld [vmem:[#allocation6 + $0x21c] sm:$0xf]
    %v2149 = vld [vmem:[#allocation6 + $0x220] sm:$0xf]
    %v2150 = vld [vmem:[#allocation6 + $0x224] sm:$0xf]
    %v2151 = vld [vmem:[#allocation6 + $0x228] sm:$0xf]
    %v2152 = vld [vmem:[#allocation6 + $0x22c] sm:$0xf]
    %v2153 = vld [vmem:[#allocation6 + $0x230] sm:$0xf]
    %v2154 = vld [vmem:[#allocation6 + $0x234] sm:$0xf]
    %v2155 = vld [vmem:[#allocation6 + $0x238] sm:$0xf]
    %v2156 = vld [vmem:[#allocation6 + $0x23c] sm:$0xf]
    %v2205 = vunpack.c.l.b16 %v2109
    %v2206 = vunpack.c.l.b16 %v2110
    %v2207 = vunpack.c.l.b16 %v2111
    %v2208 = vunpack.c.l.b16 %v2112
    %v2209 = vunpack.c.l.b16 %v2113
    %v2210 = vunpack.c.l.b16 %v2114
    %v2211 = vunpack.c.l.b16 %v2115
    %v2212 = vunpack.c.l.b16 %v2116
    %v2213 = vunpack.c.l.b16 %v2117
    %v2214 = vunpack.c.l.b16 %v2118
    %v2215 = vunpack.c.l.b16 %v2119
    %v2216 = vunpack.c.l.b16 %v2120
    %v2217 = vunpack.c.l.b16 %v2121
    %v2218 = vunpack.c.l.b16 %v2122
    %v2219 = vunpack.c.l.b16 %v2123
    %v2220 = vunpack.c.l.b16 %v2124
    %v2221 = vunpack.c.l.b16 %v2125
    %v2222 = vunpack.c.l.b16 %v2126
    %v2223 = vunpack.c.l.b16 %v2127
    %v2224 = vunpack.c.l.b16 %v2128
    %v2225 = vunpack.c.l.b16 %v2129
    %v2226 = vunpack.c.l.b16 %v2130
    %v2227 = vunpack.c.l.b16 %v2131
    %v2228 = vunpack.c.l.b16 %v2132
    %v2229 = vunpack.c.l.b16 %v2133
    %v2230 = vunpack.c.l.b16 %v2134
    %v2231 = vunpack.c.l.b16 %v2135
    %v2232 = vunpack.c.l.b16 %v2136
    %v2233 = vunpack.c.l.b16 %v2137
    %v2234 = vunpack.c.l.b16 %v2138
    %v2235 = vunpack.c.l.b16 %v2139
    %v2236 = vunpack.c.l.b16 %v2140
    %v2237 = vunpack.c.l.b16 %v2141
    %v2238 = vunpack.c.l.b16 %v2142
    %v2239 = vunpack.c.l.b16 %v2143
    %v2240 = vunpack.c.l.b16 %v2144
    %v2241 = vunpack.c.l.b16 %v2145
    %v2242 = vunpack.c.l.b16 %v2146
    %v2243 = vunpack.c.l.b16 %v2147
    %v2244 = vunpack.c.l.b16 %v2148
    %v2245 = vunpack.c.l.b16 %v2149
    %v2246 = vunpack.c.l.b16 %v2150
    %v2247 = vunpack.c.l.b16 %v2151
    %v2248 = vunpack.c.l.b16 %v2152
    %v2249 = vunpack.c.l.b16 %v2153
    %v2250 = vunpack.c.l.b16 %v2154
    %v2251 = vunpack.c.l.b16 %v2155
    %v2252 = vunpack.c.l.b16 %v2156
    %v2253 = vpack.c.b16 %v2206, %v2205
    %v2254 = vpack.c.b16 %v2208, %v2207
    %v2255 = vpack.c.b16 %v2210, %v2209
    %v2256 = vpack.c.b16 %v2212, %v2211
    %v2257 = vpack.c.b16 %v2214, %v2213
    %v2258 = vpack.c.b16 %v2216, %v2215
    %v2259 = vpack.c.b16 %v2218, %v2217
    %v2260 = vpack.c.b16 %v2220, %v2219
    %v2261 = vpack.c.b16 %v2222, %v2221
    %v2262 = vpack.c.b16 %v2224, %v2223
    %v2263 = vpack.c.b16 %v2226, %v2225
    %v2264 = vpack.c.b16 %v2228, %v2227
    %v2265 = vpack.c.b16 %v2230, %v2229
    %v2266 = vpack.c.b16 %v2232, %v2231
    %v2267 = vpack.c.b16 %v2234, %v2233
    %v2268 = vpack.c.b16 %v2236, %v2235
    %v2269 = vpack.c.b16 %v2238, %v2237
    %v2270 = vpack.c.b16 %v2240, %v2239
    %v2271 = vpack.c.b16 %v2242, %v2241
    %v2272 = vpack.c.b16 %v2244, %v2243
    %v2273 = vpack.c.b16 %v2246, %v2245
    %v2274 = vpack.c.b16 %v2248, %v2247
    %v2275 = vpack.c.b16 %v2250, %v2249
    %v2276 = vpack.c.b16 %v2252, %v2251
    %2301 = vmatprep.subr.bf16.mxu0 0
    %2302 = vmatpush1.bf16.msra.mxu0 %v2260
    %2303 = vmatprep.subr.bf16.mxu0 0
    %2304 = vmatpush1.bf16.msra.mxu0 %v2259
    %2305 = vmatprep.subr.bf16.mxu0 0
    %2306 = vmatpush1.bf16.msra.mxu0 %v2258
    %2307 = vmatprep.subr.bf16.mxu0 0
    %2308 = vmatpush1.bf16.msra.mxu0 %v2257
    %2309 = vmatprep.subr.bf16.mxu0 0
    %2310 = vmatpush1.bf16.msra.mxu0 %v2256
    %2311 = vmatprep.subr.bf16.mxu0 0
    %2312 = vmatpush1.bf16.msra.mxu0 %v2255
    %2313 = vmatprep.subr.bf16.mxu0 0
    %2314 = vmatpush1.bf16.msra.mxu0 %v2254
    %2315 = vmatprep.subr.bf16.mxu0 0
    %2316 = vmatpush1.bf16.msra.mxu0 %v2253
    %2317 = vmatprep.subr.bf16.mxu0 0
    %2318 = vmatpush2.bf16.msra.mxu0 %v2268
    %2319 = vmatprep.subr.bf16.mxu0 0
    %2320 = vmatpush2.bf16.msra.mxu0 %v2267
    %2321 = vmatprep.subr.bf16.mxu0 0
    %2322 = vmatpush2.bf16.msra.mxu0 %v2266
    %2323 = vmatprep.subr.bf16.mxu0 0
    %2324 = vmatpush2.bf16.msra.mxu0 %v2265
    %2325 = vmatprep.subr.bf16.mxu0 0
    %2326 = vmatpush2.bf16.msra.mxu0 %v2264
    %2327 = vmatprep.subr.bf16.mxu0 0
    %2328 = vmatpush2.bf16.msra.mxu0 %v2263
    %2329 = vmatprep.subr.bf16.mxu0 0
    %2330 = vmatpush2.bf16.msra.mxu0 %v2262
    %2331 = vmatprep.subr.bf16.mxu0 0
    %2332 = vmatpush2.bf16.msra.mxu0 %v2261
    %2333 = vmatprep.mubr.bf16.mxu0 %v2041
    %2334 = vmatmul.mubr.bf16.gmra.mxu0 %v1990
    %v2335 = vpop.f32.mrf.mxu0
    %v2336 = vadd.f32 0.0, %v2335
    %v2337 = vpop.f32.mrf.mxu0
    %v2338 = vpop.f32.mrf.mxu0
    %v2339 = vadd.f32 0.0, %v2338
    %v2340 = vpop.f32.mrf.mxu0
    %2341 = vmatprep.mubr.bf16.mxu0 %v2042
    %2342 = vmatmul.mubr.bf16.gmra.mxu0 %v1991
    %v2343 = vpop.f32.mrf.mxu0
    %v2344 = vadd.f32 0.0, %v2343
    %v2345 = vpop.f32.mrf.mxu0
    %v2346 = vpop.f32.mrf.mxu0
    %v2347 = vadd.f32 0.0, %v2346
    %v2348 = vpop.f32.mrf.mxu0
    %2349 = vmatprep.mubr.bf16.mxu0 %v2043
    %2350 = vmatmul.mubr.bf16.gmra.mxu0 %v1992
    %v2351 = vpop.f32.mrf.mxu0
    %v2352 = vadd.f32 0.0, %v2351
    %v2353 = vpop.f32.mrf.mxu0
    %v2354 = vpop.f32.mrf.mxu0
    %v2355 = vadd.f32 0.0, %v2354
    %v2356 = vpop.f32.mrf.mxu0
    %2357 = vmatprep.mubr.bf16.mxu0 %v2044
    %2358 = vmatmul.mubr.bf16.gmra.mxu0 %v1993
    %v2359 = vpop.f32.mrf.mxu0
    %v2360 = vadd.f32 0.0, %v2359
    %v2361 = vpop.f32.mrf.mxu0
    %v2362 = vpop.f32.mrf.mxu0
    %v2363 = vadd.f32 0.0, %v2362
    %v2364 = vpop.f32.mrf.mxu0
    %2365 = vmatprep.mubr.bf16.mxu0 %v2045
    %2366 = vmatmul.mubr.bf16.gmra.mxu0 %v1994
    %v2367 = vpop.f32.mrf.mxu0
    %v2368 = vadd.f32 0.0, %v2367
    %v2369 = vpop.f32.mrf.mxu0
    %v2370 = vpop.f32.mrf.mxu0
    %v2371 = vadd.f32 0.0, %v2370
    %v2372 = vpop.f32.mrf.mxu0
    %2373 = vmatprep.mubr.bf16.mxu0 %v2046
    %2374 = vmatmul.mubr.bf16.gmra.mxu0 %v1995
    %v2375 = vpop.f32.mrf.mxu0
    %v2376 = vadd.f32 0.0, %v2375
    %v2377 = vpop.f32.mrf.mxu0
    %v2378 = vpop.f32.mrf.mxu0
    %v2379 = vadd.f32 0.0, %v2378
    %v2380 = vpop.f32.mrf.mxu0
    %2381 = vmatprep.mubr.bf16.mxu0 %v2047
    %2382 = vmatmul.mubr.bf16.gmra.mxu0 %v1996
    %v2383 = vpop.f32.mrf.mxu0
    %v2384 = vadd.f32 0.0, %v2383
    %v2385 = vpop.f32.mrf.mxu0
    %v2386 = vpop.f32.mrf.mxu0
    %v2387 = vadd.f32 0.0, %v2386
    %v2388 = vpop.f32.mrf.mxu0
    %2389 = vmatprep.mubr.bf16.mxu0 %v2048
    %2390 = vmatmul.mubr.bf16.gmra.mxu0 %v1997
    %v2391 = vpop.f32.mrf.mxu0
    %v2392 = vadd.f32 0.0, %v2391
    %v2393 = vpop.f32.mrf.mxu0
    %v2394 = vpop.f32.mrf.mxu0
    %v2395 = vadd.f32 0.0, %v2394
    %v2396 = vpop.f32.mrf.mxu0
    %2397 = vmatprep.mubr.bf16.mxu0 %v2049
    %2398 = vmatmul.mubr.bf16.gmra.mxu0 %v1998
    %v2399 = vpop.f32.mrf.mxu0
    %v2400 = vadd.f32 0.0, %v2399
    %v2401 = vpop.f32.mrf.mxu0
    %v2402 = vpop.f32.mrf.mxu0
    %v2403 = vadd.f32 0.0, %v2402
    %v2404 = vpop.f32.mrf.mxu0
    %2405 = vmatprep.mubr.bf16.mxu0 %v2050
    %2406 = vmatmul.mubr.bf16.gmra.mxu0 %v1999
    %v2407 = vpop.f32.mrf.mxu0
    %v2408 = vadd.f32 0.0, %v2407
    %v2409 = vpop.f32.mrf.mxu0
    %v2410 = vpop.f32.mrf.mxu0
    %v2411 = vadd.f32 0.0, %v2410
    %v2412 = vpop.f32.mrf.mxu0
    %2413 = vmatprep.mubr.bf16.mxu0 %v2051
    %2414 = vmatmul.mubr.bf16.gmra.mxu0 %v2000
    %v2415 = vpop.f32.mrf.mxu0
    %v2416 = vadd.f32 0.0, %v2415
    %v2417 = vpop.f32.mrf.mxu0
    %v2418 = vpop.f32.mrf.mxu0
    %v2419 = vadd.f32 0.0, %v2418
    %v2420 = vpop.f32.mrf.mxu0
    %2421 = vmatprep.mubr.bf16.mxu0 %v2052
    %2422 = vmatmul.mubr.bf16.gmra.mxu0 %v2001
    %v2423 = vpop.f32.mrf.mxu0
    %v2424 = vadd.f32 0.0, %v2423
    %v2425 = vpop.f32.mrf.mxu0
    %v2426 = vpop.f32.mrf.mxu0
    %v2427 = vadd.f32 0.0, %v2426
    %v2428 = vpop.f32.mrf.mxu0
    %2429 = vmatprep.mubr.bf16.mxu0 %v2053
    %2430 = vmatmul.mubr.bf16.gmra.mxu0 %v2002
    %v2431 = vpop.f32.mrf.mxu0
    %v2432 = vadd.f32 0.0, %v2431
    %v2433 = vpop.f32.mrf.mxu0
    %v2434 = vpop.f32.mrf.mxu0
    %v2435 = vadd.f32 0.0, %v2434
    %v2436 = vpop.f32.mrf.mxu0
    %2437 = vmatprep.mubr.bf16.mxu0 %v2054
    %2438 = vmatmul.mubr.bf16.gmra.mxu0 %v2003
    %v2439 = vpop.f32.mrf.mxu0
    %v2440 = vadd.f32 0.0, %v2439
    %v2441 = vpop.f32.mrf.mxu0
    %v2442 = vpop.f32.mrf.mxu0
    %v2443 = vadd.f32 0.0, %v2442
    %v2444 = vpop.f32.mrf.mxu0
    %2445 = vmatprep.mubr.bf16.mxu0 %v2055
    %2446 = vmatmul.mubr.bf16.gmra.mxu0 %v2004
    %v2447 = vpop.f32.mrf.mxu0
    %v2448 = vadd.f32 0.0, %v2447
    %v2449 = vpop.f32.mrf.mxu0
    %v2450 = vpop.f32.mrf.mxu0
    %v2451 = vadd.f32 0.0, %v2450
    %v2452 = vpop.f32.mrf.mxu0
    %2453 = vmatprep.mubr.bf16.mxu0 %v2056
    %2454 = vmatmul.mubr.bf16.gmra.mxu0 %v2005
    %v2455 = vpop.f32.mrf.mxu0
    %v2456 = vadd.f32 0.0, %v2455
    %v2457 = vpop.f32.mrf.mxu0
    %v2458 = vpop.f32.mrf.mxu0
    %v2459 = vadd.f32 0.0, %v2458
    %v2460 = vpop.f32.mrf.mxu0
    %2461 = vmatprep.mubr.bf16.mxu0 %v2057
    %2462 = vmatmul.mubr.bf16.gmra.mxu0 %v2006
    %v2463 = vpop.f32.mrf.mxu0
    %v2464 = vadd.f32 0.0, %v2463
    %v2465 = vpop.f32.mrf.mxu0
    %v2466 = vpop.f32.mrf.mxu0
    %v2467 = vadd.f32 0.0, %v2466
    %v2468 = vpop.f32.mrf.mxu0
    %2469 = vdwg.mxu0
    %2470 = vmatprep.subr.bf16.mxu0 0
    %2471 = vmatpush1.bf16.msra.mxu0 %v2276
    %2472 = vmatprep.subr.bf16.mxu0 0
    %2473 = vmatpush1.bf16.msra.mxu0 %v2275
    %2474 = vmatprep.subr.bf16.mxu0 0
    %2475 = vmatpush1.bf16.msra.mxu0 %v2274
    %2476 = vmatprep.subr.bf16.mxu0 0
    %2477 = vmatpush1.bf16.msra.mxu0 %v2273
    %2478 = vmatprep.subr.bf16.mxu0 0
    %2479 = vmatpush1.bf16.msra.mxu0 %v2272
    %2480 = vmatprep.subr.bf16.mxu0 0
    %2481 = vmatpush1.bf16.msra.mxu0 %v2271
    %2482 = vmatprep.subr.bf16.mxu0 0
    %2483 = vmatpush1.bf16.msra.mxu0 %v2270
    %2484 = vmatprep.subr.bf16.mxu0 0
    %2485 = vmatpush1.bf16.msra.mxu0 %v2269
    %2486 = vmatprep.subr.bf16.mxu0 0
    %2487 = vmatpush2.bf16.msra.mxu0 0
    %2488 = vmatprep.subr.bf16.mxu0 0
    %2489 = vmatpush2.bf16.msra.mxu0 0
    %2490 = vmatprep.subr.bf16.mxu0 0
    %2491 = vmatpush2.bf16.msra.mxu0 0
    %2492 = vmatprep.subr.bf16.mxu0 0
    %2493 = vmatpush2.bf16.msra.mxu0 0
    %2494 = vmatprep.subr.bf16.mxu0 0
    %2495 = vmatpush2.bf16.msra.mxu0 0
    %2496 = vmatprep.subr.bf16.mxu0 0
    %2497 = vmatpush2.bf16.msra.mxu0 0
    %2498 = vmatprep.subr.bf16.mxu0 0
    %2499 = vmatpush2.bf16.msra.mxu0 0
    %2500 = vmatprep.subr.bf16.mxu0 0
    %2501 = vmatpush2.bf16.msra.mxu0 0
    %2502 = vmatprep.mubr.bf16.mxu0 0
    %2503 = vmatmul.mubr.bf16.gmra.mxu0 %v2092
    %v2504 = vpop.f32.mrf.mxu0
    %v2505 = vadd.f32 %v2336, %v2504
    %v2506 = vpop.f32.mrf.mxu0
    %v2507 = vpop.f32.mrf.mxu0
    %v2508 = vadd.f32 %v2339, %v2507
    %v2509 = vpop.f32.mrf.mxu0
    %2510 = vmatprep.mubr.bf16.mxu0 0
    %2511 = vmatmul.mubr.bf16.gmra.mxu0 %v2093
    %v2512 = vpop.f32.mrf.mxu0
    %v2513 = vadd.f32 %v2344, %v2512
    %v2514 = vpop.f32.mrf.mxu0
    %v2515 = vpop.f32.mrf.mxu0
    %v2516 = vadd.f32 %v2347, %v2515
    %v2517 = vpop.f32.mrf.mxu0
    %2518 = vmatprep.mubr.bf16.mxu0 0
    %2519 = vmatmul.mubr.bf16.gmra.mxu0 %v2094
    %v2520 = vpop.f32.mrf.mxu0
    %v2521 = vadd.f32 %v2352, %v2520
    %v2522 = vpop.f32.mrf.mxu0
    %v2523 = vpop.f32.mrf.mxu0
    %v2524 = vadd.f32 %v2355, %v2523
    %v2525 = vpop.f32.mrf.mxu0
    %2526 = vmatprep.mubr.bf16.mxu0 0
    %2527 = vmatmul.mubr.bf16.gmra.mxu0 %v2095
    %v2528 = vpop.f32.mrf.mxu0
    %v2529 = vadd.f32 %v2360, %v2528
    %v2530 = vpop.f32.mrf.mxu0
    %v2531 = vpop.f32.mrf.mxu0
    %v2532 = vadd.f32 %v2363, %v2531
    %v2533 = vpop.f32.mrf.mxu0
    %2534 = vmatprep.mubr.bf16.mxu0 0
    %2535 = vmatmul.mubr.bf16.gmra.mxu0 %v2096
    %v2536 = vpop.f32.mrf.mxu0
    %v2537 = vadd.f32 %v2368, %v2536
    %v2538 = vpop.f32.mrf.mxu0
    %v2539 = vpop.f32.mrf.mxu0
    %v2540 = vadd.f32 %v2371, %v2539
    %v2541 = vpop.f32.mrf.mxu0
    %2542 = vmatprep.mubr.bf16.mxu0 0
    %2543 = vmatmul.mubr.bf16.gmra.mxu0 %v2097
    %v2544 = vpop.f32.mrf.mxu0
    %v2545 = vadd.f32 %v2376, %v2544
    %v2546 = vpop.f32.mrf.mxu0
    %v2547 = vpop.f32.mrf.mxu0
    %v2548 = vadd.f32 %v2379, %v2547
    %v2549 = vpop.f32.mrf.mxu0
    %2550 = vmatprep.mubr.bf16.mxu0 0
    %2551 = vmatmul.mubr.bf16.gmra.mxu0 %v2098
    %v2552 = vpop.f32.mrf.mxu0
    %v2553 = vadd.f32 %v2384, %v2552
    %v2554 = vpop.f32.mrf.mxu0
    %v2555 = vpop.f32.mrf.mxu0
    %v2556 = vadd.f32 %v2387, %v2555
    %v2557 = vpop.f32.mrf.mxu0
    %2558 = vmatprep.mubr.bf16.mxu0 0
    %2559 = vmatmul.mubr.bf16.gmra.mxu0 %v2099
    %v2560 = vpop.f32.mrf.mxu0
    %v2561 = vadd.f32 %v2392, %v2560
    %v2562 = vpop.f32.mrf.mxu0
    %v2563 = vpop.f32.mrf.mxu0
    %v2564 = vadd.f32 %v2395, %v2563
    %v2565 = vpop.f32.mrf.mxu0
    %2566 = vmatprep.mubr.bf16.mxu0 0
    %2567 = vmatmul.mubr.bf16.gmra.mxu0 %v2100
    %v2568 = vpop.f32.mrf.mxu0
    %v2569 = vadd.f32 %v2400, %v2568
    %v2570 = vpop.f32.mrf.mxu0
    %v2571 = vpop.f32.mrf.mxu0
    %v2572 = vadd.f32 %v2403, %v2571
    %v2573 = vpop.f32.mrf.mxu0
    %2574 = vmatprep.mubr.bf16.mxu0 0
    %2575 = vmatmul.mubr.bf16.gmra.mxu0 %v2101
    %v2576 = vpop.f32.mrf.mxu0
    %v2577 = vadd.f32 %v2408, %v2576
    %v2578 = vpop.f32.mrf.mxu0
    %v2579 = vpop.f32.mrf.mxu0
    %v2580 = vadd.f32 %v2411, %v2579
    %v2581 = vpop.f32.mrf.mxu0
    %2582 = vmatprep.mubr.bf16.mxu0 0
    %2583 = vmatmul.mubr.bf16.gmra.mxu0 %v2102
    %v2584 = vpop.f32.mrf.mxu0
    %v2585 = vadd.f32 %v2416, %v2584
    %v2586 = vpop.f32.mrf.mxu0
    %v2587 = vpop.f32.mrf.mxu0
    %v2588 = vadd.f32 %v2419, %v2587
    %v2589 = vpop.f32.mrf.mxu0
    %2590 = vmatprep.mubr.bf16.mxu0 0
    %2591 = vmatmul.mubr.bf16.gmra.mxu0 %v2103
    %v2592 = vpop.f32.mrf.mxu0
    %v2593 = vadd.f32 %v2424, %v2592
    %v2594 = vpop.f32.mrf.mxu0
    %v2595 = vpop.f32.mrf.mxu0
    %v2596 = vadd.f32 %v2427, %v2595
    %v2597 = vpop.f32.mrf.mxu0
    %2598 = vmatprep.mubr.bf16.mxu0 0
    %2599 = vmatmul.mubr.bf16.gmra.mxu0 %v2104
    %v2600 = vpop.f32.mrf.mxu0
    %v2601 = vadd.f32 %v2432, %v2600
    %v2602 = vpop.f32.mrf.mxu0
    %v2603 = vpop.f32.mrf.mxu0
    %v2604 = vadd.f32 %v2435, %v2603
    %v2605 = vpop.f32.mrf.mxu0
    %2606 = vmatprep.mubr.bf16.mxu0 0
    %2607 = vmatmul.mubr.bf16.gmra.mxu0 %v2105
    %v2608 = vpop.f32.mrf.mxu0
    %v2609 = vadd.f32 %v2440, %v2608
    %v2610 = vpop.f32.mrf.mxu0
    %v2611 = vpop.f32.mrf.mxu0
    %v2612 = vadd.f32 %v2443, %v2611
    %v2613 = vpop.f32.mrf.mxu0
    %2614 = vmatprep.mubr.bf16.mxu0 0
    %2615 = vmatmul.mubr.bf16.gmra.mxu0 %v2106
    %v2616 = vpop.f32.mrf.mxu0
    %v2617 = vadd.f32 %v2448, %v2616
    %v2618 = vpop.f32.mrf.mxu0
    %v2619 = vpop.f32.mrf.mxu0
    %v2620 = vadd.f32 %v2451, %v2619
    %v2621 = vpop.f32.mrf.mxu0
    %2622 = vmatprep.mubr.bf16.mxu0 0
    %2623 = vmatmul.mubr.bf16.gmra.mxu0 %v2107
    %v2624 = vpop.f32.mrf.mxu0
    %v2625 = vadd.f32 %v2456, %v2624
    %v2626 = vpop.f32.mrf.mxu0
    %v2627 = vpop.f32.mrf.mxu0
    %v2628 = vadd.f32 %v2459, %v2627
    %v2629 = vpop.f32.mrf.mxu0
    %2630 = vmatprep.mubr.bf16.mxu0 0
    %2631 = vmatmul.mubr.bf16.gmra.mxu0 %v2108
    %v2632 = vpop.f32.mrf.mxu0
    %v2633 = vadd.f32 %v2464, %v2632
    %v2634 = vpop.f32.mrf.mxu0
    %v2635 = vpop.f32.mrf.mxu0
    %v2636 = vadd.f32 %v2467, %v2635
    %v2637 = vpop.f32.mrf.mxu0
    %2638 = vdwg.mxu0
    %v2639 = vadd.f32 %v1822, %v2505
    %v2640 = vadd.f32 %v1825, %v2508
    %v2641 = vadd.f32 %v1830, %v2513
    %v2642 = vadd.f32 %v1833, %v2516
    %v2643 = vadd.f32 %v1838, %v2521
    %v2644 = vadd.f32 %v1841, %v2524
    %v2645 = vadd.f32 %v1846, %v2529
    %v2646 = vadd.f32 %v1849, %v2532
    %v2647 = vadd.f32 %v1854, %v2537
    %v2648 = vadd.f32 %v1857, %v2540
    %v2649 = vadd.f32 %v1862, %v2545
    %v2650 = vadd.f32 %v1865, %v2548
    %v2651 = vadd.f32 %v1870, %v2553
    %v2652 = vadd.f32 %v1873, %v2556
    %v2653 = vadd.f32 %v1878, %v2561
    %v2654 = vadd.f32 %v1881, %v2564
    %v2655 = vadd.f32 %v1886, %v2569
    %v2656 = vadd.f32 %v1889, %v2572
    %v2657 = vadd.f32 %v1894, %v2577
    %v2658 = vadd.f32 %v1897, %v2580
    %v2659 = vadd.f32 %v1902, %v2585
    %v2660 = vadd.f32 %v1905, %v2588
    %v2661 = vadd.f32 %v1910, %v2593
    %v2662 = vadd.f32 %v1913, %v2596
    %v2663 = vadd.f32 %v1918, %v2601
    %v2664 = vadd.f32 %v1921, %v2604
    %v2665 = vadd.f32 %v1926, %v2609
    %v2666 = vadd.f32 %v1929, %v2612
    %v2667 = vadd.f32 %v1934, %v2617
    %v2668 = vadd.f32 %v1937, %v2620
    %v2669 = vadd.f32 %v1942, %v2625
    %v2670 = vadd.f32 %v1945, %v2628
    %v2671 = vadd.f32 %v1950, %v2633
    %v2672 = vadd.f32 %v1953, %v2636
    %v2673 = vld [vmem:[%s2] sm:$0x1]
    %v2675 = vlaneseq
    %v2676 = vshrl.u32 %v2675, 7
    %v2677 = vsub.s32 0, %v2676
    %v2678 = vrot.slane %v2673, %v2677
    %v2680 = vadd.f32 %v2639, %v2678
    %v2681 = vadd.f32 %v2640, %v2678
    %v2682 = vadd.f32 %v2641, %v2678
    %v2683 = vadd.f32 %v2642, %v2678
    %v2684 = vadd.f32 %v2643, %v2678
    %v2685 = vadd.f32 %v2644, %v2678
    %v2686 = vadd.f32 %v2645, %v2678
    %v2687 = vadd.f32 %v2646, %v2678
    %v2688 = vadd.f32 %v2647, %v2678
    %v2689 = vadd.f32 %v2648, %v2678
    %v2690 = vadd.f32 %v2649, %v2678
    %v2691 = vadd.f32 %v2650, %v2678
    %v2692 = vadd.f32 %v2651, %v2678
    %v2693 = vadd.f32 %v2652, %v2678
    %v2694 = vadd.f32 %v2653, %v2678
    %v2695 = vadd.f32 %v2654, %v2678
    %v2696 = vadd.f32 %v2655, %v2678
    %v2697 = vadd.f32 %v2656, %v2678
    %v2698 = vadd.f32 %v2657, %v2678
    %v2699 = vadd.f32 %v2658, %v2678
    %v2700 = vadd.f32 %v2659, %v2678
    %v2701 = vadd.f32 %v2660, %v2678
    %v2702 = vadd.f32 %v2661, %v2678
    %v2703 = vadd.f32 %v2662, %v2678
    %v2704 = vadd.f32 %v2663, %v2678
    %v2705 = vadd.f32 %v2664, %v2678
    %v2706 = vadd.f32 %v2665, %v2678
    %v2707 = vadd.f32 %v2666, %v2678
    %v2708 = vadd.f32 %v2667, %v2678
    %v2709 = vadd.f32 %v2668, %v2678
    %v2710 = vadd.f32 %v2669, %v2678
    %v2711 = vadd.f32 %v2670, %v2678
    %v2712 = vadd.f32 %v2671, %v2678
    %v2713 = vadd.f32 %v2672, %v2678
    %v2714 = vmax.f32 %v2680, 0.0
    %v2715 = vmax.f32 %v2681, 0.0
    %v2716 = vmax.f32 %v2682, 0.0
    %v2717 = vmax.f32 %v2683, 0.0
    %v2718 = vmax.f32 %v2684, 0.0
    %v2719 = vmax.f32 %v2685, 0.0
    %v2720 = vmax.f32 %v2686, 0.0
    %v2721 = vmax.f32 %v2687, 0.0
    %v2722 = vmax.f32 %v2688, 0.0
    %v2723 = vmax.f32 %v2689, 0.0
    %v2724 = vmax.f32 %v2690, 0.0
    %v2725 = vmax.f32 %v2691, 0.0
    %v2726 = vmax.f32 %v2692, 0.0
    %v2727 = vmax.f32 %v2693, 0.0
    %v2728 = vmax.f32 %v2694, 0.0
    %v2729 = vmax.f32 %v2695, 0.0
    %v2730 = vmax.f32 %v2696, 0.0
    %v2731 = vmax.f32 %v2697, 0.0
    %v2732 = vmax.f32 %v2698, 0.0
    %v2733 = vmax.f32 %v2699, 0.0
    %v2734 = vmax.f32 %v2700, 0.0
    %v2735 = vmax.f32 %v2701, 0.0
    %v2736 = vmax.f32 %v2702, 0.0
    %v2737 = vmax.f32 %v2703, 0.0
    %v2738 = vmax.f32 %v2704, 0.0
    %v2739 = vmax.f32 %v2705, 0.0
    %v2740 = vmax.f32 %v2706, 0.0
    %v2741 = vmax.f32 %v2707, 0.0
    %v2742 = vmax.f32 %v2708, 0.0
    %v2743 = vmax.f32 %v2709, 0.0
    %v2744 = vmax.f32 %v2710, 0.0
    %v2745 = vmax.f32 %v2711, 0.0
    %v2746 = vmax.f32 %v2712, 0.0
    %v2747 = vmax.f32 %v2713, 0.0
    %v2748 = vsel %vm652, 1, 0
    %v2749 = vsel %vm653, 1, 0
    %v2750 = vsel %vm654, 1, 0
    %v2751 = vsel %vm655, 1, 0
    %v2752 = vsel %vm656, 1, 0
    %v2753 = vsel %vm657, 1, 0
    %v2754 = vsel %vm658, 1, 0
    %v2755 = vsel %vm659, 1, 0
    %v2756 = vsel %vm660, 1, 0
    %v2757 = vsel %vm661, 1, 0
    %v2758 = vsel %vm662, 1, 0
    %v2759 = vsel %vm663, 1, 0
    %v2760 = vsel %vm664, 1, 0
    %v2761 = vsel %vm665, 1, 0
    %v2762 = vsel %vm666, 1, 0
    %v2763 = vsel %vm667, 1, 0
    %v2764 = vsel %vm668, 1, 0
    %v2765 = vsel %vm669, 1, 0
    %v2766 = vsel %vm670, 1, 0
    %v2767 = vsel %vm671, 1, 0
    %v2768 = vsel %vm672, 1, 0
    %v2769 = vsel %vm673, 1, 0
    %v2770 = vsel %vm674, 1, 0
    %v2771 = vsel %vm675, 1, 0
    %v2772 = vsel %vm676, 1, 0
    %v2773 = vsel %vm677, 1, 0
    %v2774 = vsel %vm678, 1, 0
    %v2775 = vsel %vm679, 1, 0
    %v2776 = vsel %vm680, 1, 0
    %v2777 = vsel %vm681, 1, 0
    %v2778 = vsel %vm682, 1, 0
    %v2779 = vsel %vm683, 1, 0
    %v2780 = vsel %vm684, 1, 0
    %v2781 = vsel %vm685, 1, 0
    %vm2782 = vcmp.eq.s32.totalorder %v2748, 1
    %vm2783 = vcmp.eq.s32.totalorder %v2749, 1
    %vm2784 = vcmp.eq.s32.totalorder %v2750, 1
    %vm2785 = vcmp.eq.s32.totalorder %v2751, 1
    %vm2786 = vcmp.eq.s32.totalorder %v2752, 1
    %vm2787 = vcmp.eq.s32.totalorder %v2753, 1
    %vm2788 = vcmp.eq.s32.totalorder %v2754, 1
    %vm2789 = vcmp.eq.s32.totalorder %v2755, 1
    %vm2790 = vcmp.eq.s32.totalorder %v2756, 1
    %vm2791 = vcmp.eq.s32.totalorder %v2757, 1
    %vm2792 = vcmp.eq.s32.totalorder %v2758, 1
    %vm2793 = vcmp.eq.s32.totalorder %v2759, 1
    %vm2794 = vcmp.eq.s32.totalorder %v2760, 1
    %vm2795 = vcmp.eq.s32.totalorder %v2761, 1
    %vm2796 = vcmp.eq.s32.totalorder %v2762, 1
    %vm2797 = vcmp.eq.s32.totalorder %v2763, 1
    %vm2798 = vcmp.eq.s32.totalorder %v2764, 1
    %vm2799 = vcmp.eq.s32.totalorder %v2765, 1
    %vm2800 = vcmp.eq.s32.totalorder %v2766, 1
    %vm2801 = vcmp.eq.s32.totalorder %v2767, 1
    %vm2802 = vcmp.eq.s32.totalorder %v2768, 1
    %vm2803 = vcmp.eq.s32.totalorder %v2769, 1
    %vm2804 = vcmp.eq.s32.totalorder %v2770, 1
    %vm2805 = vcmp.eq.s32.totalorder %v2771, 1
    %vm2806 = vcmp.eq.s32.totalorder %v2772, 1
    %vm2807 = vcmp.eq.s32.totalorder %v2773, 1
    %vm2808 = vcmp.eq.s32.totalorder %v2774, 1
    %vm2809 = vcmp.eq.s32.totalorder %v2775, 1
    %vm2810 = vcmp.eq.s32.totalorder %v2776, 1
    %vm2811 = vcmp.eq.s32.totalorder %v2777, 1
    %vm2812 = vcmp.eq.s32.totalorder %v2778, 1
    %vm2813 = vcmp.eq.s32.totalorder %v2779, 1
    %vm2814 = vcmp.eq.s32.totalorder %v2780, 1
    %vm2815 = vcmp.eq.s32.totalorder %v2781, 1
    %v2816 = vsel %vm2782, %v2714, 0.0
    %v2817 = vsel %vm2783, %v2715, 0.0
    %v2818 = vsel %vm2784, %v2716, 0.0
    %v2819 = vsel %vm2785, %v2717, 0.0
    %v2820 = vsel %vm2786, %v2718, 0.0
    %v2821 = vsel %vm2787, %v2719, 0.0
    %v2822 = vsel %vm2788, %v2720, 0.0
    %v2823 = vsel %vm2789, %v2721, 0.0
    %v2824 = vsel %vm2790, %v2722, 0.0
    %v2825 = vsel %vm2791, %v2723, 0.0
    %v2826 = vsel %vm2792, %v2724, 0.0
    %v2827 = vsel %vm2793, %v2725, 0.0
    %v2828 = vsel %vm2794, %v2726, 0.0
    %v2829 = vsel %vm2795, %v2727, 0.0
    %v2830 = vsel %vm2796, %v2728, 0.0
    %v2831 = vsel %vm2797, %v2729, 0.0
    %v2832 = vsel %vm2798, %v2730, 0.0
    %v2833 = vsel %vm2799, %v2731, 0.0
    %v2834 = vsel %vm2800, %v2732, 0.0
    %v2835 = vsel %vm2801, %v2733, 0.0
    %v2836 = vsel %vm2802, %v2734, 0.0
    %v2837 = vsel %vm2803, %v2735, 0.0
    %v2838 = vsel %vm2804, %v2736, 0.0
    %v2839 = vsel %vm2805, %v2737, 0.0
    %v2840 = vsel %vm2806, %v2738, 0.0
    %v2841 = vsel %vm2807, %v2739, 0.0
    %v2842 = vsel %vm2808, %v2740, 0.0
    %v2843 = vsel %vm2809, %v2741, 0.0
    %v2844 = vsel %vm2810, %v2742, 0.0
    %v2845 = vsel %vm2811, %v2743, 0.0
    %v2846 = vsel %vm2812, %v2744, 0.0
    %v2847 = vsel %vm2813, %v2745, 0.0
    %v2848 = vsel %vm2814, %v2746, 0.0
    %v2849 = vsel %vm2815, %v2747, 0.0
    %2850 = vst [vmem:[#allocation2] sm:$0xff] 0.0
    %2851 = vst [vmem:[#allocation2 + $0x8] sm:$0xff] 0.0
    %2852 = vst [vmem:[#allocation2 + $0x10] sm:$0xff] 0.0
    %2853 = vst [vmem:[#allocation2 + $0x128] sm:$0xff] 0.0
    %2854 = vst [vmem:[#allocation2 + $0x130] sm:$0xff] 0.0
    %2855 = vst [vmem:[#allocation2 + $0x138] sm:$0xff] 0.0
    %2856 = vst [vmem:[#allocation2 + $0x18] sm:$0xff] %v2816
    %2857 = vst [vmem:[#allocation2 + $0x20] sm:$0xff] %v2817
    %2858 = vst [vmem:[#allocation2 + $0x28] sm:$0xff] %v2818
    %2859 = vst [vmem:[#allocation2 + $0x30] sm:$0xff] %v2819
    %2860 = vst [vmem:[#allocation2 + $0x38] sm:$0xff] %v2820
    %2861 = vst [vmem:[#allocation2 + $0x40] sm:$0xff] %v2821
    %2862 = vst [vmem:[#allocation2 + $0x48] sm:$0xff] %v2822
    %2863 = vst [vmem:[#allocation2 + $0x50] sm:$0xff] %v2823
    %2864 = vst [vmem:[#allocation2 + $0x58] sm:$0xff] %v2824
    %2865 = vst [vmem:[#allocation2 + $0x60] sm:$0xff] %v2825
    %2866 = vst [vmem:[#allocation2 + $0x68] sm:$0xff] %v2826
    %2867 = vst [vmem:[#allocation2 + $0x70] sm:$0xff] %v2827
    %2868 = vst [vmem:[#allocation2 + $0x78] sm:$0xff] %v2828
    %2869 = vst [vmem:[#allocation2 + $0x80] sm:$0xff] %v2829
    %2870 = vst [vmem:[#allocation2 + $0x88] sm:$0xff] %v2830
    %2871 = vst [vmem:[#allocation2 + $0x90] sm:$0xff] %v2831
    %2872 = vst [vmem:[#allocation2 + $0x98] sm:$0xff] %v2832
    %2873 = vst [vmem:[#allocation2 + $0xa0] sm:$0xff] %v2833
    %2874 = vst [vmem:[#allocation2 + $0xa8] sm:$0xff] %v2834
    %2875 = vst [vmem:[#allocation2 + $0xb0] sm:$0xff] %v2835
    %2876 = vst [vmem:[#allocation2 + $0xb8] sm:$0xff] %v2836
    %2877 = vst [vmem:[#allocation2 + $0xc0] sm:$0xff] %v2837
    %2878 = vst [vmem:[#allocation2 + $0xc8] sm:$0xff] %v2838
    %2879 = vst [vmem:[#allocation2 + $0xd0] sm:$0xff] %v2839
    %2880 = vst [vmem:[#allocation2 + $0xd8] sm:$0xff] %v2840
    %2881 = vst [vmem:[#allocation2 + $0xe0] sm:$0xff] %v2841
    %2882 = vst [vmem:[#allocation2 + $0xe8] sm:$0xff] %v2842
    %2883 = vst [vmem:[#allocation2 + $0xf0] sm:$0xff] %v2843
    %2884 = vst [vmem:[#allocation2 + $0xf8] sm:$0xff] %v2844
    %2885 = vst [vmem:[#allocation2 + $0x100] sm:$0xff] %v2845
    %2886 = vst [vmem:[#allocation2 + $0x108] sm:$0xff] %v2846
    %2887 = vst [vmem:[#allocation2 + $0x110] sm:$0xff] %v2847
    %2888 = vst [vmem:[#allocation2 + $0x118] sm:$0xff] %v2848
    %2889 = vst [vmem:[#allocation2 + $0x120] sm:$0xff] %v2849
    %v2890 = vld [vmem:[#allocation2 + $0x6] sm:$0xff]
    %v2891 = vld [vmem:[#allocation2 + $0xe] sm:$0xff]
    %v2892 = vld [vmem:[#allocation2 + $0x16] sm:$0xff]
    %v2893 = vld [vmem:[#allocation2 + $0x1e] sm:$0xff]
    %v2894 = vld [vmem:[#allocation2 + $0x26] sm:$0xff]
    %v2895 = vld [vmem:[#allocation2 + $0x2e] sm:$0xff]
    %v2896 = vld [vmem:[#allocation2 + $0x36] sm:$0xff]
    %v2897 = vld [vmem:[#allocation2 + $0x3e] sm:$0xff]
    %v2898 = vld [vmem:[#allocation2 + $0x46] sm:$0xff]
    %v2899 = vld [vmem:[#allocation2 + $0x4e] sm:$0xff]
    %v2900 = vld [vmem:[#allocation2 + $0x56] sm:$0xff]
    %v2901 = vld [vmem:[#allocation2 + $0x5e] sm:$0xff]
    %v2902 = vld [vmem:[#allocation2 + $0x66] sm:$0xff]
    %v2903 = vld [vmem:[#allocation2 + $0x6e] sm:$0xff]
    %v2904 = vld [vmem:[#allocation2 + $0x76] sm:$0xff]
    %v2905 = vld [vmem:[#allocation2 + $0x7e] sm:$0xff]
    %v2906 = vld [vmem:[#allocation2 + $0x86] sm:$0xff]
    %v2907 = vld [vmem:[#allocation2 + $0x8e] sm:$0xff]
    %v2908 = vld [vmem:[#allocation2 + $0x96] sm:$0xff]
    %v2909 = vld [vmem:[#allocation2 + $0x9e] sm:$0xff]
    %v2910 = vld [vmem:[#allocation2 + $0xa6] sm:$0xff]
    %v2911 = vld [vmem:[#allocation2 + $0xae] sm:$0xff]
    %v2912 = vld [vmem:[#allocation2 + $0xb6] sm:$0xff]
    %v2913 = vld [vmem:[#allocation2 + $0xbe] sm:$0xff]
    %v2914 = vld [vmem:[#allocation2 + $0xc6] sm:$0xff]
    %v2915 = vld [vmem:[#allocation2 + $0xce] sm:$0xff]
    %v2916 = vld [vmem:[#allocation2 + $0xd6] sm:$0xff]
    %v2917 = vld [vmem:[#allocation2 + $0xde] sm:$0xff]
    %v2918 = vld [vmem:[#allocation2 + $0xe6] sm:$0xff]
    %v2919 = vld [vmem:[#allocation2 + $0xee] sm:$0xff]
    %v2920 = vld [vmem:[#allocation2 + $0xf6] sm:$0xff]
    %v2921 = vld [vmem:[#allocation2 + $0xfe] sm:$0xff]
    %v2922 = vld [vmem:[#allocation2 + $0x106] sm:$0xff]
    %v2923 = vld [vmem:[#allocation2 + $0x10e] sm:$0xff]
    %v2924 = vpack.c.bf16 %v2891, %v2890
    %v2925 = vpack.c.bf16 %v2893, %v2892
    %v2926 = vpack.c.bf16 %v2895, %v2894
    %v2927 = vpack.c.bf16 %v2897, %v2896
    %v2928 = vpack.c.bf16 %v2899, %v2898
    %v2929 = vpack.c.bf16 %v2901, %v2900
    %v2930 = vpack.c.bf16 %v2903, %v2902
    %v2931 = vpack.c.bf16 %v2905, %v2904
    %v2932 = vpack.c.bf16 %v2907, %v2906
    %v2933 = vpack.c.bf16 %v2909, %v2908
    %v2934 = vpack.c.bf16 %v2911, %v2910
    %v2935 = vpack.c.bf16 %v2913, %v2912
    %v2936 = vpack.c.bf16 %v2915, %v2914
    %v2937 = vpack.c.bf16 %v2917, %v2916
    %v2938 = vpack.c.bf16 %v2919, %v2918
    %v2939 = vpack.c.bf16 %v2921, %v2920
    %v2940 = vpack.c.bf16 %v2923, %v2922
    %v2941 = vld [vmem:[#allocation2 + $0x7] sm:$0xff]
    %v2942 = vld [vmem:[#allocation2 + $0xf] sm:$0xff]
    %v2943 = vld [vmem:[#allocation2 + $0x17] sm:$0xff]
    %v2944 = vld [vmem:[#allocation2 + $0x1f] sm:$0xff]
    %v2945 = vld [vmem:[#allocation2 + $0x27] sm:$0xff]
    %v2946 = vld [vmem:[#allocation2 + $0x2f] sm:$0xff]
    %v2947 = vld [vmem:[#allocation2 + $0x37] sm:$0xff]
    %v2948 = vld [vmem:[#allocation2 + $0x3f] sm:$0xff]
    %v2949 = vld [vmem:[#allocation2 + $0x47] sm:$0xff]
    %v2950 = vld [vmem:[#allocation2 + $0x4f] sm:$0xff]
    %v2951 = vld [vmem:[#allocation2 + $0x57] sm:$0xff]
    %v2952 = vld [vmem:[#allocation2 + $0x5f] sm:$0xff]
    %v2953 = vld [vmem:[#allocation2 + $0x67] sm:$0xff]
    %v2954 = vld [vmem:[#allocation2 + $0x6f] sm:$0xff]
    %v2955 = vld [vmem:[#allocation2 + $0x77] sm:$0xff]
    %v2956 = vld [vmem:[#allocation2 + $0x7f] sm:$0xff]
    %v2957 = vld [vmem:[#allocation2 + $0x87] sm:$0xff]
    %v2958 = vld [vmem:[#allocation2 + $0x8f] sm:$0xff]
    %v2959 = vld [vmem:[#allocation2 + $0x97] sm:$0xff]
    %v2960 = vld [vmem:[#allocation2 + $0x9f] sm:$0xff]
    %v2961 = vld [vmem:[#allocation2 + $0xa7] sm:$0xff]
    %v2962 = vld [vmem:[#allocation2 + $0xaf] sm:$0xff]
    %v2963 = vld [vmem:[#allocation2 + $0xb7] sm:$0xff]
    %v2964 = vld [vmem:[#allocation2 + $0xbf] sm:$0xff]
    %v2965 = vld [vmem:[#allocation2 + $0xc7] sm:$0xff]
    %v2966 = vld [vmem:[#allocation2 + $0xcf] sm:$0xff]
    %v2967 = vld [vmem:[#allocation2 + $0xd7] sm:$0xff]
    %v2968 = vld [vmem:[#allocation2 + $0xdf] sm:$0xff]
    %v2969 = vld [vmem:[#allocation2 + $0xe7] sm:$0xff]
    %v2970 = vld [vmem:[#allocation2 + $0xef] sm:$0xff]
    %v2971 = vld [vmem:[#allocation2 + $0xf7] sm:$0xff]
    %v2972 = vld [vmem:[#allocation2 + $0xff] sm:$0xff]
    %v2973 = vld [vmem:[#allocation2 + $0x107] sm:$0xff]
    %v2974 = vld [vmem:[#allocation2 + $0x10f] sm:$0xff]
    %v2975 = vpack.c.bf16 %v2942, %v2941
    %v2976 = vpack.c.bf16 %v2944, %v2943
    %v2977 = vpack.c.bf16 %v2946, %v2945
    %v2978 = vpack.c.bf16 %v2948, %v2947
    %v2979 = vpack.c.bf16 %v2950, %v2949
    %v2980 = vpack.c.bf16 %v2952, %v2951
    %v2981 = vpack.c.bf16 %v2954, %v2953
    %v2982 = vpack.c.bf16 %v2956, %v2955
    %v2983 = vpack.c.bf16 %v2958, %v2957
    %v2984 = vpack.c.bf16 %v2960, %v2959
    %v2985 = vpack.c.bf16 %v2962, %v2961
    %v2986 = vpack.c.bf16 %v2964, %v2963
    %v2987 = vpack.c.bf16 %v2966, %v2965
    %v2988 = vpack.c.bf16 %v2968, %v2967
    %v2989 = vpack.c.bf16 %v2970, %v2969
    %v2990 = vpack.c.bf16 %v2972, %v2971
    %v2991 = vpack.c.bf16 %v2974, %v2973
    %v2992 = vld [vmem:[#allocation2 + $0x8] sm:$0xff]
    %v2993 = vld [vmem:[#allocation2 + $0x10] sm:$0xff]
    %v2994 = vld [vmem:[#allocation2 + $0x18] sm:$0xff]
    %v2995 = vld [vmem:[#allocation2 + $0x20] sm:$0xff]
    %v2996 = vld [vmem:[#allocation2 + $0x28] sm:$0xff]
    %v2997 = vld [vmem:[#allocation2 + $0x30] sm:$0xff]
    %v2998 = vld [vmem:[#allocation2 + $0x38] sm:$0xff]
    %v2999 = vld [vmem:[#allocation2 + $0x40] sm:$0xff]
    %v3000 = vld [vmem:[#allocation2 + $0x48] sm:$0xff]
    %v3001 = vld [vmem:[#allocation2 + $0x50] sm:$0xff]
    %v3002 = vld [vmem:[#allocation2 + $0x58] sm:$0xff]
    %v3003 = vld [vmem:[#allocation2 + $0x60] sm:$0xff]
    %v3004 = vld [vmem:[#allocation2 + $0x68] sm:$0xff]
    %v3005 = vld [vmem:[#allocation2 + $0x70] sm:$0xff]
    %v3006 = vld [vmem:[#allocation2 + $0x78] sm:$0xff]
    %v3007 = vld [vmem:[#allocation2 + $0x80] sm:$0xff]
    %v3008 = vld [vmem:[#allocation2 + $0x88] sm:$0xff]
    %v3009 = vld [vmem:[#allocation2 + $0x90] sm:$0xff]
    %v3010 = vld [vmem:[#allocation2 + $0x98] sm:$0xff]
    %v3011 = vld [vmem:[#allocation2 + $0xa0] sm:$0xff]
    %v3012 = vld [vmem:[#allocation2 + $0xa8] sm:$0xff]
    %v3013 = vld [vmem:[#allocation2 + $0xb0] sm:$0xff]
    %v3014 = vld [vmem:[#allocation2 + $0xb8] sm:$0xff]
    %v3015 = vld [vmem:[#allocation2 + $0xc0] sm:$0xff]
    %v3016 = vld [vmem:[#allocation2 + $0xc8] sm:$0xff]
    %v3017 = vld [vmem:[#allocation2 + $0xd0] sm:$0xff]
    %v3018 = vld [vmem:[#allocation2 + $0xd8] sm:$0xff]
    %v3019 = vld [vmem:[#allocation2 + $0xe0] sm:$0xff]
    %v3020 = vld [vmem:[#allocation2 + $0xe8] sm:$0xff]
    %v3021 = vld [vmem:[#allocation2 + $0xf0] sm:$0xff]
    %v3022 = vld [vmem:[#allocation2 + $0xf8] sm:$0xff]
    %v3023 = vld [vmem:[#allocation2 + $0x100] sm:$0xff]
    %v3024 = vld [vmem:[#allocation2 + $0x108] sm:$0xff]
    %v3025 = vld [vmem:[#allocation2 + $0x110] sm:$0xff]
    %v3026 = vpack.c.bf16 %v2993, %v2992
    %v3027 = vpack.c.bf16 %v2995, %v2994
    %v3028 = vpack.c.bf16 %v2997, %v2996
    %v3029 = vpack.c.bf16 %v2999, %v2998
    %v3030 = vpack.c.bf16 %v3001, %v3000
    %v3031 = vpack.c.bf16 %v3003, %v3002
    %v3032 = vpack.c.bf16 %v3005, %v3004
    %v3033 = vpack.c.bf16 %v3007, %v3006
    %v3034 = vpack.c.bf16 %v3009, %v3008
    %v3035 = vpack.c.bf16 %v3011, %v3010
    %v3036 = vpack.c.bf16 %v3013, %v3012
    %v3037 = vpack.c.bf16 %v3015, %v3014
    %v3038 = vpack.c.bf16 %v3017, %v3016
    %v3039 = vpack.c.bf16 %v3019, %v3018
    %v3040 = vpack.c.bf16 %v3021, %v3020
    %v3041 = vpack.c.bf16 %v3023, %v3022
    %v3042 = vpack.c.bf16 %v3025, %v3024
    %v3043 = vld [vmem:[#allocation8] sm:$0xf]
    %v3044 = vld [vmem:[#allocation8 + $0x4] sm:$0xf]
    %v3045 = vld [vmem:[#allocation8 + $0x8] sm:$0xf]
    %v3046 = vld [vmem:[#allocation8 + $0xc] sm:$0xf]
    %v3047 = vld [vmem:[#allocation8 + $0x10] sm:$0xf]
    %v3048 = vld [vmem:[#allocation8 + $0x14] sm:$0xf]
    %v3049 = vld [vmem:[#allocation8 + $0x18] sm:$0xf]
    %v3050 = vld [vmem:[#allocation8 + $0x1c] sm:$0xf]
    %v3051 = vld [vmem:[#allocation8 + $0x20] sm:$0xf]
    %v3052 = vld [vmem:[#allocation8 + $0x24] sm:$0xf]
    %v3053 = vld [vmem:[#allocation8 + $0x28] sm:$0xf]
    %v3054 = vld [vmem:[#allocation8 + $0x2c] sm:$0xf]
    %v3055 = vld [vmem:[#allocation8 + $0x30] sm:$0xf]
    %v3056 = vld [vmem:[#allocation8 + $0x34] sm:$0xf]
    %v3057 = vld [vmem:[#allocation8 + $0x38] sm:$0xf]
    %v3058 = vld [vmem:[#allocation8 + $0x3c] sm:$0xf]
    %v3059 = vld [vmem:[#allocation8 + $0x40] sm:$0xf]
    %v3060 = vld [vmem:[#allocation8 + $0x44] sm:$0xf]
    %v3061 = vld [vmem:[#allocation8 + $0x48] sm:$0xf]
    %v3062 = vld [vmem:[#allocation8 + $0x4c] sm:$0xf]
    %v3063 = vld [vmem:[#allocation8 + $0x50] sm:$0xf]
    %v3064 = vld [vmem:[#allocation8 + $0x54] sm:$0xf]
    %v3065 = vld [vmem:[#allocation8 + $0x58] sm:$0xf]
    %v3066 = vld [vmem:[#allocation8 + $0x5c] sm:$0xf]
    %v3067 = vld [vmem:[#allocation8 + $0x60] sm:$0xf]
    %v3068 = vld [vmem:[#allocation8 + $0x64] sm:$0xf]
    %v3069 = vld [vmem:[#allocation8 + $0x68] sm:$0xf]
    %v3070 = vld [vmem:[#allocation8 + $0x6c] sm:$0xf]
    %v3071 = vld [vmem:[#allocation8 + $0x70] sm:$0xf]
    %v3072 = vld [vmem:[#allocation8 + $0x74] sm:$0xf]
    %v3073 = vld [vmem:[#allocation8 + $0x78] sm:$0xf]
    %v3074 = vld [vmem:[#allocation8 + $0x7c] sm:$0xf]
    %v3075 = vld [vmem:[#allocation8 + $0x80] sm:$0xf]
    %v3076 = vld [vmem:[#allocation8 + $0x84] sm:$0xf]
    %v3077 = vld [vmem:[#allocation8 + $0x88] sm:$0xf]
    %v3078 = vld [vmem:[#allocation8 + $0x8c] sm:$0xf]
    %v3079 = vld [vmem:[#allocation8 + $0x90] sm:$0xf]
    %v3080 = vld [vmem:[#allocation8 + $0x94] sm:$0xf]
    %v3081 = vld [vmem:[#allocation8 + $0x98] sm:$0xf]
    %v3082 = vld [vmem:[#allocation8 + $0x9c] sm:$0xf]
    %v3083 = vld [vmem:[#allocation8 + $0xa0] sm:$0xf]
    %v3084 = vld [vmem:[#allocation8 + $0xa4] sm:$0xf]
    %v3085 = vld [vmem:[#allocation8 + $0xa8] sm:$0xf]
    %v3086 = vld [vmem:[#allocation8 + $0xac] sm:$0xf]
    %v3087 = vld [vmem:[#allocation8 + $0xb0] sm:$0xf]
    %v3088 = vld [vmem:[#allocation8 + $0xb4] sm:$0xf]
    %v3089 = vld [vmem:[#allocation8 + $0xb8] sm:$0xf]
    %v3090 = vld [vmem:[#allocation8 + $0xbc] sm:$0xf]
    %v3091 = vld [vmem:[#allocation2 + $0x117] sm:$0xff]
    %v3092 = vld [vmem:[#allocation2 + $0x11f] sm:$0xff]
    %v3093 = vpack.c.bf16 %v3092, %v3091
    %v3094 = vld [vmem:[#allocation2 + $0x118] sm:$0xff]
    %v3095 = vld [vmem:[#allocation2 + $0x120] sm:$0xff]
    %v3096 = vpack.c.bf16 %v3095, %v3094
    %v3097 = vld [vmem:[#allocation2 + $0x19] sm:$0xff]
    %v3098 = vld [vmem:[#allocation2 + $0x21] sm:$0xff]
    %v3099 = vld [vmem:[#allocation2 + $0x29] sm:$0xff]
    %v3100 = vld [vmem:[#allocation2 + $0x31] sm:$0xff]
    %v3101 = vld [vmem:[#allocation2 + $0x39] sm:$0xff]
    %v3102 = vld [vmem:[#allocation2 + $0x41] sm:$0xff]
    %v3103 = vld [vmem:[#allocation2 + $0x49] sm:$0xff]
    %v3104 = vld [vmem:[#allocation2 + $0x51] sm:$0xff]
    %v3105 = vld [vmem:[#allocation2 + $0x59] sm:$0xff]
    %v3106 = vld [vmem:[#allocation2 + $0x61] sm:$0xff]
    %v3107 = vld [vmem:[#allocation2 + $0x69] sm:$0xff]
    %v3108 = vld [vmem:[#allocation2 + $0x71] sm:$0xff]
    %v3109 = vld [vmem:[#allocation2 + $0x79] sm:$0xff]
    %v3110 = vld [vmem:[#allocation2 + $0x81] sm:$0xff]
    %v3111 = vld [vmem:[#allocation2 + $0x89] sm:$0xff]
    %v3112 = vld [vmem:[#allocation2 + $0x91] sm:$0xff]
    %v3113 = vld [vmem:[#allocation2 + $0x99] sm:$0xff]
    %v3114 = vld [vmem:[#allocation2 + $0xa1] sm:$0xff]
    %v3115 = vld [vmem:[#allocation2 + $0xa9] sm:$0xff]
    %v3116 = vld [vmem:[#allocation2 + $0xb1] sm:$0xff]
    %v3117 = vld [vmem:[#allocation2 + $0xb9] sm:$0xff]
    %v3118 = vld [vmem:[#allocation2 + $0xc1] sm:$0xff]
    %v3119 = vld [vmem:[#allocation2 + $0xc9] sm:$0xff]
    %v3120 = vld [vmem:[#allocation2 + $0xd1] sm:$0xff]
    %v3121 = vld [vmem:[#allocation2 + $0xd9] sm:$0xff]
    %v3122 = vld [vmem:[#allocation2 + $0xe1] sm:$0xff]
    %v3123 = vld [vmem:[#allocation2 + $0xe9] sm:$0xff]
    %v3124 = vld [vmem:[#allocation2 + $0xf1] sm:$0xff]
    %v3125 = vld [vmem:[#allocation2 + $0xf9] sm:$0xff]
    %v3126 = vld [vmem:[#allocation2 + $0x101] sm:$0xff]
    %v3127 = vld [vmem:[#allocation2 + $0x109] sm:$0xff]
    %v3128 = vld [vmem:[#allocation2 + $0x111] sm:$0xff]
    %v3129 = vld [vmem:[#allocation2 + $0x119] sm:$0xff]
    %v3130 = vld [vmem:[#allocation2 + $0x121] sm:$0xff]
    %v3131 = vpack.c.bf16 %v3098, %v3097
    %v3132 = vpack.c.bf16 %v3100, %v3099
    %v3133 = vpack.c.bf16 %v3102, %v3101
    %v3134 = vpack.c.bf16 %v3104, %v3103
    %v3135 = vpack.c.bf16 %v3106, %v3105
    %v3136 = vpack.c.bf16 %v3108, %v3107
    %v3137 = vpack.c.bf16 %v3110, %v3109
    %v3138 = vpack.c.bf16 %v3112, %v3111
    %v3139 = vpack.c.bf16 %v3114, %v3113
    %v3140 = vpack.c.bf16 %v3116, %v3115
    %v3141 = vpack.c.bf16 %v3118, %v3117
    %v3142 = vpack.c.bf16 %v3120, %v3119
    %v3143 = vpack.c.bf16 %v3122, %v3121
    %v3144 = vpack.c.bf16 %v3124, %v3123
    %v3145 = vpack.c.bf16 %v3126, %v3125
    %v3146 = vpack.c.bf16 %v3128, %v3127
    %v3147 = vpack.c.bf16 %v3130, %v3129
    %v3148 = vld [vmem:[#allocation8 + $0xc0] sm:$0xf]
    %v3149 = vld [vmem:[#allocation8 + $0xc4] sm:$0xf]
    %v3150 = vld [vmem:[#allocation8 + $0xc8] sm:$0xf]
    %v3151 = vld [vmem:[#allocation8 + $0xcc] sm:$0xf]
    %v3152 = vld [vmem:[#allocation8 + $0xd0] sm:$0xf]
    %v3153 = vld [vmem:[#allocation8 + $0xd4] sm:$0xf]
    %v3154 = vld [vmem:[#allocation8 + $0xd8] sm:$0xf]
    %v3155 = vld [vmem:[#allocation8 + $0xdc] sm:$0xf]
    %v3156 = vld [vmem:[#allocation8 + $0xe0] sm:$0xf]
    %v3157 = vld [vmem:[#allocation8 + $0xe4] sm:$0xf]
    %v3158 = vld [vmem:[#allocation8 + $0xe8] sm:$0xf]
    %v3159 = vld [vmem:[#allocation8 + $0xec] sm:$0xf]
    %v3160 = vld [vmem:[#allocation8 + $0xf0] sm:$0xf]
    %v3161 = vld [vmem:[#allocation8 + $0xf4] sm:$0xf]
    %v3162 = vld [vmem:[#allocation8 + $0xf8] sm:$0xf]
    %v3163 = vld [vmem:[#allocation8 + $0xfc] sm:$0xf]
    %v3164 = vld [vmem:[#allocation8 + $0x100] sm:$0xf]
    %v3165 = vld [vmem:[#allocation8 + $0x104] sm:$0xf]
    %v3166 = vld [vmem:[#allocation8 + $0x108] sm:$0xf]
    %v3167 = vld [vmem:[#allocation8 + $0x10c] sm:$0xf]
    %v3168 = vld [vmem:[#allocation8 + $0x110] sm:$0xf]
    %v3169 = vld [vmem:[#allocation8 + $0x114] sm:$0xf]
    %v3170 = vld [vmem:[#allocation8 + $0x118] sm:$0xf]
    %v3171 = vld [vmem:[#allocation8 + $0x11c] sm:$0xf]
    %v3172 = vld [vmem:[#allocation8 + $0x120] sm:$0xf]
    %v3173 = vld [vmem:[#allocation8 + $0x124] sm:$0xf]
    %v3174 = vld [vmem:[#allocation8 + $0x128] sm:$0xf]
    %v3175 = vld [vmem:[#allocation8 + $0x12c] sm:$0xf]
    %v3176 = vld [vmem:[#allocation8 + $0x130] sm:$0xf]
    %v3177 = vld [vmem:[#allocation8 + $0x134] sm:$0xf]
    %v3178 = vld [vmem:[#allocation8 + $0x138] sm:$0xf]
    %v3179 = vld [vmem:[#allocation8 + $0x13c] sm:$0xf]
    %v3180 = vld [vmem:[#allocation8 + $0x140] sm:$0xf]
    %v3181 = vld [vmem:[#allocation8 + $0x144] sm:$0xf]
    %v3182 = vld [vmem:[#allocation8 + $0x148] sm:$0xf]
    %v3183 = vld [vmem:[#allocation8 + $0x14c] sm:$0xf]
    %v3184 = vld [vmem:[#allocation8 + $0x150] sm:$0xf]
    %v3185 = vld [vmem:[#allocation8 + $0x154] sm:$0xf]
    %v3186 = vld [vmem:[#allocation8 + $0x158] sm:$0xf]
    %v3187 = vld [vmem:[#allocation8 + $0x15c] sm:$0xf]
    %v3188 = vld [vmem:[#allocation8 + $0x160] sm:$0xf]
    %v3189 = vld [vmem:[#allocation8 + $0x164] sm:$0xf]
    %v3190 = vld [vmem:[#allocation8 + $0x168] sm:$0xf]
    %v3191 = vld [vmem:[#allocation8 + $0x16c] sm:$0xf]
    %v3192 = vld [vmem:[#allocation8 + $0x170] sm:$0xf]
    %v3193 = vld [vmem:[#allocation8 + $0x174] sm:$0xf]
    %v3194 = vld [vmem:[#allocation8 + $0x178] sm:$0xf]
    %v3195 = vld [vmem:[#allocation8 + $0x17c] sm:$0xf]
    %v3244 = vunpack.c.l.b16 %v3148
    %v3245 = vunpack.c.l.b16 %v3149
    %v3246 = vunpack.c.l.b16 %v3150
    %v3247 = vunpack.c.l.b16 %v3151
    %v3248 = vunpack.c.l.b16 %v3152
    %v3249 = vunpack.c.l.b16 %v3153
    %v3250 = vunpack.c.l.b16 %v3154
    %v3251 = vunpack.c.l.b16 %v3155
    %v3252 = vunpack.c.l.b16 %v3156
    %v3253 = vunpack.c.l.b16 %v3157
    %v3254 = vunpack.c.l.b16 %v3158
    %v3255 = vunpack.c.l.b16 %v3159
    %v3256 = vunpack.c.l.b16 %v3160
    %v3257 = vunpack.c.l.b16 %v3161
    %v3258 = vunpack.c.l.b16 %v3162
    %v3259 = vunpack.c.l.b16 %v3163
    %v3260 = vunpack.c.l.b16 %v3164
    %v3261 = vunpack.c.l.b16 %v3165
    %v3262 = vunpack.c.l.b16 %v3166
    %v3263 = vunpack.c.l.b16 %v3167
    %v3264 = vunpack.c.l.b16 %v3168
    %v3265 = vunpack.c.l.b16 %v3169
    %v3266 = vunpack.c.l.b16 %v3170
    %v3267 = vunpack.c.l.b16 %v3171
    %v3268 = vunpack.c.l.b16 %v3172
    %v3269 = vunpack.c.l.b16 %v3173
    %v3270 = vunpack.c.l.b16 %v3174
    %v3271 = vunpack.c.l.b16 %v3175
    %v3272 = vunpack.c.l.b16 %v3176
    %v3273 = vunpack.c.l.b16 %v3177
    %v3274 = vunpack.c.l.b16 %v3178
    %v3275 = vunpack.c.l.b16 %v3179
    %v3276 = vunpack.c.l.b16 %v3180
    %v3277 = vunpack.c.l.b16 %v3181
    %v3278 = vunpack.c.l.b16 %v3182
    %v3279 = vunpack.c.l.b16 %v3183
    %v3280 = vunpack.c.l.b16 %v3184
    %v3281 = vunpack.c.l.b16 %v3185
    %v3282 = vunpack.c.l.b16 %v3186
    %v3283 = vunpack.c.l.b16 %v3187
    %v3284 = vunpack.c.l.b16 %v3188
    %v3285 = vunpack.c.l.b16 %v3189
    %v3286 = vunpack.c.l.b16 %v3190
    %v3287 = vunpack.c.l.b16 %v3191
    %v3288 = vunpack.c.l.b16 %v3192
    %v3289 = vunpack.c.l.b16 %v3193
    %v3290 = vunpack.c.l.b16 %v3194
    %v3291 = vunpack.c.l.b16 %v3195
    %v3292 = vpack.c.b16 %v3245, %v3244
    %v3293 = vpack.c.b16 %v3247, %v3246
    %v3294 = vpack.c.b16 %v3249, %v3248
    %v3295 = vpack.c.b16 %v3251, %v3250
    %v3296 = vpack.c.b16 %v3253, %v3252
    %v3297 = vpack.c.b16 %v3255, %v3254
    %v3298 = vpack.c.b16 %v3257, %v3256
    %v3299 = vpack.c.b16 %v3259, %v3258
    %v3300 = vpack.c.b16 %v3261, %v3260
    %v3301 = vpack.c.b16 %v3263, %v3262
    %v3302 = vpack.c.b16 %v3265, %v3264
    %v3303 = vpack.c.b16 %v3267, %v3266
    %v3304 = vpack.c.b16 %v3269, %v3268
    %v3305 = vpack.c.b16 %v3271, %v3270
    %v3306 = vpack.c.b16 %v3273, %v3272
    %v3307 = vpack.c.b16 %v3275, %v3274
    %v3308 = vpack.c.b16 %v3277, %v3276
    %v3309 = vpack.c.b16 %v3279, %v3278
    %v3310 = vpack.c.b16 %v3281, %v3280
    %v3311 = vpack.c.b16 %v3283, %v3282
    %v3312 = vpack.c.b16 %v3285, %v3284
    %v3313 = vpack.c.b16 %v3287, %v3286
    %v3314 = vpack.c.b16 %v3289, %v3288
    %v3315 = vpack.c.b16 %v3291, %v3290
    %3340 = vmatprep.subr.bf16.mxu0 0
    %3341 = vmatpush1.bf16.msra.mxu0 %v3299
    %3342 = vmatprep.subr.bf16.mxu0 0
    %3343 = vmatpush1.bf16.msra.mxu0 %v3298
    %3344 = vmatprep.subr.bf16.mxu0 0
    %3345 = vmatpush1.bf16.msra.mxu0 %v3297
    %3346 = vmatprep.subr.bf16.mxu0 0
    %3347 = vmatpush1.bf16.msra.mxu0 %v3296
    %3348 = vmatprep.subr.bf16.mxu0 0
    %3349 = vmatpush1.bf16.msra.mxu0 %v3295
    %3350 = vmatprep.subr.bf16.mxu0 0
    %3351 = vmatpush1.bf16.msra.mxu0 %v3294
    %3352 = vmatprep.subr.bf16.mxu0 0
    %3353 = vmatpush1.bf16.msra.mxu0 %v3293
    %3354 = vmatprep.subr.bf16.mxu0 0
    %3355 = vmatpush1.bf16.msra.mxu0 %v3292
    %3356 = vmatprep.subr.bf16.mxu0 0
    %3357 = vmatpush2.bf16.msra.mxu0 %v3307
    %3358 = vmatprep.subr.bf16.mxu0 0
    %3359 = vmatpush2.bf16.msra.mxu0 %v3306
    %3360 = vmatprep.subr.bf16.mxu0 0
    %3361 = vmatpush2.bf16.msra.mxu0 %v3305
    %3362 = vmatprep.subr.bf16.mxu0 0
    %3363 = vmatpush2.bf16.msra.mxu0 %v3304
    %3364 = vmatprep.subr.bf16.mxu0 0
    %3365 = vmatpush2.bf16.msra.mxu0 %v3303
    %3366 = vmatprep.subr.bf16.mxu0 0
    %3367 = vmatpush2.bf16.msra.mxu0 %v3302
    %3368 = vmatprep.subr.bf16.mxu0 0
    %3369 = vmatpush2.bf16.msra.mxu0 %v3301
    %3370 = vmatprep.subr.bf16.mxu0 0
    %3371 = vmatpush2.bf16.msra.mxu0 %v3300
    %3372 = vmatprep.mubr.bf16.mxu0 %v3027
    %3373 = vmatmul.mubr.bf16.gmra.mxu0 %v2976
    %v3374 = vpop.f32.mrf.mxu0
    %v3375 = vadd.f32 0.0, %v3374
    %v3376 = vpop.f32.mrf.mxu0
    %v3377 = vpop.f32.mrf.mxu0
    %v3378 = vadd.f32 0.0, %v3377
    %v3379 = vpop.f32.mrf.mxu0
    %3380 = vmatprep.mubr.bf16.mxu0 %v3028
    %3381 = vmatmul.mubr.bf16.gmra.mxu0 %v2977
    %v3382 = vpop.f32.mrf.mxu0
    %v3383 = vadd.f32 0.0, %v3382
    %v3384 = vpop.f32.mrf.mxu0
    %v3385 = vpop.f32.mrf.mxu0
    %v3386 = vadd.f32 0.0, %v3385
    %v3387 = vpop.f32.mrf.mxu0
    %3388 = vmatprep.mubr.bf16.mxu0 %v3029
    %3389 = vmatmul.mubr.bf16.gmra.mxu0 %v2978
    %v3390 = vpop.f32.mrf.mxu0
    %v3391 = vadd.f32 0.0, %v3390
    %v3392 = vpop.f32.mrf.mxu0
    %v3393 = vpop.f32.mrf.mxu0
    %v3394 = vadd.f32 0.0, %v3393
    %v3395 = vpop.f32.mrf.mxu0
    %3396 = vmatprep.mubr.bf16.mxu0 %v3030
    %3397 = vmatmul.mubr.bf16.gmra.mxu0 %v2979
    %v3398 = vpop.f32.mrf.mxu0
    %v3399 = vadd.f32 0.0, %v3398
    %v3400 = vpop.f32.mrf.mxu0
    %v3401 = vpop.f32.mrf.mxu0
    %v3402 = vadd.f32 0.0, %v3401
    %v3403 = vpop.f32.mrf.mxu0
    %3404 = vmatprep.mubr.bf16.mxu0 %v3031
    %3405 = vmatmul.mubr.bf16.gmra.mxu0 %v2980
    %v3406 = vpop.f32.mrf.mxu0
    %v3407 = vadd.f32 0.0, %v3406
    %v3408 = vpop.f32.mrf.mxu0
    %v3409 = vpop.f32.mrf.mxu0
    %v3410 = vadd.f32 0.0, %v3409
    %v3411 = vpop.f32.mrf.mxu0
    %3412 = vmatprep.mubr.bf16.mxu0 %v3032
    %3413 = vmatmul.mubr.bf16.gmra.mxu0 %v2981
    %v3414 = vpop.f32.mrf.mxu0
    %v3415 = vadd.f32 0.0, %v3414
    %v3416 = vpop.f32.mrf.mxu0
    %v3417 = vpop.f32.mrf.mxu0
    %v3418 = vadd.f32 0.0, %v3417
    %v3419 = vpop.f32.mrf.mxu0
    %3420 = vmatprep.mubr.bf16.mxu0 %v3033
    %3421 = vmatmul.mubr.bf16.gmra.mxu0 %v2982
    %v3422 = vpop.f32.mrf.mxu0
    %v3423 = vadd.f32 0.0, %v3422
    %v3424 = vpop.f32.mrf.mxu0
    %v3425 = vpop.f32.mrf.mxu0
    %v3426 = vadd.f32 0.0, %v3425
    %v3427 = vpop.f32.mrf.mxu0
    %3428 = vmatprep.mubr.bf16.mxu0 %v3034
    %3429 = vmatmul.mubr.bf16.gmra.mxu0 %v2983
    %v3430 = vpop.f32.mrf.mxu0
    %v3431 = vadd.f32 0.0, %v3430
    %v3432 = vpop.f32.mrf.mxu0
    %v3433 = vpop.f32.mrf.mxu0
    %v3434 = vadd.f32 0.0, %v3433
    %v3435 = vpop.f32.mrf.mxu0
    %3436 = vmatprep.mubr.bf16.mxu0 %v3035
    %3437 = vmatmul.mubr.bf16.gmra.mxu0 %v2984
    %v3438 = vpop.f32.mrf.mxu0
    %v3439 = vadd.f32 0.0, %v3438
    %v3440 = vpop.f32.mrf.mxu0
    %v3441 = vpop.f32.mrf.mxu0
    %v3442 = vadd.f32 0.0, %v3441
    %v3443 = vpop.f32.mrf.mxu0
    %3444 = vmatprep.mubr.bf16.mxu0 %v3036
    %3445 = vmatmul.mubr.bf16.gmra.mxu0 %v2985
    %v3446 = vpop.f32.mrf.mxu0
    %v3447 = vadd.f32 0.0, %v3446
    %v3448 = vpop.f32.mrf.mxu0
    %v3449 = vpop.f32.mrf.mxu0
    %v3450 = vadd.f32 0.0, %v3449
    %v3451 = vpop.f32.mrf.mxu0
    %3452 = vmatprep.mubr.bf16.mxu0 %v3037
    %3453 = vmatmul.mubr.bf16.gmra.mxu0 %v2986
    %v3454 = vpop.f32.mrf.mxu0
    %v3455 = vadd.f32 0.0, %v3454
    %v3456 = vpop.f32.mrf.mxu0
    %v3457 = vpop.f32.mrf.mxu0
    %v3458 = vadd.f32 0.0, %v3457
    %v3459 = vpop.f32.mrf.mxu0
    %3460 = vmatprep.mubr.bf16.mxu0 %v3038
    %3461 = vmatmul.mubr.bf16.gmra.mxu0 %v2987
    %v3462 = vpop.f32.mrf.mxu0
    %v3463 = vadd.f32 0.0, %v3462
    %v3464 = vpop.f32.mrf.mxu0
    %v3465 = vpop.f32.mrf.mxu0
    %v3466 = vadd.f32 0.0, %v3465
    %v3467 = vpop.f32.mrf.mxu0
    %3468 = vmatprep.mubr.bf16.mxu0 %v3039
    %3469 = vmatmul.mubr.bf16.gmra.mxu0 %v2988
    %v3470 = vpop.f32.mrf.mxu0
    %v3471 = vadd.f32 0.0, %v3470
    %v3472 = vpop.f32.mrf.mxu0
    %v3473 = vpop.f32.mrf.mxu0
    %v3474 = vadd.f32 0.0, %v3473
    %v3475 = vpop.f32.mrf.mxu0
    %3476 = vmatprep.mubr.bf16.mxu0 %v3040
    %3477 = vmatmul.mubr.bf16.gmra.mxu0 %v2989
    %v3478 = vpop.f32.mrf.mxu0
    %v3479 = vadd.f32 0.0, %v3478
    %v3480 = vpop.f32.mrf.mxu0
    %v3481 = vpop.f32.mrf.mxu0
    %v3482 = vadd.f32 0.0, %v3481
    %v3483 = vpop.f32.mrf.mxu0
    %3484 = vmatprep.mubr.bf16.mxu0 %v3041
    %3485 = vmatmul.mubr.bf16.gmra.mxu0 %v2990
    %v3486 = vpop.f32.mrf.mxu0
    %v3487 = vadd.f32 0.0, %v3486
    %v3488 = vpop.f32.mrf.mxu0
    %v3489 = vpop.f32.mrf.mxu0
    %v3490 = vadd.f32 0.0, %v3489
    %v3491 = vpop.f32.mrf.mxu0
    %3492 = vmatprep.mubr.bf16.mxu0 %v3042
    %3493 = vmatmul.mubr.bf16.gmra.mxu0 %v2991
    %v3494 = vpop.f32.mrf.mxu0
    %v3495 = vadd.f32 0.0, %v3494
    %v3496 = vpop.f32.mrf.mxu0
    %v3497 = vpop.f32.mrf.mxu0
    %v3498 = vadd.f32 0.0, %v3497
    %v3499 = vpop.f32.mrf.mxu0
    %3500 = vmatprep.mubr.bf16.mxu0 %v3096
    %3501 = vmatmul.mubr.bf16.gmra.mxu0 %v3093
    %v3502 = vpop.f32.mrf.mxu0
    %v3503 = vadd.f32 0.0, %v3502
    %v3504 = vpop.f32.mrf.mxu0
    %v3505 = vpop.f32.mrf.mxu0
    %v3506 = vadd.f32 0.0, %v3505
    %v3507 = vpop.f32.mrf.mxu0
    %3508 = vdwg.mxu0
    %3509 = vmatprep.subr.bf16.mxu0 0
    %3510 = vmatpush1.bf16.msra.mxu0 %v3315
    %3511 = vmatprep.subr.bf16.mxu0 0
    %3512 = vmatpush1.bf16.msra.mxu0 %v3314
    %3513 = vmatprep.subr.bf16.mxu0 0
    %3514 = vmatpush1.bf16.msra.mxu0 %v3313
    %3515 = vmatprep.subr.bf16.mxu0 0
    %3516 = vmatpush1.bf16.msra.mxu0 %v3312
    %3517 = vmatprep.subr.bf16.mxu0 0
    %3518 = vmatpush1.bf16.msra.mxu0 %v3311
    %3519 = vmatprep.subr.bf16.mxu0 0
    %3520 = vmatpush1.bf16.msra.mxu0 %v3310
    %3521 = vmatprep.subr.bf16.mxu0 0
    %3522 = vmatpush1.bf16.msra.mxu0 %v3309
    %3523 = vmatprep.subr.bf16.mxu0 0
    %3524 = vmatpush1.bf16.msra.mxu0 %v3308
    %3525 = vmatprep.subr.bf16.mxu0 0
    %3526 = vmatpush2.bf16.msra.mxu0 0
    %3527 = vmatprep.subr.bf16.mxu0 0
    %3528 = vmatpush2.bf16.msra.mxu0 0
    %3529 = vmatprep.subr.bf16.mxu0 0
    %3530 = vmatpush2.bf16.msra.mxu0 0
    %3531 = vmatprep.subr.bf16.mxu0 0
    %3532 = vmatpush2.bf16.msra.mxu0 0
    %3533 = vmatprep.subr.bf16.mxu0 0
    %3534 = vmatpush2.bf16.msra.mxu0 0
    %3535 = vmatprep.subr.bf16.mxu0 0
    %3536 = vmatpush2.bf16.msra.mxu0 0
    %3537 = vmatprep.subr.bf16.mxu0 0
    %3538 = vmatpush2.bf16.msra.mxu0 0
    %3539 = vmatprep.subr.bf16.mxu0 0
    %3540 = vmatpush2.bf16.msra.mxu0 0
    %3541 = vmatprep.mubr.bf16.mxu0 0
    %3542 = vmatmul.mubr.bf16.gmra.mxu0 %v3131
    %v3543 = vpop.f32.mrf.mxu0
    %v3544 = vadd.f32 %v3375, %v3543
    %v3545 = vpop.f32.mrf.mxu0
    %v3546 = vpop.f32.mrf.mxu0
    %v3547 = vadd.f32 %v3378, %v3546
    %v3548 = vpop.f32.mrf.mxu0
    %3549 = vmatprep.mubr.bf16.mxu0 0
    %3550 = vmatmul.mubr.bf16.gmra.mxu0 %v3132
    %v3551 = vpop.f32.mrf.mxu0
    %v3552 = vadd.f32 %v3383, %v3551
    %v3553 = vpop.f32.mrf.mxu0
    %v3554 = vpop.f32.mrf.mxu0
    %v3555 = vadd.f32 %v3386, %v3554
    %v3556 = vpop.f32.mrf.mxu0
    %3557 = vmatprep.mubr.bf16.mxu0 0
    %3558 = vmatmul.mubr.bf16.gmra.mxu0 %v3133
    %v3559 = vpop.f32.mrf.mxu0
    %v3560 = vadd.f32 %v3391, %v3559
    %v3561 = vpop.f32.mrf.mxu0
    %v3562 = vpop.f32.mrf.mxu0
    %v3563 = vadd.f32 %v3394, %v3562
    %v3564 = vpop.f32.mrf.mxu0
    %3565 = vmatprep.mubr.bf16.mxu0 0
    %3566 = vmatmul.mubr.bf16.gmra.mxu0 %v3134
    %v3567 = vpop.f32.mrf.mxu0
    %v3568 = vadd.f32 %v3399, %v3567
    %v3569 = vpop.f32.mrf.mxu0
    %v3570 = vpop.f32.mrf.mxu0
    %v3571 = vadd.f32 %v3402, %v3570
    %v3572 = vpop.f32.mrf.mxu0
    %3573 = vmatprep.mubr.bf16.mxu0 0
    %3574 = vmatmul.mubr.bf16.gmra.mxu0 %v3135
    %v3575 = vpop.f32.mrf.mxu0
    %v3576 = vadd.f32 %v3407, %v3575
    %v3577 = vpop.f32.mrf.mxu0
    %v3578 = vpop.f32.mrf.mxu0
    %v3579 = vadd.f32 %v3410, %v3578
    %v3580 = vpop.f32.mrf.mxu0
    %3581 = vmatprep.mubr.bf16.mxu0 0
    %3582 = vmatmul.mubr.bf16.gmra.mxu0 %v3136
    %v3583 = vpop.f32.mrf.mxu0
    %v3584 = vadd.f32 %v3415, %v3583
    %v3585 = vpop.f32.mrf.mxu0
    %v3586 = vpop.f32.mrf.mxu0
    %v3587 = vadd.f32 %v3418, %v3586
    %v3588 = vpop.f32.mrf.mxu0
    %3589 = vmatprep.mubr.bf16.mxu0 0
    %3590 = vmatmul.mubr.bf16.gmra.mxu0 %v3137
    %v3591 = vpop.f32.mrf.mxu0
    %v3592 = vadd.f32 %v3423, %v3591
    %v3593 = vpop.f32.mrf.mxu0
    %v3594 = vpop.f32.mrf.mxu0
    %v3595 = vadd.f32 %v3426, %v3594
    %v3596 = vpop.f32.mrf.mxu0
    %3597 = vmatprep.mubr.bf16.mxu0 0
    %3598 = vmatmul.mubr.bf16.gmra.mxu0 %v3138
    %v3599 = vpop.f32.mrf.mxu0
    %v3600 = vadd.f32 %v3431, %v3599
    %v3601 = vpop.f32.mrf.mxu0
    %v3602 = vpop.f32.mrf.mxu0
    %v3603 = vadd.f32 %v3434, %v3602
    %v3604 = vpop.f32.mrf.mxu0
    %3605 = vmatprep.mubr.bf16.mxu0 0
    %3606 = vmatmul.mubr.bf16.gmra.mxu0 %v3139
    %v3607 = vpop.f32.mrf.mxu0
    %v3608 = vadd.f32 %v3439, %v3607
    %v3609 = vpop.f32.mrf.mxu0
    %v3610 = vpop.f32.mrf.mxu0
    %v3611 = vadd.f32 %v3442, %v3610
    %v3612 = vpop.f32.mrf.mxu0
    %3613 = vmatprep.mubr.bf16.mxu0 0
    %3614 = vmatmul.mubr.bf16.gmra.mxu0 %v3140
    %v3615 = vpop.f32.mrf.mxu0
    %v3616 = vadd.f32 %v3447, %v3615
    %v3617 = vpop.f32.mrf.mxu0
    %v3618 = vpop.f32.mrf.mxu0
    %v3619 = vadd.f32 %v3450, %v3618
    %v3620 = vpop.f32.mrf.mxu0
    %3621 = vmatprep.mubr.bf16.mxu0 0
    %3622 = vmatmul.mubr.bf16.gmra.mxu0 %v3141
    %v3623 = vpop.f32.mrf.mxu0
    %v3624 = vadd.f32 %v3455, %v3623
    %v3625 = vpop.f32.mrf.mxu0
    %v3626 = vpop.f32.mrf.mxu0
    %v3627 = vadd.f32 %v3458, %v3626
    %v3628 = vpop.f32.mrf.mxu0
    %3629 = vmatprep.mubr.bf16.mxu0 0
    %3630 = vmatmul.mubr.bf16.gmra.mxu0 %v3142
    %v3631 = vpop.f32.mrf.mxu0
    %v3632 = vadd.f32 %v3463, %v3631
    %v3633 = vpop.f32.mrf.mxu0
    %v3634 = vpop.f32.mrf.mxu0
    %v3635 = vadd.f32 %v3466, %v3634
    %v3636 = vpop.f32.mrf.mxu0
    %3637 = vmatprep.mubr.bf16.mxu0 0
    %3638 = vmatmul.mubr.bf16.gmra.mxu0 %v3143
    %v3639 = vpop.f32.mrf.mxu0
    %v3640 = vadd.f32 %v3471, %v3639
    %v3641 = vpop.f32.mrf.mxu0
    %v3642 = vpop.f32.mrf.mxu0
    %v3643 = vadd.f32 %v3474, %v3642
    %v3644 = vpop.f32.mrf.mxu0
    %3645 = vmatprep.mubr.bf16.mxu0 0
    %3646 = vmatmul.mubr.bf16.gmra.mxu0 %v3144
    %v3647 = vpop.f32.mrf.mxu0
    %v3648 = vadd.f32 %v3479, %v3647
    %v3649 = vpop.f32.mrf.mxu0
    %v3650 = vpop.f32.mrf.mxu0
    %v3651 = vadd.f32 %v3482, %v3650
    %v3652 = vpop.f32.mrf.mxu0
    %3653 = vmatprep.mubr.bf16.mxu0 0
    %3654 = vmatmul.mubr.bf16.gmra.mxu0 %v3145
    %v3655 = vpop.f32.mrf.mxu0
    %v3656 = vadd.f32 %v3487, %v3655
    %v3657 = vpop.f32.mrf.mxu0
    %v3658 = vpop.f32.mrf.mxu0
    %v3659 = vadd.f32 %v3490, %v3658
    %v3660 = vpop.f32.mrf.mxu0
    %3661 = vmatprep.mubr.bf16.mxu0 0
    %3662 = vmatmul.mubr.bf16.gmra.mxu0 %v3146
    %v3663 = vpop.f32.mrf.mxu0
    %v3664 = vadd.f32 %v3495, %v3663
    %v3665 = vpop.f32.mrf.mxu0
    %v3666 = vpop.f32.mrf.mxu0
    %v3667 = vadd.f32 %v3498, %v3666
    %v3668 = vpop.f32.mrf.mxu0
    %3669 = vmatprep.mubr.bf16.mxu0 0
    %3670 = vmatmul.mubr.bf16.gmra.mxu0 %v3147
    %v3671 = vpop.f32.mrf.mxu0
    %v3672 = vadd.f32 %v3503, %v3671
    %v3673 = vpop.f32.mrf.mxu0
    %v3674 = vpop.f32.mrf.mxu0
    %v3675 = vadd.f32 %v3506, %v3674
    %v3676 = vpop.f32.mrf.mxu0
    %3677 = vdwg.mxu0
    %v3726 = vunpack.c.l.b16 %v3043
    %v3727 = vunpack.c.l.b16 %v3044
    %v3728 = vunpack.c.l.b16 %v3045
    %v3729 = vunpack.c.l.b16 %v3046
    %v3730 = vunpack.c.l.b16 %v3047
    %v3731 = vunpack.c.l.b16 %v3048
    %v3732 = vunpack.c.l.b16 %v3049
    %v3733 = vunpack.c.l.b16 %v3050
    %v3734 = vunpack.c.l.b16 %v3051
    %v3735 = vunpack.c.l.b16 %v3052
    %v3736 = vunpack.c.l.b16 %v3053
    %v3737 = vunpack.c.l.b16 %v3054
    %v3738 = vunpack.c.l.b16 %v3055
    %v3739 = vunpack.c.l.b16 %v3056
    %v3740 = vunpack.c.l.b16 %v3057
    %v3741 = vunpack.c.l.b16 %v3058
    %v3742 = vunpack.c.l.b16 %v3059
    %v3743 = vunpack.c.l.b16 %v3060
    %v3744 = vunpack.c.l.b16 %v3061
    %v3745 = vunpack.c.l.b16 %v3062
    %v3746 = vunpack.c.l.b16 %v3063
    %v3747 = vunpack.c.l.b16 %v3064
    %v3748 = vunpack.c.l.b16 %v3065
    %v3749 = vunpack.c.l.b16 %v3066
    %v3750 = vunpack.c.l.b16 %v3067
    %v3751 = vunpack.c.l.b16 %v3068
    %v3752 = vunpack.c.l.b16 %v3069
    %v3753 = vunpack.c.l.b16 %v3070
    %v3754 = vunpack.c.l.b16 %v3071
    %v3755 = vunpack.c.l.b16 %v3072
    %v3756 = vunpack.c.l.b16 %v3073
    %v3757 = vunpack.c.l.b16 %v3074
    %v3758 = vunpack.c.l.b16 %v3075
    %v3759 = vunpack.c.l.b16 %v3076
    %v3760 = vunpack.c.l.b16 %v3077
    %v3761 = vunpack.c.l.b16 %v3078
    %v3762 = vunpack.c.l.b16 %v3079
    %v3763 = vunpack.c.l.b16 %v3080
    %v3764 = vunpack.c.l.b16 %v3081
    %v3765 = vunpack.c.l.b16 %v3082
    %v3766 = vunpack.c.l.b16 %v3083
    %v3767 = vunpack.c.l.b16 %v3084
    %v3768 = vunpack.c.l.b16 %v3085
    %v3769 = vunpack.c.l.b16 %v3086
    %v3770 = vunpack.c.l.b16 %v3087
    %v3771 = vunpack.c.l.b16 %v3088
    %v3772 = vunpack.c.l.b16 %v3089
    %v3773 = vunpack.c.l.b16 %v3090
    %v3774 = vpack.c.b16 %v3727, %v3726
    %v3775 = vpack.c.b16 %v3729, %v3728
    %v3776 = vpack.c.b16 %v3731, %v3730
    %v3777 = vpack.c.b16 %v3733, %v3732
    %v3778 = vpack.c.b16 %v3735, %v3734
    %v3779 = vpack.c.b16 %v3737, %v3736
    %v3780 = vpack.c.b16 %v3739, %v3738
    %v3781 = vpack.c.b16 %v3741, %v3740
    %v3782 = vpack.c.b16 %v3743, %v3742
    %v3783 = vpack.c.b16 %v3745, %v3744
    %v3784 = vpack.c.b16 %v3747, %v3746
    %v3785 = vpack.c.b16 %v3749, %v3748
    %v3786 = vpack.c.b16 %v3751, %v3750
    %v3787 = vpack.c.b16 %v3753, %v3752
    %v3788 = vpack.c.b16 %v3755, %v3754
    %v3789 = vpack.c.b16 %v3757, %v3756
    %v3790 = vpack.c.b16 %v3759, %v3758
    %v3791 = vpack.c.b16 %v3761, %v3760
    %v3792 = vpack.c.b16 %v3763, %v3762
    %v3793 = vpack.c.b16 %v3765, %v3764
    %v3794 = vpack.c.b16 %v3767, %v3766
    %v3795 = vpack.c.b16 %v3769, %v3768
    %v3796 = vpack.c.b16 %v3771, %v3770
    %v3797 = vpack.c.b16 %v3773, %v3772
    %3822 = vmatprep.subr.bf16.mxu0 0
    %3823 = vmatpush1.bf16.msra.mxu0 %v3781
    %3824 = vmatprep.subr.bf16.mxu0 0
    %3825 = vmatpush1.bf16.msra.mxu0 %v3780
    %3826 = vmatprep.subr.bf16.mxu0 0
    %3827 = vmatpush1.bf16.msra.mxu0 %v3779
    %3828 = vmatprep.subr.bf16.mxu0 0
    %3829 = vmatpush1.bf16.msra.mxu0 %v3778
    %3830 = vmatprep.subr.bf16.mxu0 0
    %3831 = vmatpush1.bf16.msra.mxu0 %v3777
    %3832 = vmatprep.subr.bf16.mxu0 0
    %3833 = vmatpush1.bf16.msra.mxu0 %v3776
    %3834 = vmatprep.subr.bf16.mxu0 0
    %3835 = vmatpush1.bf16.msra.mxu0 %v3775
    %3836 = vmatprep.subr.bf16.mxu0 0
    %3837 = vmatpush1.bf16.msra.mxu0 %v3774
    %3838 = vmatprep.subr.bf16.mxu0 0
    %3839 = vmatpush2.bf16.msra.mxu0 %v3789
    %3840 = vmatprep.subr.bf16.mxu0 0
    %3841 = vmatpush2.bf16.msra.mxu0 %v3788
    %3842 = vmatprep.subr.bf16.mxu0 0
    %3843 = vmatpush2.bf16.msra.mxu0 %v3787
    %3844 = vmatprep.subr.bf16.mxu0 0
    %3845 = vmatpush2.bf16.msra.mxu0 %v3786
    %3846 = vmatprep.subr.bf16.mxu0 0
    %3847 = vmatpush2.bf16.msra.mxu0 %v3785
    %3848 = vmatprep.subr.bf16.mxu0 0
    %3849 = vmatpush2.bf16.msra.mxu0 %v3784
    %3850 = vmatprep.subr.bf16.mxu0 0
    %3851 = vmatpush2.bf16.msra.mxu0 %v3783
    %3852 = vmatprep.subr.bf16.mxu0 0
    %3853 = vmatpush2.bf16.msra.mxu0 %v3782
    %3854 = vmatprep.mubr.bf16.mxu0 %v2975
    %3855 = vmatmul.mubr.bf16.gmra.mxu0 %v2924
    %v3856 = vpop.f32.mrf.mxu0
    %v3857 = vadd.f32 %v3544, %v3856
    %v3858 = vpop.f32.mrf.mxu0
    %v3859 = vpop.f32.mrf.mxu0
    %v3860 = vadd.f32 %v3547, %v3859
    %v3861 = vpop.f32.mrf.mxu0
    %3862 = vmatprep.mubr.bf16.mxu0 %v2976
    %3863 = vmatmul.mubr.bf16.gmra.mxu0 %v2925
    %v3864 = vpop.f32.mrf.mxu0
    %v3865 = vadd.f32 %v3552, %v3864
    %v3866 = vpop.f32.mrf.mxu0
    %v3867 = vpop.f32.mrf.mxu0
    %v3868 = vadd.f32 %v3555, %v3867
    %v3869 = vpop.f32.mrf.mxu0
    %3870 = vmatprep.mubr.bf16.mxu0 %v2977
    %3871 = vmatmul.mubr.bf16.gmra.mxu0 %v2926
    %v3872 = vpop.f32.mrf.mxu0
    %v3873 = vadd.f32 %v3560, %v3872
    %v3874 = vpop.f32.mrf.mxu0
    %v3875 = vpop.f32.mrf.mxu0
    %v3876 = vadd.f32 %v3563, %v3875
    %v3877 = vpop.f32.mrf.mxu0
    %3878 = vmatprep.mubr.bf16.mxu0 %v2978
    %3879 = vmatmul.mubr.bf16.gmra.mxu0 %v2927
    %v3880 = vpop.f32.mrf.mxu0
    %v3881 = vadd.f32 %v3568, %v3880
    %v3882 = vpop.f32.mrf.mxu0
    %v3883 = vpop.f32.mrf.mxu0
    %v3884 = vadd.f32 %v3571, %v3883
    %v3885 = vpop.f32.mrf.mxu0
    %3886 = vmatprep.mubr.bf16.mxu0 %v2979
    %3887 = vmatmul.mubr.bf16.gmra.mxu0 %v2928
    %v3888 = vpop.f32.mrf.mxu0
    %v3889 = vadd.f32 %v3576, %v3888
    %v3890 = vpop.f32.mrf.mxu0
    %v3891 = vpop.f32.mrf.mxu0
    %v3892 = vadd.f32 %v3579, %v3891
    %v3893 = vpop.f32.mrf.mxu0
    %3894 = vmatprep.mubr.bf16.mxu0 %v2980
    %3895 = vmatmul.mubr.bf16.gmra.mxu0 %v2929
    %v3896 = vpop.f32.mrf.mxu0
    %v3897 = vadd.f32 %v3584, %v3896
    %v3898 = vpop.f32.mrf.mxu0
    %v3899 = vpop.f32.mrf.mxu0
    %v3900 = vadd.f32 %v3587, %v3899
    %v3901 = vpop.f32.mrf.mxu0
    %3902 = vmatprep.mubr.bf16.mxu0 %v2981
    %3903 = vmatmul.mubr.bf16.gmra.mxu0 %v2930
    %v3904 = vpop.f32.mrf.mxu0
    %v3905 = vadd.f32 %v3592, %v3904
    %v3906 = vpop.f32.mrf.mxu0
    %v3907 = vpop.f32.mrf.mxu0
    %v3908 = vadd.f32 %v3595, %v3907
    %v3909 = vpop.f32.mrf.mxu0
    %3910 = vmatprep.mubr.bf16.mxu0 %v2982
    %3911 = vmatmul.mubr.bf16.gmra.mxu0 %v2931
    %v3912 = vpop.f32.mrf.mxu0
    %v3913 = vadd.f32 %v3600, %v3912
    %v3914 = vpop.f32.mrf.mxu0
    %v3915 = vpop.f32.mrf.mxu0
    %v3916 = vadd.f32 %v3603, %v3915
    %v3917 = vpop.f32.mrf.mxu0
    %3918 = vmatprep.mubr.bf16.mxu0 %v2983
    %3919 = vmatmul.mubr.bf16.gmra.mxu0 %v2932
    %v3920 = vpop.f32.mrf.mxu0
    %v3921 = vadd.f32 %v3608, %v3920
    %v3922 = vpop.f32.mrf.mxu0
    %v3923 = vpop.f32.mrf.mxu0
    %v3924 = vadd.f32 %v3611, %v3923
    %v3925 = vpop.f32.mrf.mxu0
    %3926 = vmatprep.mubr.bf16.mxu0 %v2984
    %3927 = vmatmul.mubr.bf16.gmra.mxu0 %v2933
    %v3928 = vpop.f32.mrf.mxu0
    %v3929 = vadd.f32 %v3616, %v3928
    %v3930 = vpop.f32.mrf.mxu0
    %v3931 = vpop.f32.mrf.mxu0
    %v3932 = vadd.f32 %v3619, %v3931
    %v3933 = vpop.f32.mrf.mxu0
    %3934 = vmatprep.mubr.bf16.mxu0 %v2985
    %3935 = vmatmul.mubr.bf16.gmra.mxu0 %v2934
    %v3936 = vpop.f32.mrf.mxu0
    %v3937 = vadd.f32 %v3624, %v3936
    %v3938 = vpop.f32.mrf.mxu0
    %v3939 = vpop.f32.mrf.mxu0
    %v3940 = vadd.f32 %v3627, %v3939
    %v3941 = vpop.f32.mrf.mxu0
    %3942 = vmatprep.mubr.bf16.mxu0 %v2986
    %3943 = vmatmul.mubr.bf16.gmra.mxu0 %v2935
    %v3944 = vpop.f32.mrf.mxu0
    %v3945 = vadd.f32 %v3632, %v3944
    %v3946 = vpop.f32.mrf.mxu0
    %v3947 = vpop.f32.mrf.mxu0
    %v3948 = vadd.f32 %v3635, %v3947
    %v3949 = vpop.f32.mrf.mxu0
    %3950 = vmatprep.mubr.bf16.mxu0 %v2987
    %3951 = vmatmul.mubr.bf16.gmra.mxu0 %v2936
    %v3952 = vpop.f32.mrf.mxu0
    %v3953 = vadd.f32 %v3640, %v3952
    %v3954 = vpop.f32.mrf.mxu0
    %v3955 = vpop.f32.mrf.mxu0
    %v3956 = vadd.f32 %v3643, %v3955
    %v3957 = vpop.f32.mrf.mxu0
    %3958 = vmatprep.mubr.bf16.mxu0 %v2988
    %3959 = vmatmul.mubr.bf16.gmra.mxu0 %v2937
    %v3960 = vpop.f32.mrf.mxu0
    %v3961 = vadd.f32 %v3648, %v3960
    %v3962 = vpop.f32.mrf.mxu0
    %v3963 = vpop.f32.mrf.mxu0
    %v3964 = vadd.f32 %v3651, %v3963
    %v3965 = vpop.f32.mrf.mxu0
    %3966 = vmatprep.mubr.bf16.mxu0 %v2989
    %3967 = vmatmul.mubr.bf16.gmra.mxu0 %v2938
    %v3968 = vpop.f32.mrf.mxu0
    %v3969 = vadd.f32 %v3656, %v3968
    %v3970 = vpop.f32.mrf.mxu0
    %v3971 = vpop.f32.mrf.mxu0
    %v3972 = vadd.f32 %v3659, %v3971
    %v3973 = vpop.f32.mrf.mxu0
    %3974 = vmatprep.mubr.bf16.mxu0 %v2990
    %3975 = vmatmul.mubr.bf16.gmra.mxu0 %v2939
    %v3976 = vpop.f32.mrf.mxu0
    %v3977 = vadd.f32 %v3664, %v3976
    %v3978 = vpop.f32.mrf.mxu0
    %v3979 = vpop.f32.mrf.mxu0
    %v3980 = vadd.f32 %v3667, %v3979
    %v3981 = vpop.f32.mrf.mxu0
    %3982 = vmatprep.mubr.bf16.mxu0 %v2991
    %3983 = vmatmul.mubr.bf16.gmra.mxu0 %v2940
    %v3984 = vpop.f32.mrf.mxu0
    %v3985 = vadd.f32 %v3672, %v3984
    %v3986 = vpop.f32.mrf.mxu0
    %v3987 = vpop.f32.mrf.mxu0
    %v3988 = vadd.f32 %v3675, %v3987
    %v3989 = vpop.f32.mrf.mxu0
    %3990 = vdwg.mxu0
    %3991 = vmatprep.subr.bf16.mxu0 0
    %3992 = vmatpush1.bf16.msra.mxu0 %v3797
    %3993 = vmatprep.subr.bf16.mxu0 0
    %3994 = vmatpush1.bf16.msra.mxu0 %v3796
    %3995 = vmatprep.subr.bf16.mxu0 0
    %3996 = vmatpush1.bf16.msra.mxu0 %v3795
    %3997 = vmatprep.subr.bf16.mxu0 0
    %3998 = vmatpush1.bf16.msra.mxu0 %v3794
    %3999 = vmatprep.subr.bf16.mxu0 0
    %4000 = vmatpush1.bf16.msra.mxu0 %v3793
    %4001 = vmatprep.subr.bf16.mxu0 0
    %4002 = vmatpush1.bf16.msra.mxu0 %v3792
    %4003 = vmatprep.subr.bf16.mxu0 0
    %4004 = vmatpush1.bf16.msra.mxu0 %v3791
    %4005 = vmatprep.subr.bf16.mxu0 0
    %4006 = vmatpush1.bf16.msra.mxu0 %v3790
    %4007 = vmatprep.subr.bf16.mxu0 0
    %4008 = vmatpush2.bf16.msra.mxu0 0
    %4009 = vmatprep.subr.bf16.mxu0 0
    %4010 = vmatpush2.bf16.msra.mxu0 0
    %4011 = vmatprep.subr.bf16.mxu0 0
    %4012 = vmatpush2.bf16.msra.mxu0 0
    %4013 = vmatprep.subr.bf16.mxu0 0
    %4014 = vmatpush2.bf16.msra.mxu0 0
    %4015 = vmatprep.subr.bf16.mxu0 0
    %4016 = vmatpush2.bf16.msra.mxu0 0
    %4017 = vmatprep.subr.bf16.mxu0 0
    %4018 = vmatpush2.bf16.msra.mxu0 0
    %4019 = vmatprep.subr.bf16.mxu0 0
    %4020 = vmatpush2.bf16.msra.mxu0 0
    %4021 = vmatprep.subr.bf16.mxu0 0
    %4022 = vmatpush2.bf16.msra.mxu0 0
    %4023 = vmatprep.mubr.bf16.mxu0 0
    %4024 = vmatmul.mubr.bf16.gmra.mxu0 %v3026
    %v4025 = vpop.f32.mrf.mxu0
    %v4026 = vadd.f32 %v3857, %v4025
    %v4027 = vpop.f32.mrf.mxu0
    %v4028 = vpop.f32.mrf.mxu0
    %v4029 = vadd.f32 %v3860, %v4028
    %v4030 = vpop.f32.mrf.mxu0
    %4031 = vmatprep.mubr.bf16.mxu0 0
    %4032 = vmatmul.mubr.bf16.gmra.mxu0 %v3027
    %v4033 = vpop.f32.mrf.mxu0
    %v4034 = vadd.f32 %v3865, %v4033
    %v4035 = vpop.f32.mrf.mxu0
    %v4036 = vpop.f32.mrf.mxu0
    %v4037 = vadd.f32 %v3868, %v4036
    %v4038 = vpop.f32.mrf.mxu0
    %4039 = vmatprep.mubr.bf16.mxu0 0
    %4040 = vmatmul.mubr.bf16.gmra.mxu0 %v3028
    %v4041 = vpop.f32.mrf.mxu0
    %v4042 = vadd.f32 %v3873, %v4041
    %v4043 = vpop.f32.mrf.mxu0
    %v4044 = vpop.f32.mrf.mxu0
    %v4045 = vadd.f32 %v3876, %v4044
    %v4046 = vpop.f32.mrf.mxu0
    %4047 = vmatprep.mubr.bf16.mxu0 0
    %4048 = vmatmul.mubr.bf16.gmra.mxu0 %v3029
    %v4049 = vpop.f32.mrf.mxu0
    %v4050 = vadd.f32 %v3881, %v4049
    %v4051 = vpop.f32.mrf.mxu0
    %v4052 = vpop.f32.mrf.mxu0
    %v4053 = vadd.f32 %v3884, %v4052
    %v4054 = vpop.f32.mrf.mxu0
    %4055 = vmatprep.mubr.bf16.mxu0 0
    %4056 = vmatmul.mubr.bf16.gmra.mxu0 %v3030
    %v4057 = vpop.f32.mrf.mxu0
    %v4058 = vadd.f32 %v3889, %v4057
    %v4059 = vpop.f32.mrf.mxu0
    %v4060 = vpop.f32.mrf.mxu0
    %v4061 = vadd.f32 %v3892, %v4060
    %v4062 = vpop.f32.mrf.mxu0
    %4063 = vmatprep.mubr.bf16.mxu0 0
    %4064 = vmatmul.mubr.bf16.gmra.mxu0 %v3031
    %v4065 = vpop.f32.mrf.mxu0
    %v4066 = vadd.f32 %v3897, %v4065
    %v4067 = vpop.f32.mrf.mxu0
    %v4068 = vpop.f32.mrf.mxu0
    %v4069 = vadd.f32 %v3900, %v4068
    %v4070 = vpop.f32.mrf.mxu0
    %4071 = vmatprep.mubr.bf16.mxu0 0
    %4072 = vmatmul.mubr.bf16.gmra.mxu0 %v3032
    %v4073 = vpop.f32.mrf.mxu0
    %v4074 = vadd.f32 %v3905, %v4073
    %v4075 = vpop.f32.mrf.mxu0
    %v4076 = vpop.f32.mrf.mxu0
    %v4077 = vadd.f32 %v3908, %v4076
    %v4078 = vpop.f32.mrf.mxu0
    %4079 = vmatprep.mubr.bf16.mxu0 0
    %4080 = vmatmul.mubr.bf16.gmra.mxu0 %v3033
    %v4081 = vpop.f32.mrf.mxu0
    %v4082 = vadd.f32 %v3913, %v4081
    %v4083 = vpop.f32.mrf.mxu0
    %v4084 = vpop.f32.mrf.mxu0
    %v4085 = vadd.f32 %v3916, %v4084
    %v4086 = vpop.f32.mrf.mxu0
    %4087 = vmatprep.mubr.bf16.mxu0 0
    %4088 = vmatmul.mubr.bf16.gmra.mxu0 %v3034
    %v4089 = vpop.f32.mrf.mxu0
    %v4090 = vadd.f32 %v3921, %v4089
    %v4091 = vpop.f32.mrf.mxu0
    %v4092 = vpop.f32.mrf.mxu0
    %v4093 = vadd.f32 %v3924, %v4092
    %v4094 = vpop.f32.mrf.mxu0
    %4095 = vmatprep.mubr.bf16.mxu0 0
    %4096 = vmatmul.mubr.bf16.gmra.mxu0 %v3035
    %v4097 = vpop.f32.mrf.mxu0
    %v4098 = vadd.f32 %v3929, %v4097
    %v4099 = vpop.f32.mrf.mxu0
    %v4100 = vpop.f32.mrf.mxu0
    %v4101 = vadd.f32 %v3932, %v4100
    %v4102 = vpop.f32.mrf.mxu0
    %4103 = vmatprep.mubr.bf16.mxu0 0
    %4104 = vmatmul.mubr.bf16.gmra.mxu0 %v3036
    %v4105 = vpop.f32.mrf.mxu0
    %v4106 = vadd.f32 %v3937, %v4105
    %v4107 = vpop.f32.mrf.mxu0
    %v4108 = vpop.f32.mrf.mxu0
    %v4109 = vadd.f32 %v3940, %v4108
    %v4110 = vpop.f32.mrf.mxu0
    %4111 = vmatprep.mubr.bf16.mxu0 0
    %4112 = vmatmul.mubr.bf16.gmra.mxu0 %v3037
    %v4113 = vpop.f32.mrf.mxu0
    %v4114 = vadd.f32 %v3945, %v4113
    %v4115 = vpop.f32.mrf.mxu0
    %v4116 = vpop.f32.mrf.mxu0
    %v4117 = vadd.f32 %v3948, %v4116
    %v4118 = vpop.f32.mrf.mxu0
    %4119 = vmatprep.mubr.bf16.mxu0 0
    %4120 = vmatmul.mubr.bf16.gmra.mxu0 %v3038
    %v4121 = vpop.f32.mrf.mxu0
    %v4122 = vadd.f32 %v3953, %v4121
    %v4123 = vpop.f32.mrf.mxu0
    %v4124 = vpop.f32.mrf.mxu0
    %v4125 = vadd.f32 %v3956, %v4124
    %v4126 = vpop.f32.mrf.mxu0
    %4127 = vmatprep.mubr.bf16.mxu0 0
    %4128 = vmatmul.mubr.bf16.gmra.mxu0 %v3039
    %v4129 = vpop.f32.mrf.mxu0
    %v4130 = vadd.f32 %v3961, %v4129
    %v4131 = vpop.f32.mrf.mxu0
    %v4132 = vpop.f32.mrf.mxu0
    %v4133 = vadd.f32 %v3964, %v4132
    %v4134 = vpop.f32.mrf.mxu0
    %4135 = vmatprep.mubr.bf16.mxu0 0
    %4136 = vmatmul.mubr.bf16.gmra.mxu0 %v3040
    %v4137 = vpop.f32.mrf.mxu0
    %v4138 = vadd.f32 %v3969, %v4137
    %v4139 = vpop.f32.mrf.mxu0
    %v4140 = vpop.f32.mrf.mxu0
    %v4141 = vadd.f32 %v3972, %v4140
    %v4142 = vpop.f32.mrf.mxu0
    %4143 = vmatprep.mubr.bf16.mxu0 0
    %4144 = vmatmul.mubr.bf16.gmra.mxu0 %v3041
    %v4145 = vpop.f32.mrf.mxu0
    %v4146 = vadd.f32 %v3977, %v4145
    %v4147 = vpop.f32.mrf.mxu0
    %v4148 = vpop.f32.mrf.mxu0
    %v4149 = vadd.f32 %v3980, %v4148
    %v4150 = vpop.f32.mrf.mxu0
    %4151 = vmatprep.mubr.bf16.mxu0 0
    %4152 = vmatmul.mubr.bf16.gmra.mxu0 %v3042
    %v4153 = vpop.f32.mrf.mxu0
    %v4154 = vadd.f32 %v3985, %v4153
    %v4155 = vpop.f32.mrf.mxu0
    %v4156 = vpop.f32.mrf.mxu0
    %v4157 = vadd.f32 %v3988, %v4156
    %v4158 = vpop.f32.mrf.mxu0
    %4159 = vdwg.mxu0
    %v4160 = vld [vmem:[#allocation2 + $0x28] sm:$0xff]
    %v4161 = vld [vmem:[#allocation2 + $0x30] sm:$0xff]
    %v4162 = vld [vmem:[#allocation2 + $0x38] sm:$0xff]
    %v4163 = vld [vmem:[#allocation2 + $0x40] sm:$0xff]
    %v4164 = vld [vmem:[#allocation2 + $0x48] sm:$0xff]
    %v4165 = vld [vmem:[#allocation2 + $0x50] sm:$0xff]
    %v4166 = vld [vmem:[#allocation2 + $0x58] sm:$0xff]
    %v4167 = vld [vmem:[#allocation2 + $0x60] sm:$0xff]
    %v4168 = vld [vmem:[#allocation2 + $0x68] sm:$0xff]
    %v4169 = vld [vmem:[#allocation2 + $0x70] sm:$0xff]
    %v4170 = vld [vmem:[#allocation2 + $0x78] sm:$0xff]
    %v4171 = vld [vmem:[#allocation2 + $0x80] sm:$0xff]
    %v4172 = vld [vmem:[#allocation2 + $0x88] sm:$0xff]
    %v4173 = vld [vmem:[#allocation2 + $0x90] sm:$0xff]
    %v4174 = vld [vmem:[#allocation2 + $0x98] sm:$0xff]
    %v4175 = vld [vmem:[#allocation2 + $0xa0] sm:$0xff]
    %v4176 = vld [vmem:[#allocation2 + $0xa8] sm:$0xff]
    %v4177 = vld [vmem:[#allocation2 + $0xb0] sm:$0xff]
    %v4178 = vld [vmem:[#allocation2 + $0xb8] sm:$0xff]
    %v4179 = vld [vmem:[#allocation2 + $0xc0] sm:$0xff]
    %v4180 = vld [vmem:[#allocation2 + $0xc8] sm:$0xff]
    %v4181 = vld [vmem:[#allocation2 + $0xd0] sm:$0xff]
    %v4182 = vld [vmem:[#allocation2 + $0xd8] sm:$0xff]
    %v4183 = vld [vmem:[#allocation2 + $0xe0] sm:$0xff]
    %v4184 = vld [vmem:[#allocation2 + $0xe8] sm:$0xff]
    %v4185 = vld [vmem:[#allocation2 + $0xf0] sm:$0xff]
    %v4186 = vld [vmem:[#allocation2 + $0xf8] sm:$0xff]
    %v4187 = vld [vmem:[#allocation2 + $0x100] sm:$0xff]
    %v4188 = vld [vmem:[#allocation2 + $0x108] sm:$0xff]
    %v4189 = vld [vmem:[#allocation2 + $0x110] sm:$0xff]
    %v4190 = vld [vmem:[#allocation2 + $0x118] sm:$0xff]
    %v4191 = vld [vmem:[#allocation2 + $0x120] sm:$0xff]
    %v4192 = vld [vmem:[#allocation2 + $0x128] sm:$0xff]
    %v4193 = vld [vmem:[#allocation2 + $0x130] sm:$0xff]
    %v4194 = vpack.c.bf16 %v4161, %v4160
    %v4195 = vpack.c.bf16 %v4163, %v4162
    %v4196 = vpack.c.bf16 %v4165, %v4164
    %v4197 = vpack.c.bf16 %v4167, %v4166
    %v4198 = vpack.c.bf16 %v4169, %v4168
    %v4199 = vpack.c.bf16 %v4171, %v4170
    %v4200 = vpack.c.bf16 %v4173, %v4172
    %v4201 = vpack.c.bf16 %v4175, %v4174
    %v4202 = vpack.c.bf16 %v4177, %v4176
    %v4203 = vpack.c.bf16 %v4179, %v4178
    %v4204 = vpack.c.bf16 %v4181, %v4180
    %v4205 = vpack.c.bf16 %v4183, %v4182
    %v4206 = vpack.c.bf16 %v4185, %v4184
    %v4207 = vpack.c.bf16 %v4187, %v4186
    %v4208 = vpack.c.bf16 %v4189, %v4188
    %v4209 = vpack.c.bf16 %v4191, %v4190
    %v4210 = vpack.c.bf16 %v4193, %v4192
    %v4211 = vld [vmem:[#allocation2 + $0x29] sm:$0xff]
    %v4212 = vld [vmem:[#allocation2 + $0x31] sm:$0xff]
    %v4213 = vld [vmem:[#allocation2 + $0x39] sm:$0xff]
    %v4214 = vld [vmem:[#allocation2 + $0x41] sm:$0xff]
    %v4215 = vld [vmem:[#allocation2 + $0x49] sm:$0xff]
    %v4216 = vld [vmem:[#allocation2 + $0x51] sm:$0xff]
    %v4217 = vld [vmem:[#allocation2 + $0x59] sm:$0xff]
    %v4218 = vld [vmem:[#allocation2 + $0x61] sm:$0xff]
    %v4219 = vld [vmem:[#allocation2 + $0x69] sm:$0xff]
    %v4220 = vld [vmem:[#allocation2 + $0x71] sm:$0xff]
    %v4221 = vld [vmem:[#allocation2 + $0x79] sm:$0xff]
    %v4222 = vld [vmem:[#allocation2 + $0x81] sm:$0xff]
    %v4223 = vld [vmem:[#allocation2 + $0x89] sm:$0xff]
    %v4224 = vld [vmem:[#allocation2 + $0x91] sm:$0xff]
    %v4225 = vld [vmem:[#allocation2 + $0x99] sm:$0xff]
    %v4226 = vld [vmem:[#allocation2 + $0xa1] sm:$0xff]
    %v4227 = vld [vmem:[#allocation2 + $0xa9] sm:$0xff]
    %v4228 = vld [vmem:[#allocation2 + $0xb1] sm:$0xff]
    %v4229 = vld [vmem:[#allocation2 + $0xb9] sm:$0xff]
    %v4230 = vld [vmem:[#allocation2 + $0xc1] sm:$0xff]
    %v4231 = vld [vmem:[#allocation2 + $0xc9] sm:$0xff]
    %v4232 = vld [vmem:[#allocation2 + $0xd1] sm:$0xff]
    %v4233 = vld [vmem:[#allocation2 + $0xd9] sm:$0xff]
    %v4234 = vld [vmem:[#allocation2 + $0xe1] sm:$0xff]
    %v4235 = vld [vmem:[#allocation2 + $0xe9] sm:$0xff]
    %v4236 = vld [vmem:[#allocation2 + $0xf1] sm:$0xff]
    %v4237 = vld [vmem:[#allocation2 + $0xf9] sm:$0xff]
    %v4238 = vld [vmem:[#allocation2 + $0x101] sm:$0xff]
    %v4239 = vld [vmem:[#allocation2 + $0x109] sm:$0xff]
    %v4240 = vld [vmem:[#allocation2 + $0x111] sm:$0xff]
    %v4241 = vld [vmem:[#allocation2 + $0x119] sm:$0xff]
    %v4242 = vld [vmem:[#allocation2 + $0x121] sm:$0xff]
    %v4243 = vld [vmem:[#allocation2 + $0x129] sm:$0xff]
    %v4244 = vld [vmem:[#allocation2 + $0x131] sm:$0xff]
    %v4245 = vpack.c.bf16 %v4212, %v4211
    %v4246 = vpack.c.bf16 %v4214, %v4213
    %v4247 = vpack.c.bf16 %v4216, %v4215
    %v4248 = vpack.c.bf16 %v4218, %v4217
    %v4249 = vpack.c.bf16 %v4220, %v4219
    %v4250 = vpack.c.bf16 %v4222, %v4221
    %v4251 = vpack.c.bf16 %v4224, %v4223
    %v4252 = vpack.c.bf16 %v4226, %v4225
    %v4253 = vpack.c.bf16 %v4228, %v4227
    %v4254 = vpack.c.bf16 %v4230, %v4229
    %v4255 = vpack.c.bf16 %v4232, %v4231
    %v4256 = vpack.c.bf16 %v4234, %v4233
    %v4257 = vpack.c.bf16 %v4236, %v4235
    %v4258 = vpack.c.bf16 %v4238, %v4237
    %v4259 = vpack.c.bf16 %v4240, %v4239
    %v4260 = vpack.c.bf16 %v4242, %v4241
    %v4261 = vpack.c.bf16 %v4244, %v4243
    %v4262 = vld [vmem:[#allocation2 + $0x2a] sm:$0xff]
    %v4263 = vld [vmem:[#allocation2 + $0x32] sm:$0xff]
    %v4264 = vld [vmem:[#allocation2 + $0x3a] sm:$0xff]
    %v4265 = vld [vmem:[#allocation2 + $0x42] sm:$0xff]
    %v4266 = vld [vmem:[#allocation2 + $0x4a] sm:$0xff]
    %v4267 = vld [vmem:[#allocation2 + $0x52] sm:$0xff]
    %v4268 = vld [vmem:[#allocation2 + $0x5a] sm:$0xff]
    %v4269 = vld [vmem:[#allocation2 + $0x62] sm:$0xff]
    %v4270 = vld [vmem:[#allocation2 + $0x6a] sm:$0xff]
    %v4271 = vld [vmem:[#allocation2 + $0x72] sm:$0xff]
    %v4272 = vld [vmem:[#allocation2 + $0x7a] sm:$0xff]
    %v4273 = vld [vmem:[#allocation2 + $0x82] sm:$0xff]
    %v4274 = vld [vmem:[#allocation2 + $0x8a] sm:$0xff]
    %v4275 = vld [vmem:[#allocation2 + $0x92] sm:$0xff]
    %v4276 = vld [vmem:[#allocation2 + $0x9a] sm:$0xff]
    %v4277 = vld [vmem:[#allocation2 + $0xa2] sm:$0xff]
    %v4278 = vld [vmem:[#allocation2 + $0xaa] sm:$0xff]
    %v4279 = vld [vmem:[#allocation2 + $0xb2] sm:$0xff]
    %v4280 = vld [vmem:[#allocation2 + $0xba] sm:$0xff]
    %v4281 = vld [vmem:[#allocation2 + $0xc2] sm:$0xff]
    %v4282 = vld [vmem:[#allocation2 + $0xca] sm:$0xff]
    %v4283 = vld [vmem:[#allocation2 + $0xd2] sm:$0xff]
    %v4284 = vld [vmem:[#allocation2 + $0xda] sm:$0xff]
    %v4285 = vld [vmem:[#allocation2 + $0xe2] sm:$0xff]
    %v4286 = vld [vmem:[#allocation2 + $0xea] sm:$0xff]
    %v4287 = vld [vmem:[#allocation2 + $0xf2] sm:$0xff]
    %v4288 = vld [vmem:[#allocation2 + $0xfa] sm:$0xff]
    %v4289 = vld [vmem:[#allocation2 + $0x102] sm:$0xff]
    %v4290 = vld [vmem:[#allocation2 + $0x10a] sm:$0xff]
    %v4291 = vld [vmem:[#allocation2 + $0x112] sm:$0xff]
    %v4292 = vld [vmem:[#allocation2 + $0x11a] sm:$0xff]
    %v4293 = vld [vmem:[#allocation2 + $0x122] sm:$0xff]
    %v4294 = vld [vmem:[#allocation2 + $0x12a] sm:$0xff]
    %v4295 = vld [vmem:[#allocation2 + $0x132] sm:$0xff]
    %v4296 = vpack.c.bf16 %v4263, %v4262
    %v4297 = vpack.c.bf16 %v4265, %v4264
    %v4298 = vpack.c.bf16 %v4267, %v4266
    %v4299 = vpack.c.bf16 %v4269, %v4268
    %v4300 = vpack.c.bf16 %v4271, %v4270
    %v4301 = vpack.c.bf16 %v4273, %v4272
    %v4302 = vpack.c.bf16 %v4275, %v4274
    %v4303 = vpack.c.bf16 %v4277, %v4276
    %v4304 = vpack.c.bf16 %v4279, %v4278
    %v4305 = vpack.c.bf16 %v4281, %v4280
    %v4306 = vpack.c.bf16 %v4283, %v4282
    %v4307 = vpack.c.bf16 %v4285, %v4284
    %v4308 = vpack.c.bf16 %v4287, %v4286
    %v4309 = vpack.c.bf16 %v4289, %v4288
    %v4310 = vpack.c.bf16 %v4291, %v4290
    %v4311 = vpack.c.bf16 %v4293, %v4292
    %v4312 = vpack.c.bf16 %v4295, %v4294
    %v4313 = vld [vmem:[#allocation8 + $0x180] sm:$0xf]
    %v4314 = vld [vmem:[#allocation8 + $0x184] sm:$0xf]
    %v4315 = vld [vmem:[#allocation8 + $0x188] sm:$0xf]
    %v4316 = vld [vmem:[#allocation8 + $0x18c] sm:$0xf]
    %v4317 = vld [vmem:[#allocation8 + $0x190] sm:$0xf]
    %v4318 = vld [vmem:[#allocation8 + $0x194] sm:$0xf]
    %v4319 = vld [vmem:[#allocation8 + $0x198] sm:$0xf]
    %v4320 = vld [vmem:[#allocation8 + $0x19c] sm:$0xf]
    %v4321 = vld [vmem:[#allocation8 + $0x1a0] sm:$0xf]
    %v4322 = vld [vmem:[#allocation8 + $0x1a4] sm:$0xf]
    %v4323 = vld [vmem:[#allocation8 + $0x1a8] sm:$0xf]
    %v4324 = vld [vmem:[#allocation8 + $0x1ac] sm:$0xf]
    %v4325 = vld [vmem:[#allocation8 + $0x1b0] sm:$0xf]
    %v4326 = vld [vmem:[#allocation8 + $0x1b4] sm:$0xf]
    %v4327 = vld [vmem:[#allocation8 + $0x1b8] sm:$0xf]
    %v4328 = vld [vmem:[#allocation8 + $0x1bc] sm:$0xf]
    %v4329 = vld [vmem:[#allocation8 + $0x1c0] sm:$0xf]
    %v4330 = vld [vmem:[#allocation8 + $0x1c4] sm:$0xf]
    %v4331 = vld [vmem:[#allocation8 + $0x1c8] sm:$0xf]
    %v4332 = vld [vmem:[#allocation8 + $0x1cc] sm:$0xf]
    %v4333 = vld [vmem:[#allocation8 + $0x1d0] sm:$0xf]
    %v4334 = vld [vmem:[#allocation8 + $0x1d4] sm:$0xf]
    %v4335 = vld [vmem:[#allocation8 + $0x1d8] sm:$0xf]
    %v4336 = vld [vmem:[#allocation8 + $0x1dc] sm:$0xf]
    %v4337 = vld [vmem:[#allocation8 + $0x1e0] sm:$0xf]
    %v4338 = vld [vmem:[#allocation8 + $0x1e4] sm:$0xf]
    %v4339 = vld [vmem:[#allocation8 + $0x1e8] sm:$0xf]
    %v4340 = vld [vmem:[#allocation8 + $0x1ec] sm:$0xf]
    %v4341 = vld [vmem:[#allocation8 + $0x1f0] sm:$0xf]
    %v4342 = vld [vmem:[#allocation8 + $0x1f4] sm:$0xf]
    %v4343 = vld [vmem:[#allocation8 + $0x1f8] sm:$0xf]
    %v4344 = vld [vmem:[#allocation8 + $0x1fc] sm:$0xf]
    %v4345 = vld [vmem:[#allocation8 + $0x200] sm:$0xf]
    %v4346 = vld [vmem:[#allocation8 + $0x204] sm:$0xf]
    %v4347 = vld [vmem:[#allocation8 + $0x208] sm:$0xf]
    %v4348 = vld [vmem:[#allocation8 + $0x20c] sm:$0xf]
    %v4349 = vld [vmem:[#allocation8 + $0x210] sm:$0xf]
    %v4350 = vld [vmem:[#allocation8 + $0x214] sm:$0xf]
    %v4351 = vld [vmem:[#allocation8 + $0x218] sm:$0xf]
    %v4352 = vld [vmem:[#allocation8 + $0x21c] sm:$0xf]
    %v4353 = vld [vmem:[#allocation8 + $0x220] sm:$0xf]
    %v4354 = vld [vmem:[#allocation8 + $0x224] sm:$0xf]
    %v4355 = vld [vmem:[#allocation8 + $0x228] sm:$0xf]
    %v4356 = vld [vmem:[#allocation8 + $0x22c] sm:$0xf]
    %v4357 = vld [vmem:[#allocation8 + $0x230] sm:$0xf]
    %v4358 = vld [vmem:[#allocation8 + $0x234] sm:$0xf]
    %v4359 = vld [vmem:[#allocation8 + $0x238] sm:$0xf]
    %v4360 = vld [vmem:[#allocation8 + $0x23c] sm:$0xf]
    %v4409 = vunpack.c.l.b16 %v4313
    %v4410 = vunpack.c.l.b16 %v4314
    %v4411 = vunpack.c.l.b16 %v4315
    %v4412 = vunpack.c.l.b16 %v4316
    %v4413 = vunpack.c.l.b16 %v4317
    %v4414 = vunpack.c.l.b16 %v4318
    %v4415 = vunpack.c.l.b16 %v4319
    %v4416 = vunpack.c.l.b16 %v4320
    %v4417 = vunpack.c.l.b16 %v4321
    %v4418 = vunpack.c.l.b16 %v4322
    %v4419 = vunpack.c.l.b16 %v4323
    %v4420 = vunpack.c.l.b16 %v4324
    %v4421 = vunpack.c.l.b16 %v4325
    %v4422 = vunpack.c.l.b16 %v4326
    %v4423 = vunpack.c.l.b16 %v4327
    %v4424 = vunpack.c.l.b16 %v4328
    %v4425 = vunpack.c.l.b16 %v4329
    %v4426 = vunpack.c.l.b16 %v4330
    %v4427 = vunpack.c.l.b16 %v4331
    %v4428 = vunpack.c.l.b16 %v4332
    %v4429 = vunpack.c.l.b16 %v4333
    %v4430 = vunpack.c.l.b16 %v4334
    %v4431 = vunpack.c.l.b16 %v4335
    %v4432 = vunpack.c.l.b16 %v4336
    %v4433 = vunpack.c.l.b16 %v4337
    %v4434 = vunpack.c.l.b16 %v4338
    %v4435 = vunpack.c.l.b16 %v4339
    %v4436 = vunpack.c.l.b16 %v4340
    %v4437 = vunpack.c.l.b16 %v4341
    %v4438 = vunpack.c.l.b16 %v4342
    %v4439 = vunpack.c.l.b16 %v4343
    %v4440 = vunpack.c.l.b16 %v4344
    %v4441 = vunpack.c.l.b16 %v4345
    %v4442 = vunpack.c.l.b16 %v4346
    %v4443 = vunpack.c.l.b16 %v4347
    %v4444 = vunpack.c.l.b16 %v4348
    %v4445 = vunpack.c.l.b16 %v4349
    %v4446 = vunpack.c.l.b16 %v4350
    %v4447 = vunpack.c.l.b16 %v4351
    %v4448 = vunpack.c.l.b16 %v4352
    %v4449 = vunpack.c.l.b16 %v4353
    %v4450 = vunpack.c.l.b16 %v4354
    %v4451 = vunpack.c.l.b16 %v4355
    %v4452 = vunpack.c.l.b16 %v4356
    %v4453 = vunpack.c.l.b16 %v4357
    %v4454 = vunpack.c.l.b16 %v4358
    %v4455 = vunpack.c.l.b16 %v4359
    %v4456 = vunpack.c.l.b16 %v4360
    %v4457 = vpack.c.b16 %v4410, %v4409
    %v4458 = vpack.c.b16 %v4412, %v4411
    %v4459 = vpack.c.b16 %v4414, %v4413
    %v4460 = vpack.c.b16 %v4416, %v4415
    %v4461 = vpack.c.b16 %v4418, %v4417
    %v4462 = vpack.c.b16 %v4420, %v4419
    %v4463 = vpack.c.b16 %v4422, %v4421
    %v4464 = vpack.c.b16 %v4424, %v4423
    %v4465 = vpack.c.b16 %v4426, %v4425
    %v4466 = vpack.c.b16 %v4428, %v4427
    %v4467 = vpack.c.b16 %v4430, %v4429
    %v4468 = vpack.c.b16 %v4432, %v4431
    %v4469 = vpack.c.b16 %v4434, %v4433
    %v4470 = vpack.c.b16 %v4436, %v4435
    %v4471 = vpack.c.b16 %v4438, %v4437
    %v4472 = vpack.c.b16 %v4440, %v4439
    %v4473 = vpack.c.b16 %v4442, %v4441
    %v4474 = vpack.c.b16 %v4444, %v4443
    %v4475 = vpack.c.b16 %v4446, %v4445
    %v4476 = vpack.c.b16 %v4448, %v4447
    %v4477 = vpack.c.b16 %v4450, %v4449
    %v4478 = vpack.c.b16 %v4452, %v4451
    %v4479 = vpack.c.b16 %v4454, %v4453
    %v4480 = vpack.c.b16 %v4456, %v4455
    %4505 = vmatprep.subr.bf16.mxu0 0
    %4506 = vmatpush1.bf16.msra.mxu0 %v4464
    %4507 = vmatprep.subr.bf16.mxu0 0
    %4508 = vmatpush1.bf16.msra.mxu0 %v4463
    %4509 = vmatprep.subr.bf16.mxu0 0
    %4510 = vmatpush1.bf16.msra.mxu0 %v4462
    %4511 = vmatprep.subr.bf16.mxu0 0
    %4512 = vmatpush1.bf16.msra.mxu0 %v4461
    %4513 = vmatprep.subr.bf16.mxu0 0
    %4514 = vmatpush1.bf16.msra.mxu0 %v4460
    %4515 = vmatprep.subr.bf16.mxu0 0
    %4516 = vmatpush1.bf16.msra.mxu0 %v4459
    %4517 = vmatprep.subr.bf16.mxu0 0
    %4518 = vmatpush1.bf16.msra.mxu0 %v4458
    %4519 = vmatprep.subr.bf16.mxu0 0
    %4520 = vmatpush1.bf16.msra.mxu0 %v4457
    %4521 = vmatprep.subr.bf16.mxu0 0
    %4522 = vmatpush2.bf16.msra.mxu0 %v4472
    %4523 = vmatprep.subr.bf16.mxu0 0
    %4524 = vmatpush2.bf16.msra.mxu0 %v4471
    %4525 = vmatprep.subr.bf16.mxu0 0
    %4526 = vmatpush2.bf16.msra.mxu0 %v4470
    %4527 = vmatprep.subr.bf16.mxu0 0
    %4528 = vmatpush2.bf16.msra.mxu0 %v4469
    %4529 = vmatprep.subr.bf16.mxu0 0
    %4530 = vmatpush2.bf16.msra.mxu0 %v4468
    %4531 = vmatprep.subr.bf16.mxu0 0
    %4532 = vmatpush2.bf16.msra.mxu0 %v4467
    %4533 = vmatprep.subr.bf16.mxu0 0
    %4534 = vmatpush2.bf16.msra.mxu0 %v4466
    %4535 = vmatprep.subr.bf16.mxu0 0
    %4536 = vmatpush2.bf16.msra.mxu0 %v4465
    %4537 = vmatprep.mubr.bf16.mxu0 %v4245
    %4538 = vmatmul.mubr.bf16.gmra.mxu0 %v4194
    %v4539 = vpop.f32.mrf.mxu0
    %v4540 = vadd.f32 0.0, %v4539
    %v4541 = vpop.f32.mrf.mxu0
    %v4542 = vpop.f32.mrf.mxu0
    %v4543 = vadd.f32 0.0, %v4542
    %v4544 = vpop.f32.mrf.mxu0
    %4545 = vmatprep.mubr.bf16.mxu0 %v4246
    %4546 = vmatmul.mubr.bf16.gmra.mxu0 %v4195
    %v4547 = vpop.f32.mrf.mxu0
    %v4548 = vadd.f32 0.0, %v4547
    %v4549 = vpop.f32.mrf.mxu0
    %v4550 = vpop.f32.mrf.mxu0
    %v4551 = vadd.f32 0.0, %v4550
    %v4552 = vpop.f32.mrf.mxu0
    %4553 = vmatprep.mubr.bf16.mxu0 %v4247
    %4554 = vmatmul.mubr.bf16.gmra.mxu0 %v4196
    %v4555 = vpop.f32.mrf.mxu0
    %v4556 = vadd.f32 0.0, %v4555
    %v4557 = vpop.f32.mrf.mxu0
    %v4558 = vpop.f32.mrf.mxu0
    %v4559 = vadd.f32 0.0, %v4558
    %v4560 = vpop.f32.mrf.mxu0
    %4561 = vmatprep.mubr.bf16.mxu0 %v4248
    %4562 = vmatmul.mubr.bf16.gmra.mxu0 %v4197
    %v4563 = vpop.f32.mrf.mxu0
    %v4564 = vadd.f32 0.0, %v4563
    %v4565 = vpop.f32.mrf.mxu0
    %v4566 = vpop.f32.mrf.mxu0
    %v4567 = vadd.f32 0.0, %v4566
    %v4568 = vpop.f32.mrf.mxu0
    %4569 = vmatprep.mubr.bf16.mxu0 %v4249
    %4570 = vmatmul.mubr.bf16.gmra.mxu0 %v4198
    %v4571 = vpop.f32.mrf.mxu0
    %v4572 = vadd.f32 0.0, %v4571
    %v4573 = vpop.f32.mrf.mxu0
    %v4574 = vpop.f32.mrf.mxu0
    %v4575 = vadd.f32 0.0, %v4574
    %v4576 = vpop.f32.mrf.mxu0
    %4577 = vmatprep.mubr.bf16.mxu0 %v4250
    %4578 = vmatmul.mubr.bf16.gmra.mxu0 %v4199
    %v4579 = vpop.f32.mrf.mxu0
    %v4580 = vadd.f32 0.0, %v4579
    %v4581 = vpop.f32.mrf.mxu0
    %v4582 = vpop.f32.mrf.mxu0
    %v4583 = vadd.f32 0.0, %v4582
    %v4584 = vpop.f32.mrf.mxu0
    %4585 = vmatprep.mubr.bf16.mxu0 %v4251
    %4586 = vmatmul.mubr.bf16.gmra.mxu0 %v4200
    %v4587 = vpop.f32.mrf.mxu0
    %v4588 = vadd.f32 0.0, %v4587
    %v4589 = vpop.f32.mrf.mxu0
    %v4590 = vpop.f32.mrf.mxu0
    %v4591 = vadd.f32 0.0, %v4590
    %v4592 = vpop.f32.mrf.mxu0
    %4593 = vmatprep.mubr.bf16.mxu0 %v4252
    %4594 = vmatmul.mubr.bf16.gmra.mxu0 %v4201
    %v4595 = vpop.f32.mrf.mxu0
    %v4596 = vadd.f32 0.0, %v4595
    %v4597 = vpop.f32.mrf.mxu0
    %v4598 = vpop.f32.mrf.mxu0
    %v4599 = vadd.f32 0.0, %v4598
    %v4600 = vpop.f32.mrf.mxu0
    %4601 = vmatprep.mubr.bf16.mxu0 %v4253
    %4602 = vmatmul.mubr.bf16.gmra.mxu0 %v4202
    %v4603 = vpop.f32.mrf.mxu0
    %v4604 = vadd.f32 0.0, %v4603
    %v4605 = vpop.f32.mrf.mxu0
    %v4606 = vpop.f32.mrf.mxu0
    %v4607 = vadd.f32 0.0, %v4606
    %v4608 = vpop.f32.mrf.mxu0
    %4609 = vmatprep.mubr.bf16.mxu0 %v4254
    %4610 = vmatmul.mubr.bf16.gmra.mxu0 %v4203
    %v4611 = vpop.f32.mrf.mxu0
    %v4612 = vadd.f32 0.0, %v4611
    %v4613 = vpop.f32.mrf.mxu0
    %v4614 = vpop.f32.mrf.mxu0
    %v4615 = vadd.f32 0.0, %v4614
    %v4616 = vpop.f32.mrf.mxu0
    %4617 = vmatprep.mubr.bf16.mxu0 %v4255
    %4618 = vmatmul.mubr.bf16.gmra.mxu0 %v4204
    %v4619 = vpop.f32.mrf.mxu0
    %v4620 = vadd.f32 0.0, %v4619
    %v4621 = vpop.f32.mrf.mxu0
    %v4622 = vpop.f32.mrf.mxu0
    %v4623 = vadd.f32 0.0, %v4622
    %v4624 = vpop.f32.mrf.mxu0
    %4625 = vmatprep.mubr.bf16.mxu0 %v4256
    %4626 = vmatmul.mubr.bf16.gmra.mxu0 %v4205
    %v4627 = vpop.f32.mrf.mxu0
    %v4628 = vadd.f32 0.0, %v4627
    %v4629 = vpop.f32.mrf.mxu0
    %v4630 = vpop.f32.mrf.mxu0
    %v4631 = vadd.f32 0.0, %v4630
    %v4632 = vpop.f32.mrf.mxu0
    %4633 = vmatprep.mubr.bf16.mxu0 %v4257
    %4634 = vmatmul.mubr.bf16.gmra.mxu0 %v4206
    %v4635 = vpop.f32.mrf.mxu0
    %v4636 = vadd.f32 0.0, %v4635
    %v4637 = vpop.f32.mrf.mxu0
    %v4638 = vpop.f32.mrf.mxu0
    %v4639 = vadd.f32 0.0, %v4638
    %v4640 = vpop.f32.mrf.mxu0
    %4641 = vmatprep.mubr.bf16.mxu0 %v4258
    %4642 = vmatmul.mubr.bf16.gmra.mxu0 %v4207
    %v4643 = vpop.f32.mrf.mxu0
    %v4644 = vadd.f32 0.0, %v4643
    %v4645 = vpop.f32.mrf.mxu0
    %v4646 = vpop.f32.mrf.mxu0
    %v4647 = vadd.f32 0.0, %v4646
    %v4648 = vpop.f32.mrf.mxu0
    %4649 = vmatprep.mubr.bf16.mxu0 %v4259
    %4650 = vmatmul.mubr.bf16.gmra.mxu0 %v4208
    %v4651 = vpop.f32.mrf.mxu0
    %v4652 = vadd.f32 0.0, %v4651
    %v4653 = vpop.f32.mrf.mxu0
    %v4654 = vpop.f32.mrf.mxu0
    %v4655 = vadd.f32 0.0, %v4654
    %v4656 = vpop.f32.mrf.mxu0
    %4657 = vmatprep.mubr.bf16.mxu0 %v4260
    %4658 = vmatmul.mubr.bf16.gmra.mxu0 %v4209
    %v4659 = vpop.f32.mrf.mxu0
    %v4660 = vadd.f32 0.0, %v4659
    %v4661 = vpop.f32.mrf.mxu0
    %v4662 = vpop.f32.mrf.mxu0
    %v4663 = vadd.f32 0.0, %v4662
    %v4664 = vpop.f32.mrf.mxu0
    %4665 = vmatprep.mubr.bf16.mxu0 %v4261
    %4666 = vmatmul.mubr.bf16.gmra.mxu0 %v4210
    %v4667 = vpop.f32.mrf.mxu0
    %v4668 = vadd.f32 0.0, %v4667
    %v4669 = vpop.f32.mrf.mxu0
    %v4670 = vpop.f32.mrf.mxu0
    %v4671 = vadd.f32 0.0, %v4670
    %v4672 = vpop.f32.mrf.mxu0
    %4673 = vdwg.mxu0
    %4674 = vmatprep.subr.bf16.mxu0 0
    %4675 = vmatpush1.bf16.msra.mxu0 %v4480
    %4676 = vmatprep.subr.bf16.mxu0 0
    %4677 = vmatpush1.bf16.msra.mxu0 %v4479
    %4678 = vmatprep.subr.bf16.mxu0 0
    %4679 = vmatpush1.bf16.msra.mxu0 %v4478
    %4680 = vmatprep.subr.bf16.mxu0 0
    %4681 = vmatpush1.bf16.msra.mxu0 %v4477
    %4682 = vmatprep.subr.bf16.mxu0 0
    %4683 = vmatpush1.bf16.msra.mxu0 %v4476
    %4684 = vmatprep.subr.bf16.mxu0 0
    %4685 = vmatpush1.bf16.msra.mxu0 %v4475
    %4686 = vmatprep.subr.bf16.mxu0 0
    %4687 = vmatpush1.bf16.msra.mxu0 %v4474
    %4688 = vmatprep.subr.bf16.mxu0 0
    %4689 = vmatpush1.bf16.msra.mxu0 %v4473
    %4690 = vmatprep.subr.bf16.mxu0 0
    %4691 = vmatpush2.bf16.msra.mxu0 0
    %4692 = vmatprep.subr.bf16.mxu0 0
    %4693 = vmatpush2.bf16.msra.mxu0 0
    %4694 = vmatprep.subr.bf16.mxu0 0
    %4695 = vmatpush2.bf16.msra.mxu0 0
    %4696 = vmatprep.subr.bf16.mxu0 0
    %4697 = vmatpush2.bf16.msra.mxu0 0
    %4698 = vmatprep.subr.bf16.mxu0 0
    %4699 = vmatpush2.bf16.msra.mxu0 0
    %4700 = vmatprep.subr.bf16.mxu0 0
    %4701 = vmatpush2.bf16.msra.mxu0 0
    %4702 = vmatprep.subr.bf16.mxu0 0
    %4703 = vmatpush2.bf16.msra.mxu0 0
    %4704 = vmatprep.subr.bf16.mxu0 0
    %4705 = vmatpush2.bf16.msra.mxu0 0
    %4706 = vmatprep.mubr.bf16.mxu0 0
    %4707 = vmatmul.mubr.bf16.gmra.mxu0 %v4296
    %v4708 = vpop.f32.mrf.mxu0
    %v4709 = vadd.f32 %v4540, %v4708
    %v4710 = vpop.f32.mrf.mxu0
    %v4711 = vpop.f32.mrf.mxu0
    %v4712 = vadd.f32 %v4543, %v4711
    %v4713 = vpop.f32.mrf.mxu0
    %4714 = vmatprep.mubr.bf16.mxu0 0
    %4715 = vmatmul.mubr.bf16.gmra.mxu0 %v4297
    %v4716 = vpop.f32.mrf.mxu0
    %v4717 = vadd.f32 %v4548, %v4716
    %v4718 = vpop.f32.mrf.mxu0
    %v4719 = vpop.f32.mrf.mxu0
    %v4720 = vadd.f32 %v4551, %v4719
    %v4721 = vpop.f32.mrf.mxu0
    %4722 = vmatprep.mubr.bf16.mxu0 0
    %4723 = vmatmul.mubr.bf16.gmra.mxu0 %v4298
    %v4724 = vpop.f32.mrf.mxu0
    %v4725 = vadd.f32 %v4556, %v4724
    %v4726 = vpop.f32.mrf.mxu0
    %v4727 = vpop.f32.mrf.mxu0
    %v4728 = vadd.f32 %v4559, %v4727
    %v4729 = vpop.f32.mrf.mxu0
    %4730 = vmatprep.mubr.bf16.mxu0 0
    %4731 = vmatmul.mubr.bf16.gmra.mxu0 %v4299
    %v4732 = vpop.f32.mrf.mxu0
    %v4733 = vadd.f32 %v4564, %v4732
    %v4734 = vpop.f32.mrf.mxu0
    %v4735 = vpop.f32.mrf.mxu0
    %v4736 = vadd.f32 %v4567, %v4735
    %v4737 = vpop.f32.mrf.mxu0
    %4738 = vmatprep.mubr.bf16.mxu0 0
    %4739 = vmatmul.mubr.bf16.gmra.mxu0 %v4300
    %v4740 = vpop.f32.mrf.mxu0
    %v4741 = vadd.f32 %v4572, %v4740
    %v4742 = vpop.f32.mrf.mxu0
    %v4743 = vpop.f32.mrf.mxu0
    %v4744 = vadd.f32 %v4575, %v4743
    %v4745 = vpop.f32.mrf.mxu0
    %4746 = vmatprep.mubr.bf16.mxu0 0
    %4747 = vmatmul.mubr.bf16.gmra.mxu0 %v4301
    %v4748 = vpop.f32.mrf.mxu0
    %v4749 = vadd.f32 %v4580, %v4748
    %v4750 = vpop.f32.mrf.mxu0
    %v4751 = vpop.f32.mrf.mxu0
    %v4752 = vadd.f32 %v4583, %v4751
    %v4753 = vpop.f32.mrf.mxu0
    %4754 = vmatprep.mubr.bf16.mxu0 0
    %4755 = vmatmul.mubr.bf16.gmra.mxu0 %v4302
    %v4756 = vpop.f32.mrf.mxu0
    %v4757 = vadd.f32 %v4588, %v4756
    %v4758 = vpop.f32.mrf.mxu0
    %v4759 = vpop.f32.mrf.mxu0
    %v4760 = vadd.f32 %v4591, %v4759
    %v4761 = vpop.f32.mrf.mxu0
    %4762 = vmatprep.mubr.bf16.mxu0 0
    %4763 = vmatmul.mubr.bf16.gmra.mxu0 %v4303
    %v4764 = vpop.f32.mrf.mxu0
    %v4765 = vadd.f32 %v4596, %v4764
    %v4766 = vpop.f32.mrf.mxu0
    %v4767 = vpop.f32.mrf.mxu0
    %v4768 = vadd.f32 %v4599, %v4767
    %v4769 = vpop.f32.mrf.mxu0
    %4770 = vmatprep.mubr.bf16.mxu0 0
    %4771 = vmatmul.mubr.bf16.gmra.mxu0 %v4304
    %v4772 = vpop.f32.mrf.mxu0
    %v4773 = vadd.f32 %v4604, %v4772
    %v4774 = vpop.f32.mrf.mxu0
    %v4775 = vpop.f32.mrf.mxu0
    %v4776 = vadd.f32 %v4607, %v4775
    %v4777 = vpop.f32.mrf.mxu0
    %4778 = vmatprep.mubr.bf16.mxu0 0
    %4779 = vmatmul.mubr.bf16.gmra.mxu0 %v4305
    %v4780 = vpop.f32.mrf.mxu0
    %v4781 = vadd.f32 %v4612, %v4780
    %v4782 = vpop.f32.mrf.mxu0
    %v4783 = vpop.f32.mrf.mxu0
    %v4784 = vadd.f32 %v4615, %v4783
    %v4785 = vpop.f32.mrf.mxu0
    %4786 = vmatprep.mubr.bf16.mxu0 0
    %4787 = vmatmul.mubr.bf16.gmra.mxu0 %v4306
    %v4788 = vpop.f32.mrf.mxu0
    %v4789 = vadd.f32 %v4620, %v4788
    %v4790 = vpop.f32.mrf.mxu0
    %v4791 = vpop.f32.mrf.mxu0
    %v4792 = vadd.f32 %v4623, %v4791
    %v4793 = vpop.f32.mrf.mxu0
    %4794 = vmatprep.mubr.bf16.mxu0 0
    %4795 = vmatmul.mubr.bf16.gmra.mxu0 %v4307
    %v4796 = vpop.f32.mrf.mxu0
    %v4797 = vadd.f32 %v4628, %v4796
    %v4798 = vpop.f32.mrf.mxu0
    %v4799 = vpop.f32.mrf.mxu0
    %v4800 = vadd.f32 %v4631, %v4799
    %v4801 = vpop.f32.mrf.mxu0
    %4802 = vmatprep.mubr.bf16.mxu0 0
    %4803 = vmatmul.mubr.bf16.gmra.mxu0 %v4308
    %v4804 = vpop.f32.mrf.mxu0
    %v4805 = vadd.f32 %v4636, %v4804
    %v4806 = vpop.f32.mrf.mxu0
    %v4807 = vpop.f32.mrf.mxu0
    %v4808 = vadd.f32 %v4639, %v4807
    %v4809 = vpop.f32.mrf.mxu0
    %4810 = vmatprep.mubr.bf16.mxu0 0
    %4811 = vmatmul.mubr.bf16.gmra.mxu0 %v4309
    %v4812 = vpop.f32.mrf.mxu0
    %v4813 = vadd.f32 %v4644, %v4812
    %v4814 = vpop.f32.mrf.mxu0
    %v4815 = vpop.f32.mrf.mxu0
    %v4816 = vadd.f32 %v4647, %v4815
    %v4817 = vpop.f32.mrf.mxu0
    %4818 = vmatprep.mubr.bf16.mxu0 0
    %4819 = vmatmul.mubr.bf16.gmra.mxu0 %v4310
    %v4820 = vpop.f32.mrf.mxu0
    %v4821 = vadd.f32 %v4652, %v4820
    %v4822 = vpop.f32.mrf.mxu0
    %v4823 = vpop.f32.mrf.mxu0
    %v4824 = vadd.f32 %v4655, %v4823
    %v4825 = vpop.f32.mrf.mxu0
    %4826 = vmatprep.mubr.bf16.mxu0 0
    %4827 = vmatmul.mubr.bf16.gmra.mxu0 %v4311
    %v4828 = vpop.f32.mrf.mxu0
    %v4829 = vadd.f32 %v4660, %v4828
    %v4830 = vpop.f32.mrf.mxu0
    %v4831 = vpop.f32.mrf.mxu0
    %v4832 = vadd.f32 %v4663, %v4831
    %v4833 = vpop.f32.mrf.mxu0
    %4834 = vmatprep.mubr.bf16.mxu0 0
    %4835 = vmatmul.mubr.bf16.gmra.mxu0 %v4312
    %v4836 = vpop.f32.mrf.mxu0
    %v4837 = vadd.f32 %v4668, %v4836
    %v4838 = vpop.f32.mrf.mxu0
    %v4839 = vpop.f32.mrf.mxu0
    %v4840 = vadd.f32 %v4671, %v4839
    %v4841 = vpop.f32.mrf.mxu0
    %4842 = vdwg.mxu0
    %v4843 = vadd.f32 %v4026, %v4709
    %v4844 = vadd.f32 %v4029, %v4712
    %v4845 = vadd.f32 %v4034, %v4717
    %v4846 = vadd.f32 %v4037, %v4720
    %v4847 = vadd.f32 %v4042, %v4725
    %v4848 = vadd.f32 %v4045, %v4728
    %v4849 = vadd.f32 %v4050, %v4733
    %v4850 = vadd.f32 %v4053, %v4736
    %v4851 = vadd.f32 %v4058, %v4741
    %v4852 = vadd.f32 %v4061, %v4744
    %v4853 = vadd.f32 %v4066, %v4749
    %v4854 = vadd.f32 %v4069, %v4752
    %v4855 = vadd.f32 %v4074, %v4757
    %v4856 = vadd.f32 %v4077, %v4760
    %v4857 = vadd.f32 %v4082, %v4765
    %v4858 = vadd.f32 %v4085, %v4768
    %v4859 = vadd.f32 %v4090, %v4773
    %v4860 = vadd.f32 %v4093, %v4776
    %v4861 = vadd.f32 %v4098, %v4781
    %v4862 = vadd.f32 %v4101, %v4784
    %v4863 = vadd.f32 %v4106, %v4789
    %v4864 = vadd.f32 %v4109, %v4792
    %v4865 = vadd.f32 %v4114, %v4797
    %v4866 = vadd.f32 %v4117, %v4800
    %v4867 = vadd.f32 %v4122, %v4805
    %v4868 = vadd.f32 %v4125, %v4808
    %v4869 = vadd.f32 %v4130, %v4813
    %v4870 = vadd.f32 %v4133, %v4816
    %v4871 = vadd.f32 %v4138, %v4821
    %v4872 = vadd.f32 %v4141, %v4824
    %v4873 = vadd.f32 %v4146, %v4829
    %v4874 = vadd.f32 %v4149, %v4832
    %v4875 = vadd.f32 %v4154, %v4837
    %v4876 = vadd.f32 %v4157, %v4840
    %v4877 = vld [vmem:[%s4] sm:$0x1]
    %v4879 = vlaneseq
    %v4880 = vshrl.u32 %v4879, 7
    %v4881 = vsub.s32 0, %v4880
    %v4882 = vrot.slane %v4877, %v4881
    %v4884 = vadd.f32 %v4843, %v4882
    %v4885 = vadd.f32 %v4844, %v4882
    %v4886 = vadd.f32 %v4845, %v4882
    %v4887 = vadd.f32 %v4846, %v4882
    %v4888 = vadd.f32 %v4847, %v4882
    %v4889 = vadd.f32 %v4848, %v4882
    %v4890 = vadd.f32 %v4849, %v4882
    %v4891 = vadd.f32 %v4850, %v4882
    %v4892 = vadd.f32 %v4851, %v4882
    %v4893 = vadd.f32 %v4852, %v4882
    %v4894 = vadd.f32 %v4853, %v4882
    %v4895 = vadd.f32 %v4854, %v4882
    %v4896 = vadd.f32 %v4855, %v4882
    %v4897 = vadd.f32 %v4856, %v4882
    %v4898 = vadd.f32 %v4857, %v4882
    %v4899 = vadd.f32 %v4858, %v4882
    %v4900 = vadd.f32 %v4859, %v4882
    %v4901 = vadd.f32 %v4860, %v4882
    %v4902 = vadd.f32 %v4861, %v4882
    %v4903 = vadd.f32 %v4862, %v4882
    %v4904 = vadd.f32 %v4863, %v4882
    %v4905 = vadd.f32 %v4864, %v4882
    %v4906 = vadd.f32 %v4865, %v4882
    %v4907 = vadd.f32 %v4866, %v4882
    %v4908 = vadd.f32 %v4867, %v4882
    %v4909 = vadd.f32 %v4868, %v4882
    %v4910 = vadd.f32 %v4869, %v4882
    %v4911 = vadd.f32 %v4870, %v4882
    %v4912 = vadd.f32 %v4871, %v4882
    %v4913 = vadd.f32 %v4872, %v4882
    %v4914 = vadd.f32 %v4873, %v4882
    %v4915 = vadd.f32 %v4874, %v4882
    %v4916 = vadd.f32 %v4875, %v4882
    %v4917 = vadd.f32 %v4876, %v4882
    %v4918 = vsel %vm2782, %v4884, 0.0
    %v4919 = vsel %vm2783, %v4885, 0.0
    %v4920 = vsel %vm2784, %v4886, 0.0
    %v4921 = vsel %vm2785, %v4887, 0.0
    %v4922 = vsel %vm2786, %v4888, 0.0
    %v4923 = vsel %vm2787, %v4889, 0.0
    %v4924 = vsel %vm2788, %v4890, 0.0
    %v4925 = vsel %vm2789, %v4891, 0.0
    %v4926 = vsel %vm2790, %v4892, 0.0
    %v4927 = vsel %vm2791, %v4893, 0.0
    %v4928 = vsel %vm2792, %v4894, 0.0
    %v4929 = vsel %vm2793, %v4895, 0.0
    %v4930 = vsel %vm2794, %v4896, 0.0
    %v4931 = vsel %vm2795, %v4897, 0.0
    %v4932 = vsel %vm2796, %v4898, 0.0
    %v4933 = vsel %vm2797, %v4899, 0.0
    %v4934 = vsel %vm2798, %v4900, 0.0
    %v4935 = vsel %vm2799, %v4901, 0.0
    %v4936 = vsel %vm2800, %v4902, 0.0
    %v4937 = vsel %vm2801, %v4903, 0.0
    %v4938 = vsel %vm2802, %v4904, 0.0
    %v4939 = vsel %vm2803, %v4905, 0.0
    %v4940 = vsel %vm2804, %v4906, 0.0
    %v4941 = vsel %vm2805, %v4907, 0.0
    %v4942 = vsel %vm2806, %v4908, 0.0
    %v4943 = vsel %vm2807, %v4909, 0.0
    %v4944 = vsel %vm2808, %v4910, 0.0
    %v4945 = vsel %vm2809, %v4911, 0.0
    %v4946 = vsel %vm2810, %v4912, 0.0
    %v4947 = vsel %vm2811, %v4913, 0.0
    %v4948 = vsel %vm2812, %v4914, 0.0
    %v4949 = vsel %vm2813, %v4915, 0.0
    %v4950 = vsel %vm2814, %v4916, 0.0
    %v4951 = vsel %vm2815, %v4917, 0.0
    %v4952 = vadd.f32 %v4918, %v4919
    %v4953 = vadd.f32 %v4952, %v4920
    %v4954 = vadd.f32 %v4953, %v4921
    %v4955 = vadd.f32 %v4954, %v4922
    %v4956 = vadd.f32 %v4955, %v4923
    %v4957 = vadd.f32 %v4956, %v4924
    %v4958 = vadd.f32 %v4957, %v4925
    %v4959 = vadd.f32 %v4958, %v4926
    %v4960 = vadd.f32 %v4959, %v4927
    %v4961 = vadd.f32 %v4960, %v4928
    %v4962 = vadd.f32 %v4961, %v4929
    %v4963 = vadd.f32 %v4962, %v4930
    %v4964 = vadd.f32 %v4963, %v4931
    %v4965 = vadd.f32 %v4964, %v4932
    %v4966 = vadd.f32 %v4965, %v4933
    %v4967 = vadd.f32 %v4966, %v4934
    %v4968 = vadd.f32 %v4967, %v4935
    %v4969 = vadd.f32 %v4968, %v4936
    %v4970 = vadd.f32 %v4969, %v4937
    %v4971 = vadd.f32 %v4970, %v4938
    %v4972 = vadd.f32 %v4971, %v4939
    %v4973 = vadd.f32 %v4972, %v4940
    %v4974 = vadd.f32 %v4973, %v4941
    %v4975 = vadd.f32 %v4974, %v4942
    %v4976 = vadd.f32 %v4975, %v4943
    %v4977 = vadd.f32 %v4976, %v4944
    %v4978 = vadd.f32 %v4977, %v4945
    %v4979 = vadd.f32 %v4978, %v4946
    %v4980 = vadd.f32 %v4979, %v4947
    %v4981 = vadd.f32 %v4980, %v4948
    %v4982 = vadd.f32 %v4981, %v4949
    %v4983 = vadd.f32 %v4982, %v4950
    %v4984 = vadd.f32 %v4983, %v4951
    %v4985 = vrot.slane %v4984, 4
    %v4986 = vadd.f32 %v4984, %v4985
    %v4987 = vrot.slane %v4986, 2
    %v4988 = vadd.f32 %v4986, %v4987
    %v4989 = vrot.slane %v4988, 1
    %v4990 = vadd.f32 %v4988, %v4989
    %v4991 = vmul.f32 %v4990, 0.00390625
    %v4992 = vld [vmem:[#allocation9] sm:$0xff]
    %v4993 = vld [vmem:[#allocation9 + $0x8] sm:$0xff]
    %v4994 = vld [vmem:[#allocation9 + $0x10] sm:$0xff]
    %v4995 = vld [vmem:[#allocation9 + $0x18] sm:$0xff]
    %v4996 = vld [vmem:[#allocation9 + $0x20] sm:$0xff]
    %v4997 = vld [vmem:[#allocation9 + $0x28] sm:$0xff]
    %v4998 = vld [vmem:[#allocation9 + $0x30] sm:$0xff]
    %v4999 = vld [vmem:[#allocation9 + $0x38] sm:$0xff]
    %v5000 = vld [vmem:[#allocation9 + $0x40] sm:$0xff]
    %v5001 = vld [vmem:[#allocation9 + $0x48] sm:$0xff]
    %v5002 = vld [vmem:[#allocation9 + $0x50] sm:$0xff]
    %v5003 = vld [vmem:[#allocation9 + $0x58] sm:$0xff]
    %v5004 = vld [vmem:[#allocation9 + $0x60] sm:$0xff]
    %v5005 = vld [vmem:[#allocation9 + $0x68] sm:$0xff]
    %v5006 = vld [vmem:[#allocation9 + $0x70] sm:$0xff]
    %v5007 = vld [vmem:[#allocation9 + $0x78] sm:$0xff]
    %v5008 = vld [vmem:[%s6] sm:$0x1]
    %5009 = vmatprep.subr.mxu0 0.0
    %5010 = vmatpush1.msra.mxu0 %v5007
    %5011 = vmatprep.subr.mxu0 0.0
    %5012 = vmatpush1.msra.mxu0 %v5006
    %5013 = vmatprep.subr.mxu0 0.0
    %5014 = vmatpush1.msra.mxu0 %v5005
    %5015 = vmatprep.subr.mxu0 0.0
    %5016 = vmatpush1.msra.mxu0 %v5004
    %5017 = vmatprep.subr.mxu0 0.0
    %5018 = vmatpush1.msra.mxu0 %v5003
    %5019 = vmatprep.subr.mxu0 0.0
    %5020 = vmatpush1.msra.mxu0 %v5002
    %5021 = vmatprep.subr.mxu0 0.0
    %5022 = vmatpush1.msra.mxu0 %v5001
    %5023 = vmatprep.subr.mxu0 0.0
    %5024 = vmatpush1.msra.mxu0 %v5000
    %5025 = vmatprep.subr.mxu0 0.0
    %5026 = vmatpush1.msra.mxu0 %v4999
    %5027 = vmatprep.subr.mxu0 0.0
    %5028 = vmatpush1.msra.mxu0 %v4998
    %5029 = vmatprep.subr.mxu0 0.0
    %5030 = vmatpush1.msra.mxu0 %v4997
    %5031 = vmatprep.subr.mxu0 0.0
    %5032 = vmatpush1.msra.mxu0 %v4996
    %5033 = vmatprep.subr.mxu0 0.0
    %5034 = vmatpush1.msra.mxu0 %v4995
    %5035 = vmatprep.subr.mxu0 0.0
    %5036 = vmatpush1.msra.mxu0 %v4994
    %5037 = vmatprep.subr.mxu0 0.0
    %5038 = vmatpush1.msra.mxu0 %v4993
    %5039 = vmatprep.subr.mxu0 0.0
    %5040 = vmatpush1.msra.mxu0 %v4992
    %5041 = vmatprep.subr.mxu0 0.0
    %5042 = vmatpush2.msra.mxu0 0.0
    %5043 = vmatprep.subr.mxu0 0.0
    %5044 = vmatpush2.msra.mxu0 0.0
    %5045 = vmatprep.subr.mxu0 0.0
    %5046 = vmatpush2.msra.mxu0 0.0
    %5047 = vmatprep.subr.mxu0 0.0
    %5048 = vmatpush2.msra.mxu0 0.0
    %5049 = vmatprep.subr.mxu0 0.0
    %5050 = vmatpush2.msra.mxu0 0.0
    %5051 = vmatprep.subr.mxu0 0.0
    %5052 = vmatpush2.msra.mxu0 0.0
    %5053 = vmatprep.subr.mxu0 0.0
    %5054 = vmatpush2.msra.mxu0 0.0
    %5055 = vmatprep.subr.mxu0 0.0
    %5056 = vmatpush2.msra.mxu0 0.0
    %5057 = vmatprep.subr.mxu0 0.0
    %5058 = vmatpush2.msra.mxu0 0.0
    %5059 = vmatprep.subr.mxu0 0.0
    %5060 = vmatpush2.msra.mxu0 0.0
    %5061 = vmatprep.subr.mxu0 0.0
    %5062 = vmatpush2.msra.mxu0 0.0
    %5063 = vmatprep.subr.mxu0 0.0
    %5064 = vmatpush2.msra.mxu0 0.0
    %5065 = vmatprep.subr.mxu0 0.0
    %5066 = vmatpush2.msra.mxu0 0.0
    %5067 = vmatprep.subr.mxu0 0.0
    %5068 = vmatpush2.msra.mxu0 0.0
    %5069 = vmatprep.subr.mxu0 0.0
    %5070 = vmatpush2.msra.mxu0 0.0
    %5071 = vmatprep.subr.mxu0 0.0
    %5072 = vmatpush2.msra.mxu0 0.0
    %5073 = vmatprep.mubr.f32.mxu0 0.0
    %5074 = vmatmul.mubr.f32.gmra.mxu0 %v4991
    %v5075 = vpop.f32.mrf.mxu0
    %v5076 = vadd.f32 %v5008, %v5075
    %v5077 = vpop.f32.mrf.mxu0
    %5078 = vdwg.mxu0
    %v5079 = vmax.f32 %v5076, 0.0
    %v5080 = vld [vmem:[#allocation11] sm:$0xff]
    %v5081 = vld [vmem:[#allocation11 + $0x8] sm:$0xff]
    %v5082 = vld [vmem:[#allocation11 + $0x10] sm:$0xff]
    %v5083 = vld [vmem:[#allocation11 + $0x18] sm:$0xff]
    %v5084 = vld [vmem:[#allocation11 + $0x20] sm:$0xff]
    %v5085 = vld [vmem:[#allocation11 + $0x28] sm:$0xff]
    %v5086 = vld [vmem:[#allocation11 + $0x30] sm:$0xff]
    %v5087 = vld [vmem:[#allocation11 + $0x38] sm:$0xff]
    %v5088 = vld [vmem:[#allocation11 + $0x40] sm:$0xff]
    %v5089 = vld [vmem:[#allocation11 + $0x48] sm:$0xff]
    %v5090 = vld [vmem:[#allocation11 + $0x50] sm:$0xff]
    %v5091 = vld [vmem:[#allocation11 + $0x58] sm:$0xff]
    %v5092 = vld [vmem:[#allocation11 + $0x60] sm:$0xff]
    %v5093 = vld [vmem:[#allocation11 + $0x68] sm:$0xff]
    %v5094 = vld [vmem:[#allocation11 + $0x70] sm:$0xff]
    %v5095 = vld [vmem:[#allocation11 + $0x78] sm:$0xff]
    %v5096 = vld [vmem:[%s8] sm:$0x1]
    %5097 = vmatprep.subr.mxu0 0.0
    %5098 = vmatpush1.msra.mxu0 %v5095
    %5099 = vmatprep.subr.mxu0 0.0
    %5100 = vmatpush1.msra.mxu0 %v5094
    %5101 = vmatprep.subr.mxu0 0.0
    %5102 = vmatpush1.msra.mxu0 %v5093
    %5103 = vmatprep.subr.mxu0 0.0
    %5104 = vmatpush1.msra.mxu0 %v5092
    %5105 = vmatprep.subr.mxu0 0.0
    %5106 = vmatpush1.msra.mxu0 %v5091
    %5107 = vmatprep.subr.mxu0 0.0
    %5108 = vmatpush1.msra.mxu0 %v5090
    %5109 = vmatprep.subr.mxu0 0.0
    %5110 = vmatpush1.msra.mxu0 %v5089
    %5111 = vmatprep.subr.mxu0 0.0
    %5112 = vmatpush1.msra.mxu0 %v5088
    %5113 = vmatprep.subr.mxu0 0.0
    %5114 = vmatpush1.msra.mxu0 %v5087
    %5115 = vmatprep.subr.mxu0 0.0
    %5116 = vmatpush1.msra.mxu0 %v5086
    %5117 = vmatprep.subr.mxu0 0.0
    %5118 = vmatpush1.msra.mxu0 %v5085
    %5119 = vmatprep.subr.mxu0 0.0
    %5120 = vmatpush1.msra.mxu0 %v5084
    %5121 = vmatprep.subr.mxu0 0.0
    %5122 = vmatpush1.msra.mxu0 %v5083
    %5123 = vmatprep.subr.mxu0 0.0
    %5124 = vmatpush1.msra.mxu0 %v5082
    %5125 = vmatprep.subr.mxu0 0.0
    %5126 = vmatpush1.msra.mxu0 %v5081
    %5127 = vmatprep.subr.mxu0 0.0
    %5128 = vmatpush1.msra.mxu0 %v5080
    %5129 = vmatprep.subr.mxu0 0.0
    %5130 = vmatpush2.msra.mxu0 0.0
    %5131 = vmatprep.subr.mxu0 0.0
    %5132 = vmatpush2.msra.mxu0 0.0
    %5133 = vmatprep.subr.mxu0 0.0
    %5134 = vmatpush2.msra.mxu0 0.0
    %5135 = vmatprep.subr.mxu0 0.0
    %5136 = vmatpush2.msra.mxu0 0.0
    %5137 = vmatprep.subr.mxu0 0.0
    %5138 = vmatpush2.msra.mxu0 0.0
    %5139 = vmatprep.subr.mxu0 0.0
    %5140 = vmatpush2.msra.mxu0 0.0
    %5141 = vmatprep.subr.mxu0 0.0
    %5142 = vmatpush2.msra.mxu0 0.0
    %5143 = vmatprep.subr.mxu0 0.0
    %5144 = vmatpush2.msra.mxu0 0.0
    %5145 = vmatprep.subr.mxu0 0.0
    %5146 = vmatpush2.msra.mxu0 0.0
    %5147 = vmatprep.subr.mxu0 0.0
    %5148 = vmatpush2.msra.mxu0 0.0
    %5149 = vmatprep.subr.mxu0 0.0
    %5150 = vmatpush2.msra.mxu0 0.0
    %5151 = vmatprep.subr.mxu0 0.0
    %5152 = vmatpush2.msra.mxu0 0.0
    %5153 = vmatprep.subr.mxu0 0.0
    %5154 = vmatpush2.msra.mxu0 0.0
    %5155 = vmatprep.subr.mxu0 0.0
    %5156 = vmatpush2.msra.mxu0 0.0
    %5157 = vmatprep.subr.mxu0 0.0
    %5158 = vmatpush2.msra.mxu0 0.0
    %5159 = vmatprep.subr.mxu0 0.0
    %5160 = vmatpush2.msra.mxu0 0.0
    %5161 = vmatprep.mubr.f32.mxu0 0.0
    %5162 = vmatmul.mubr.f32.gmra.mxu0 %v5079
    %v5163 = vpop.f32.mrf.mxu0
    %v5164 = vadd.f32 %v5096, %v5163
    %v5165 = vpop.f32.mrf.mxu0
    %5166 = vdwg.mxu0
    %v5167 = vxor.u32 %v5164, 2147483648
    %v5168 = vmul.f32 %v5167, 1.442695
    %v5169 = vpow.pop %v5168
    %v5170 = vadd.f32 %v5169, 1.0
    %v5171 = vrcp.pop %v5170
    %v5172 = vmul.f32 1.0, %v5171
    %v5173 = vld [vmem:[#allocation3 + $0x18] sm:$0xff]
    %v5174 = vld [vmem:[#allocation3 + $0x20] sm:$0xff]
    %v5175 = vld [vmem:[#allocation3 + $0x28] sm:$0xff]
    %v5176 = vld [vmem:[#allocation3 + $0x30] sm:$0xff]
    %v5177 = vld [vmem:[#allocation3 + $0x38] sm:$0xff]
    %v5178 = vld [vmem:[#allocation3 + $0x40] sm:$0xff]
    %v5179 = vld [vmem:[#allocation3 + $0x48] sm:$0xff]
    %v5180 = vld [vmem:[#allocation3 + $0x50] sm:$0xff]
    %v5181 = vld [vmem:[#allocation3 + $0x58] sm:$0xff]
    %v5182 = vld [vmem:[#allocation3 + $0x60] sm:$0xff]
    %v5183 = vld [vmem:[#allocation3 + $0x68] sm:$0xff]
    %v5184 = vld [vmem:[#allocation3 + $0x70] sm:$0xff]
    %v5185 = vld [vmem:[#allocation3 + $0x78] sm:$0xff]
    %v5186 = vld [vmem:[#allocation3 + $0x80] sm:$0xff]
    %v5187 = vld [vmem:[#allocation3 + $0x88] sm:$0xff]
    %v5188 = vld [vmem:[#allocation3 + $0x90] sm:$0xff]
    %v5189 = vld [vmem:[#allocation3 + $0x98] sm:$0xff]
    %v5190 = vld [vmem:[#allocation3 + $0xa0] sm:$0xff]
    %v5191 = vld [vmem:[#allocation3 + $0xa8] sm:$0xff]
    %v5192 = vld [vmem:[#allocation3 + $0xb0] sm:$0xff]
    %v5193 = vld [vmem:[#allocation3 + $0xb8] sm:$0xff]
    %v5194 = vld [vmem:[#allocation3 + $0xc0] sm:$0xff]
    %v5195 = vld [vmem:[#allocation3 + $0xc8] sm:$0xff]
    %v5196 = vld [vmem:[#allocation3 + $0xd0] sm:$0xff]
    %v5197 = vld [vmem:[#allocation3 + $0xd8] sm:$0xff]
    %v5198 = vld [vmem:[#allocation3 + $0xe0] sm:$0xff]
    %v5199 = vld [vmem:[#allocation3 + $0xe8] sm:$0xff]
    %v5200 = vld [vmem:[#allocation3 + $0xf0] sm:$0xff]
    %v5201 = vld [vmem:[#allocation3 + $0xf8] sm:$0xff]
    %v5202 = vld [vmem:[#allocation3 + $0x100] sm:$0xff]
    %v5203 = vld [vmem:[#allocation3 + $0x108] sm:$0xff]
    %v5204 = vld [vmem:[#allocation3 + $0x110] sm:$0xff]
    %v5205 = vld [vmem:[#allocation3 + $0x118] sm:$0xff]
    %v5206 = vld [vmem:[#allocation3 + $0x120] sm:$0xff]
    %v5207 = vlaneseq
    %v5208 = vshrl.u32 %v5207, 7
    %v5209 = vsub.s32 0, %v5208
    %v5210 = vrot.slane %v5172, %v5209
    %v5211 = vmul.f32 %v4918, %v5210
    %v5212 = vmul.f32 %v4919, %v5210
    %v5213 = vmul.f32 %v4920, %v5210
    %v5214 = vmul.f32 %v4921, %v5210
    %v5215 = vmul.f32 %v4922, %v5210
    %v5216 = vmul.f32 %v4923, %v5210
    %v5217 = vmul.f32 %v4924, %v5210
    %v5218 = vmul.f32 %v4925, %v5210
    %v5219 = vmul.f32 %v4926, %v5210
    %v5220 = vmul.f32 %v4927, %v5210
    %v5221 = vmul.f32 %v4928, %v5210
    %v5222 = vmul.f32 %v4929, %v5210
    %v5223 = vmul.f32 %v4930, %v5210
    %v5224 = vmul.f32 %v4931, %v5210
    %v5225 = vmul.f32 %v4932, %v5210
    %v5226 = vmul.f32 %v4933, %v5210
    %v5227 = vmul.f32 %v4934, %v5210
    %v5228 = vmul.f32 %v4935, %v5210
    %v5229 = vmul.f32 %v4936, %v5210
    %v5230 = vmul.f32 %v4937, %v5210
    %v5231 = vmul.f32 %v4938, %v5210
    %v5232 = vmul.f32 %v4939, %v5210
    %v5233 = vmul.f32 %v4940, %v5210
    %v5234 = vmul.f32 %v4941, %v5210
    %v5235 = vmul.f32 %v4942, %v5210
    %v5236 = vmul.f32 %v4943, %v5210
    %v5237 = vmul.f32 %v4944, %v5210
    %v5238 = vmul.f32 %v4945, %v5210
    %v5239 = vmul.f32 %v4946, %v5210
    %v5240 = vmul.f32 %v4947, %v5210
    %v5241 = vmul.f32 %v4948, %v5210
    %v5242 = vmul.f32 %v4949, %v5210
    %v5243 = vmul.f32 %v4950, %v5210
    %v5244 = vmul.f32 %v4951, %v5210
    %v5245 = vadd.f32 %v5211, %v5173
    %v5246 = vadd.f32 %v5212, %v5174
    %v5247 = vadd.f32 %v5213, %v5175
    %v5248 = vadd.f32 %v5214, %v5176
    %v5249 = vadd.f32 %v5215, %v5177
    %v5250 = vadd.f32 %v5216, %v5178
    %v5251 = vadd.f32 %v5217, %v5179
    %v5252 = vadd.f32 %v5218, %v5180
    %v5253 = vadd.f32 %v5219, %v5181
    %v5254 = vadd.f32 %v5220, %v5182
    %v5255 = vadd.f32 %v5221, %v5183
    %v5256 = vadd.f32 %v5222, %v5184
    %v5257 = vadd.f32 %v5223, %v5185
    %v5258 = vadd.f32 %v5224, %v5186
    %v5259 = vadd.f32 %v5225, %v5187
    %v5260 = vadd.f32 %v5226, %v5188
    %v5261 = vadd.f32 %v5227, %v5189
    %v5262 = vadd.f32 %v5228, %v5190
    %v5263 = vadd.f32 %v5229, %v5191
    %v5264 = vadd.f32 %v5230, %v5192
    %v5265 = vadd.f32 %v5231, %v5193
    %v5266 = vadd.f32 %v5232, %v5194
    %v5267 = vadd.f32 %v5233, %v5195
    %v5268 = vadd.f32 %v5234, %v5196
    %v5269 = vadd.f32 %v5235, %v5197
    %v5270 = vadd.f32 %v5236, %v5198
    %v5271 = vadd.f32 %v5237, %v5199
    %v5272 = vadd.f32 %v5238, %v5200
    %v5273 = vadd.f32 %v5239, %v5201
    %v5274 = vadd.f32 %v5240, %v5202
    %v5275 = vadd.f32 %v5241, %v5203
    %v5276 = vadd.f32 %v5242, %v5204
    %v5277 = vadd.f32 %v5243, %v5205
    %v5278 = vadd.f32 %v5244, %v5206
    %5279 = vst [vmem:[#allocation12] sm:$0xff] %v5245
    %5280 = vst [vmem:[#allocation12 + $0x8] sm:$0xff] %v5246
    %5281 = vst [vmem:[#allocation12 + $0x10] sm:$0xff] %v5247
    %5282 = vst [vmem:[#allocation12 + $0x18] sm:$0xff] %v5248
    %5283 = vst [vmem:[#allocation12 + $0x20] sm:$0xff] %v5249
    %5284 = vst [vmem:[#allocation12 + $0x28] sm:$0xff] %v5250
    %5285 = vst [vmem:[#allocation12 + $0x30] sm:$0xff] %v5251
    %5286 = vst [vmem:[#allocation12 + $0x38] sm:$0xff] %v5252
    %5287 = vst [vmem:[#allocation12 + $0x40] sm:$0xff] %v5253
    %5288 = vst [vmem:[#allocation12 + $0x48] sm:$0xff] %v5254
    %5289 = vst [vmem:[#allocation12 + $0x50] sm:$0xff] %v5255
    %5290 = vst [vmem:[#allocation12 + $0x58] sm:$0xff] %v5256
    %5291 = vst [vmem:[#allocation12 + $0x60] sm:$0xff] %v5257
    %5292 = vst [vmem:[#allocation12 + $0x68] sm:$0xff] %v5258
    %5293 = vst [vmem:[#allocation12 + $0x70] sm:$0xff] %v5259
    %5294 = vst [vmem:[#allocation12 + $0x78] sm:$0xff] %v5260
    %5295 = vst [vmem:[#allocation12 + $0x80] sm:$0xff] %v5261
    %5296 = vst [vmem:[#allocation12 + $0x88] sm:$0xff] %v5262
    %5297 = vst [vmem:[#allocation12 + $0x90] sm:$0xff] %v5263
    %5298 = vst [vmem:[#allocation12 + $0x98] sm:$0xff] %v5264
    %5299 = vst [vmem:[#allocation12 + $0xa0] sm:$0xff] %v5265
    %5300 = vst [vmem:[#allocation12 + $0xa8] sm:$0xff] %v5266
    %5301 = vst [vmem:[#allocation12 + $0xb0] sm:$0xff] %v5267
    %5302 = vst [vmem:[#allocation12 + $0xb8] sm:$0xff] %v5268
    %5303 = vst [vmem:[#allocation12 + $0xc0] sm:$0xff] %v5269
    %5304 = vst [vmem:[#allocation12 + $0xc8] sm:$0xff] %v5270
    %5305 = vst [vmem:[#allocation12 + $0xd0] sm:$0xff] %v5271
    %5306 = vst [vmem:[#allocation12 + $0xd8] sm:$0xff] %v5272
    %5307 = vst [vmem:[#allocation12 + $0xe0] sm:$0xff] %v5273
    %5308 = vst [vmem:[#allocation12 + $0xe8] sm:$0xff] %v5274
    %5309 = vst [vmem:[#allocation12 + $0xf0] sm:$0xff] %v5275
    %5310 = vst [vmem:[#allocation12 + $0xf8] sm:$0xff] %v5276
    %5311 = vst [vmem:[#allocation12 + $0x100] sm:$0xff] %v5277
    %5312 = vst [vmem:[#allocation12 + $0x108] sm:$0xff] %v5278
    // Predicated region
    $region58: #{tpu_custom_call.1} parent=1 // pred_check
      _
    $region59: #{tpu_custom_call.1} parent=1 // pred_check_branch
      %5314 = sbr.rel (0) target = $region61
    $region60: #{tpu_custom_call.1} parent=1 // pred_region
      %s5316 = ssub.s32 4352, 4352
      %5317 = vsyncadd [#allocation5], %s5316
      %s5318 = sshll.u32 [#allocation12], 4
      %s5319 = int_to_ptr.vmem [resolvable:$true] %s5318
      %5324 = dma.vmem_to_hbm [thread:$0]  %s5319, 4352, %s9, [#allocation5], 128, 128, 8
    $region61: #{tpu_custom_call.1} parent=1 // pred_fallthru
      _
    // Predicated region
    $region62: #{tpu_custom_call.1} parent=1 // pred_check
      _
    $region63: #{tpu_custom_call.1} parent=1 // pred_check_branch
      %5326 = sbr.rel (0) target = $region65
    $region64: #{tpu_custom_call.1} parent=1 // pred_region
      %5327 = dma.done [#allocation5], 4352
    $region65: #{tpu_custom_call.1} parent=1 // pred_fallthru
      _
    %5328 = vsyncpa [#allocation4], 1
    %5329 = vsyncpa [#allocation7], 1
    %5330 = vsyncpa [#allocation10], 1
    %5331 = vsyncpa [#allocation5], 1

</llo_original>
